<compile_context>
chip_gen: v6e
topology: v6e:2x2x1
jax: 0.10.0
libtpu: 0.0.40
codegen_flags: <defaults>
</compile_context>

<pallas_src>
import functools

import jax
import jax.numpy as jnp
from jax.experimental import pallas as pl
from jax.experimental.pallas import tpu as pltpu


def _band(n, taps):
    # Cross-correlation (PyTorch conv2d, zero padding) as a banded n x n matrix:
    #   M[i, i + d] = taps[d + 1]  for d in {-1, 0, 1}
    return (taps[0] * jnp.eye(n, k=-1)
            + taps[1] * jnp.eye(n, k=0)
            + taps[2] * jnp.eye(n, k=1)).astype(jnp.float32)


def _texture_l1_kernel(pred_ref, targ_ref, lx_ref, rxt_ref, ly_ref, ryt_ref,
                       out_ref, *, eps):
    tn, h, w = pred_ref.shape
    n2 = 2 * tn

    lx = lx_ref[...]     # (H, H) rows-op for sobel-x  (smooth ∘ box)
    rxt = rxt_ref[...]   # (W, W) cols-op^T for sobel-x (diff ∘ box)^T
    ly = ly_ref[...]     # (H, H) rows-op for sobel-y  (diff ∘ box)
    ryt = ryt_ref[...]   # (W, W) cols-op^T for sobel-y (smooth ∘ box)^T

    # Cast in-kernel (inputs are DMA'd in their original dtype).
    pred = pred_ref[...].astype(jnp.float32)
    targ = targ_ref[...].astype(jnp.float32)
    sig = 1.0 / (1.0 + jnp.exp(-pred))                # sigmoid on VPU/EUP

    # Stack sigmoid(pred) and target along the batch axis: both go through the
    # identical texture operator, so one set of matmuls handles both.
    u = jnp.concatenate([sig, targ], axis=0)          # (2tn, h, w)

    # W-side: one big (2tn*h, w) @ (w, w) MXU matmul per Sobel direction
    # (contiguous, free reshape).
    u2 = u.reshape(n2 * h, w)
    vx = jnp.dot(u2, rxt, preferred_element_type=jnp.float32).reshape(n2, h, w)
    vy = jnp.dot(u2, ryt, preferred_element_type=jnp.float32).reshape(n2, h, w)

    # H-side: batched matmul (batch = 2tn), natural (n, h, w) output layout
    # (no transposes through the XLU).  Broadcast hoisted outside any loop.
    lxb = jnp.broadcast_to(lx[None], (n2, h, h))
    lyb = jnp.broadcast_to(ly[None], (n2, h, h))
    gx = jnp.einsum('nhk,nkw->nhw', lxb, vx, preferred_element_type=jnp.float32)
    gy = jnp.einsum('nhk,nkw->nhw', lyb, vy, preferred_element_type=jnp.float32)

    tex = jnp.sqrt(gx * gx + gy * gy + eps)           # (2tn, h, w)

    # Split back into pred/target textures (leading-dim slice: tile aligned,
    # no lane/sublane shuffles) and take the per-element L1 difference.
    diff = jnp.abs(tex[:tn] - tex[tn:])               # (tn, h, w)

    # One cross-lane reduce per TN-image block, written as a lane-dense
    # (8, 128) tile -> unmasked vector store.
    out_ref[...] = jnp.full((8, 128), jnp.sum(diff), jnp.float32)


def _pick_tn(n, h, w):
    # Aim for 2*tn*h ~ 512 rows (fills MXU M-dim) but cap the f32 image-block
    # footprint at ~1 MiB so intermediates + double-buffered inputs fit the
    # default scoped-VMEM limit on every chip generation.
    tn = max(1, -(-256 // h))
    img_block_bytes = h * w * 4
    tn = min(tn, max(1, (1 << 20) // img_block_bytes))
    return max(1, min(tn, n))


def texture_l1_loss(pred, target, *, eps=1e-4, loss_weight=1.0):
    b, c, h, w = pred.shape
    assert target.shape == pred.shape
    n = b * c
    if n == 0 or h == 0 or w == 0:
        return jnp.float32(0.0)

    pred2 = pred.reshape(n, h, w)
    targ2 = target.reshape(n, h, w)

    tn = _pick_tn(n, h, w)
    n_blocks = -(-n // tn)
    n_pad = n_blocks * tn
    if n_pad != n:
        # Padded images contribute exactly zero: sigmoid(0) == 0.5 == target pad
        # => identical textures => |diff| == 0.
        pred2 = jnp.concatenate(
            [pred2, jnp.zeros((n_pad - n, h, w), pred2.dtype)], axis=0)
        targ2 = jnp.concatenate(
            [targ2, jnp.full((n_pad - n, h, w), 0.5, targ2.dtype)], axis=0)

    # Fold avg_pool(3x3, stride 1, pad 1, count_include_pad=True) and the
    # separable Sobel taps into exact banded operators.
    box = (1.0 / 3.0, 1.0 / 3.0, 1.0 / 3.0)           # 3x3 avg-pool = box ⊗ box
    smooth = (0.5, 1.0, 0.5)                          # [1, 2, 1] / 2
    diffk = (0.5, 0.0, -0.5)                          # [1, 0, -1] / 2
    bh, bw = _band(h, box), _band(w, box)
    lx = _band(h, smooth) @ bh                        # sobel-x row operator
    rx = _band(w, diffk) @ bw                         # sobel-x col operator
    ly = _band(h, diffk) @ bh                         # sobel-y row operator
    ry = _band(w, smooth) @ bw                        # sobel-y col operator

    kernel = functools.partial(_texture_l1_kernel, eps=float(eps))

    partial_sums = pl.pallas_call(
        kernel,
        out_shape=jax.ShapeDtypeStruct((n_blocks, 8, 128), jnp.float32),
        grid_spec=pltpu.PrefetchScalarGridSpec(
            num_scalar_prefetch=0,
            grid=(n_blocks,),
            in_specs=[
                pl.BlockSpec((tn, h, w), lambda i: (i, 0, 0)),   # pred batch
                pl.BlockSpec((tn, h, w), lambda i: (i, 0, 0)),   # target batch
                pl.BlockSpec((h, h), lambda i: (0, 0)),          # Lx  (resident)
                pl.BlockSpec((w, w), lambda i: (0, 0)),          # Rx^T
                pl.BlockSpec((h, h), lambda i: (0, 0)),          # Ly
                pl.BlockSpec((w, w), lambda i: (0, 0)),          # Ry^T
            ],
            out_specs=pl.BlockSpec((None, 8, 128), lambda i: (i, 0, 0)),
        ),
        compiler_params=pltpu.CompilerParams(
            dimension_semantics=("parallel",)),      # megacore-safe on v7x
    )(pred2, targ2, lx, rx.T, ly, ry.T)

    scale = float(loss_weight) / float(n * h * w)    # 'mean' reduction
    return jnp.sum(partial_sums[:, 0, 0]) * scale


# ---------------- pure-JAX reference (mirrors the PyTorch module) ----------------
def _sobel_ref(x, eps):
    b, c, h, w = x.shape
    x = x.reshape(b * c, 1, h, w)
    dn = jax.lax.conv_dimension_numbers(x.shape, (1, 1, 3, 3),
                                        ('NCHW', 'OIHW', 'NCHW'))
    pad = [(1, 1), (1, 1)]
    box = jnp.ones((1, 1, 3, 3), jnp.float32) / 9.0
    kx = (jnp.array([[1, 0, -1], [2, 0, -2], [1, 0, -1]], jnp.float32) / 4.0)[None, None]
    ky = (jnp.array([[1, 2, 1], [0, 0, 0], [-1, -2, -1]], jnp.float32) / 4.0)[None, None]
    pooled = jax.lax.conv_general_dilated(x, box, (1, 1), pad, dimension_numbers=dn)
    gx = jax.lax.conv_general_dilated(pooled, kx, (1, 1), pad, dimension_numbers=dn)
    gy = jax.lax.conv_general_dilated(pooled, ky, (1, 1), pad, dimension_numbers=dn)
    return jnp.sqrt(gx ** 2 + gy ** 2 + eps).reshape(b, c, h, w)


def _texture_l1_ref(pred, target, eps=1e-4, loss_weight=1.0):
    pt = _sobel_ref(jax.nn.sigmoid(pred), eps)
    tt = _sobel_ref(target, eps)
    return loss_weight * jnp.mean(jnp.abs(pt - tt))


if __name__ == "__main__":
    key = jax.random.PRNGKey(0)
    k1, k2 = jax.random.split(key)
    pred = jax.random.normal(k1, (2, 4, 16, 16), jnp.float32)
    target = jax.nn.sigmoid(jax.random.normal(k2, (2, 4, 16, 16), jnp.float32))

    # TODO(synk): optional `weight` / `avg_factor` / `reduction_override` args of
    # the PyTorch forward are not modeled (defaults: None / None / 'mean').
    loss = texture_l1_loss(pred, target)
    loss = jax.block_until_ready(loss)

    ref = _texture_l1_ref(pred, target)
    assert jnp.allclose(loss, ref, rtol=1e-4, atol=1e-6), (loss, ref)
    print("KERNEL_OK")
</pallas_src>

<mosaic_0001>
module attributes {stable_mosaic.version = 11 : i64} {
  func.func @_texture_l1_kernel(%arg0: i32, %arg1: memref<8x16x16xf32, #tpu.memory_space<vmem>>, %arg2: memref<8x16x16xf32, #tpu.memory_space<vmem>>, %arg3: memref<16x16xf32, #tpu.memory_space<vmem>>, %arg4: memref<16x16xf32, #tpu.memory_space<vmem>>, %arg5: memref<16x16xf32, #tpu.memory_space<vmem>>, %arg6: memref<16x16xf32, #tpu.memory_space<vmem>>, %arg7: memref<1x8x128xf32, #tpu.memory_space<vmem>>) attributes {dimension_semantics = [#tpu.dimension_semantics<parallel>], iteration_bounds = array<i64: 1>, scalar_prefetch = 0 : i64, scratch_operands = 0 : i64, tpu.core_type = #tpu.core_type<tc>, window_params = [{transform_indices = @transform_0, window_bounds = array<i64: 8, 16, 16>}, {transform_indices = @transform_1, window_bounds = array<i64: 8, 16, 16>}, {pipeline_mode = #tpu.pipeline_mode<synchronous>, transform_indices = @transform_2, window_bounds = array<i64: 16, 16>}, {pipeline_mode = #tpu.pipeline_mode<synchronous>, transform_indices = @transform_3, window_bounds = array<i64: 16, 16>}, {pipeline_mode = #tpu.pipeline_mode<synchronous>, transform_indices = @transform_4, window_bounds = array<i64: 16, 16>}, {pipeline_mode = #tpu.pipeline_mode<synchronous>, transform_indices = @transform_5, window_bounds = array<i64: 16, 16>}, {transform_indices = @transform_6, window_bounds = array<i64: 1, 8, 128>}]} {
    %c0 = arith.constant 0 : index
    %c0_0 = arith.constant 0 : index
    %0 = vector.load %arg3[%c0, %c0_0] : memref<16x16xf32, #tpu.memory_space<vmem>>, vector<16x16xf32>
    %c0_1 = arith.constant 0 : index
    %c0_2 = arith.constant 0 : index
    %1 = vector.load %arg4[%c0_1, %c0_2] : memref<16x16xf32, #tpu.memory_space<vmem>>, vector<16x16xf32>
    %c0_3 = arith.constant 0 : index
    %c0_4 = arith.constant 0 : index
    %2 = vector.load %arg5[%c0_3, %c0_4] : memref<16x16xf32, #tpu.memory_space<vmem>>, vector<16x16xf32>
    %c0_5 = arith.constant 0 : index
    %c0_6 = arith.constant 0 : index
    %3 = vector.load %arg6[%c0_5, %c0_6] : memref<16x16xf32, #tpu.memory_space<vmem>>, vector<16x16xf32>
    %c0_7 = arith.constant 0 : index
    %c0_8 = arith.constant 0 : index
    %c0_9 = arith.constant 0 : index
    %4 = vector.load %arg1[%c0_7, %c0_8, %c0_9] : memref<8x16x16xf32, #tpu.memory_space<vmem>>, vector<8x16x16xf32>
    %c0_10 = arith.constant 0 : index
    %c0_11 = arith.constant 0 : index
    %c0_12 = arith.constant 0 : index
    %5 = vector.load %arg2[%c0_10, %c0_11, %c0_12] : memref<8x16x16xf32, #tpu.memory_space<vmem>>, vector<8x16x16xf32>
    %cst = arith.constant 0.000000e+00 : f32
    %6 = vector.broadcast %cst : f32 to vector<8x16x16xf32>
    %7 = arith.subf %6, %4 : vector<8x16x16xf32>
    %8 = math.exp %7 : vector<8x16x16xf32>
    %cst_13 = arith.constant 1.000000e+00 : f32
    %9 = vector.broadcast %cst_13 : f32 to vector<8x16x16xf32>
    %10 = arith.addf %9, %8 : vector<8x16x16xf32>
    %cst_14 = arith.constant 1.000000e+00 : f32
    %11 = vector.broadcast %cst_14 : f32 to vector<8x16x16xf32>
    %12 = arith.divf %11, %10 : vector<8x16x16xf32>
    %13 = tpu.concatenate %12, %5 in 0 : vector<8x16x16xf32>, vector<8x16x16xf32> -> vector<16x16x16xf32>
    %14 = vector.shape_cast %13 : vector<16x16x16xf32> to vector<256x16xf32>
    %cst_15 = arith.constant dense<0.000000e+00> : vector<256x16xf32>
    %15 = tpu.matmul %14, %1, %cst_15 {dimension_numbers = #tpu.dot_dimension_numbers<[1], [0], [0], [1], [0, 0, 1, 1], [], []>} : vector<256x16xf32>, vector<16x16xf32>, vector<256x16xf32> -> vector<256x16xf32>
    %16 = vector.shape_cast %15 : vector<256x16xf32> to vector<16x16x16xf32>
    %cst_16 = arith.constant dense<0.000000e+00> : vector<256x16xf32>
    %17 = tpu.matmul %14, %3, %cst_16 {dimension_numbers = #tpu.dot_dimension_numbers<[1], [0], [0], [1], [0, 0, 1, 1], [], []>} : vector<256x16xf32>, vector<16x16xf32>, vector<256x16xf32> -> vector<256x16xf32>
    %18 = vector.shape_cast %17 : vector<256x16xf32> to vector<16x16x16xf32>
    %19 = vector.shape_cast %0 : vector<16x16xf32> to vector<1x16x16xf32>
    %20 = vector.shape_cast %19 : vector<1x16x16xf32> to vector<1x16x16xf32>
    %21 = vector.broadcast %20 : vector<1x16x16xf32> to vector<16x16x16xf32>
    %22 = vector.shape_cast %2 : vector<16x16xf32> to vector<1x16x16xf32>
    %23 = vector.shape_cast %22 : vector<1x16x16xf32> to vector<1x16x16xf32>
    %24 = vector.broadcast %23 : vector<1x16x16xf32> to vector<16x16x16xf32>
    "tpu.trace_start"() <{level = 10 : i32, message = "nhk,nkw->nhw"}> : () -> ()
    %cst_17 = arith.constant dense<0.000000e+00> : vector<16x16x16xf32>
    %25 = tpu.matmul %21, %16, %cst_17 {dimension_numbers = #tpu.dot_dimension_numbers<[2], [1], [1], [2], [0, 0, 0, 1, 1, 2], [0], [0]>} : vector<16x16x16xf32>, vector<16x16x16xf32>, vector<16x16x16xf32> -> vector<16x16x16xf32>
    %cst_18 = arith.constant dense<0.000000e+00> : vector<16x16x16xf32>
    %26 = tpu.matmul %24, %18, %cst_18 {dimension_numbers = #tpu.dot_dimension_numbers<[2], [1], [1], [2], [0, 0, 0, 1, 1, 2], [0], [0]>} : vector<16x16x16xf32>, vector<16x16x16xf32>, vector<16x16x16xf32> -> vector<16x16x16xf32>
    "tpu.trace_stop"() : () -> ()
    %27 = arith.mulf %25, %25 : vector<16x16x16xf32>
    %28 = arith.mulf %26, %26 : vector<16x16x16xf32>
    %29 = arith.addf %27, %28 : vector<16x16x16xf32>
    %cst_19 = arith.constant 9.99999974E-5 : f32
    %30 = vector.broadcast %cst_19 : f32 to vector<16x16x16xf32>
    %31 = arith.addf %29, %30 : vector<16x16x16xf32>
    %32 = math.sqrt %31 : vector<16x16x16xf32>
    %33 = vector.extract_strided_slice %32 {offsets = [0, 0, 0], sizes = [8, 16, 16], strides = [1, 1, 1]} : vector<16x16x16xf32> to vector<8x16x16xf32>
    %34 = vector.extract_strided_slice %32 {offsets = [8, 0, 0], sizes = [8, 16, 16], strides = [1, 1, 1]} : vector<16x16x16xf32> to vector<8x16x16xf32>
    %35 = arith.subf %33, %34 : vector<8x16x16xf32>
    %36 = math.absf %35 : vector<8x16x16xf32>
    %37 = vector.shape_cast %36 : vector<8x16x16xf32> to vector<1x8x16x16xf32>
    %cst_20 = arith.constant dense<0.000000e+00> : vector<1xf32>
    %38 = vector.multi_reduction <add>, %37, %cst_20 [1, 2, 3] : vector<1x8x16x16xf32> to vector<1xf32>
    %39 = vector.shape_cast %38 : vector<1xf32> to vector<1x1x1x1xf32>
    %40 = vector.extract %39[0, 0, 0, 0] : f32 from vector<1x1x1x1xf32>
    %41 = vector.broadcast %40 : f32 to vector<8x128xf32>
    %c0_21 = arith.constant 0 : index
    %c0_22 = arith.constant 0 : index
    %c0_23 = arith.constant 0 : index
    %42 = vector.load %arg7[%c0_21, %c0_22, %c0_23] : memref<1x8x128xf32, #tpu.memory_space<vmem>>, vector<1x8x128xf32>
    %43 = vector.shape_cast %42 : vector<1x8x128xf32> to vector<8x128xf32>
    %44 = vector.shape_cast %41 : vector<8x128xf32> to vector<1x8x128xf32>
    tpu.vector_store %arg7[%c0_21, %c0_22, %c0_23], %44 {strides = array<i32>} : memref<1x8x128xf32, #tpu.memory_space<vmem>>, vector<1x8x128xf32>,
    return
  }
  func.func @transform_0(%arg0: i32) -> (i32, i32, i32) {
    %c0_i32 = arith.constant 0 : i32
    %c0_i32_0 = arith.constant 0 : i32
    %c0_i32_1 = arith.constant 0 : i32
    return %arg0, %c0_i32, %c0_i32_0 : i32, i32, i32
  }
  func.func @transform_1(%arg0: i32) -> (i32, i32, i32) {
    %c0_i32 = arith.constant 0 : i32
    %c0_i32_0 = arith.constant 0 : i32
    %c0_i32_1 = arith.constant 0 : i32
    return %arg0, %c0_i32, %c0_i32_0 : i32, i32, i32
  }
  func.func @transform_2(%arg0: i32) -> (i32, i32) {
    %c0_i32 = arith.constant 0 : i32
    %c0_i32_0 = arith.constant 0 : i32
    %c0_i32_1 = arith.constant 0 : i32
    return %c0_i32, %c0_i32_0 : i32, i32
  }
  func.func @transform_3(%arg0: i32) -> (i32, i32) {
    %c0_i32 = arith.constant 0 : i32
    %c0_i32_0 = arith.constant 0 : i32
    %c0_i32_1 = arith.constant 0 : i32
    return %c0_i32, %c0_i32_0 : i32, i32
  }
  func.func @transform_4(%arg0: i32) -> (i32, i32) {
    %c0_i32 = arith.constant 0 : i32
    %c0_i32_0 = arith.constant 0 : i32
    %c0_i32_1 = arith.constant 0 : i32
    return %c0_i32, %c0_i32_0 : i32, i32
  }
  func.func @transform_5(%arg0: i32) -> (i32, i32) {
    %c0_i32 = arith.constant 0 : i32
    %c0_i32_0 = arith.constant 0 : i32
    %c0_i32_1 = arith.constant 0 : i32
    return %c0_i32, %c0_i32_0 : i32, i32
  }
  func.func @transform_6(%arg0: i32) -> (i32, i32, i32) {
    %c0_i32 = arith.constant 0 : i32
    %c0_i32_0 = arith.constant 0 : i32
    %c0_i32_1 = arith.constant 0 : i32
    return %arg0, %c0_i32, %c0_i32_0 : i32, i32, i32
  }
}

</mosaic_0001>

<llo_original>
// kernel: tpu_custom_call.1
$region0: #{tpu_custom_call.1}
  #allocation0 [shape = 'u32[]', space=smem, size = 0x4, offset = 0x4, fixed_abs, tag = 'smem constant byte address 0x4 - core index']
  #allocation1 [shape = 'u32[144,128]{1,0:T(1,128)}', space=vmem, size = 0x12000, scoped, tag = 'internal scratch']
  %s0 = inlined_call_operand.hbm [shape: f32[8,16,16], index: 0, kind: input, shape index: {}]
  %s1 = inlined_call_operand.hbm [shape: f32[8,16,16], index: 1, kind: input, shape index: {}]
  %s2 = inlined_call_operand.hbm [shape: f32[16,16], index: 2, kind: input, shape index: {}]
  %s3 = inlined_call_operand.hbm [shape: f32[16,16], index: 3, kind: input, shape index: {}]
  %s4 = inlined_call_operand.hbm [shape: f32[16,16], index: 4, kind: input, shape index: {}]
  %s5 = inlined_call_operand.hbm [shape: f32[16,16], index: 5, kind: input, shape index: {}]
  %s6 = inlined_call_operand.hbm [shape: f32[1,8,128], index: 6, kind: output, shape index: {}]
  %s7 = sld [smem:[#allocation0]]
  $region58: #{tpu_custom_call.1} parent=0
    _
  %s9 = ssub.s32 1, %s7
  %s10 = scalar_select 0, %s9, %s7
  $region1: #{tpu_custom_call.1} parent=0
    #allocation2 [shape = 'u8[65536]{0}', space=vmem, size = 0x10000, scoped, tag = 'input window, operand 0, single buffered']
    #allocation3 [shape = 's32[1]{0}', space=sflag, size = 0x4, scoped, tag = 'scoped memory for tpu_custom_call.1']
    #allocation4 [shape = 's32[1]{0}', space=sflag, size = 0x4, scoped, tag = 'scoped memory for tpu_custom_call.1']
    #allocation5 [shape = 'u8[65536]{0}', space=vmem, size = 0x10000, scoped, tag = 'input window, operand 1, single buffered']
    #allocation6 [shape = 's32[1]{0}', space=sflag, size = 0x4, scoped, tag = 'scoped memory for tpu_custom_call.1']
    #allocation7 [shape = 'u8[8192]{0}', space=vmem, size = 0x2000, scoped, tag = 'input window, operand 2, single buffered']
    #allocation8 [shape = 'u8[8192]{0}', space=vmem, size = 0x2000, scoped, tag = 'input window, operand 3, single buffered']
    #allocation9 [shape = 's32[1]{0}', space=sflag, size = 0x4, scoped, tag = 'scoped memory for tpu_custom_call.1']
    #allocation10 [shape = 'u8[8192]{0}', space=vmem, size = 0x2000, scoped, tag = 'input window, operand 4, single buffered']
    #allocation11 [shape = 'u8[8192]{0}', space=vmem, size = 0x2000, scoped, tag = 'input window, operand 5, single buffered']
    #allocation12 [shape = 's32[1]{0}', space=sflag, size = 0x4, scoped, tag = 'scoped memory for tpu_custom_call.1']
    #allocation13 [shape = 'u8[4096]{0}', space=vmem, size = 0x1000, scoped, tag = 'output window, operand 0, single buffered']
    %11 = vsyncpa [#allocation3], 0
    %12 = vsyncpa [#allocation6], 0
    %13 = vsyncpa [#allocation9], 0
    %14 = vsyncpa [#allocation12], 0
    %15 = vsyncpa [#allocation4], 0
    // Predicated region
    $region2: #{tpu_custom_call.1} parent=1 // pred_check
      _
    $region3: #{tpu_custom_call.1} parent=1 // pred_check_branch
      %17 = sbr.rel (0) target = $region5
    $region4: #{tpu_custom_call.1} parent=1 // pred_region
      %s19 = ssub.s32 2048, 2048
      %20 = vsyncadd [#allocation3], %s19
      %s21 = sshll.u32 [#allocation2], 4
      %s22 = int_to_ptr.vmem [resolvable:$true] %s21
      %27 = dma.hbm_to_vmem [thread:$0]  %s0, 2048, %s22, [#allocation3], 128, 128, 8
    $region5: #{tpu_custom_call.1} parent=1 // pred_fallthru
      _
    // Predicated region
    $region6: #{tpu_custom_call.1} parent=1 // pred_check
      _
    $region7: #{tpu_custom_call.1} parent=1 // pred_check_branch
      %29 = sbr.rel (0) target = $region9
    $region8: #{tpu_custom_call.1} parent=1 // pred_region
      %s31 = ssub.s32 2048, 2048
      %32 = vsyncadd [#allocation6], %s31
      %s33 = sshll.u32 [#allocation5], 4
      %s34 = int_to_ptr.vmem [resolvable:$true] %s33
      %39 = dma.hbm_to_vmem [thread:$0]  %s1, 2048, %s34, [#allocation6], 128, 128, 8
    $region9: #{tpu_custom_call.1} parent=1 // pred_fallthru
      _
    // Predicated region
    $region10: #{tpu_custom_call.1} parent=1 // pred_check
      _
    $region11: #{tpu_custom_call.1} parent=1 // pred_check_branch
      %41 = sbr.rel (0) target = $region13
    $region12: #{tpu_custom_call.1} parent=1 // pred_region
      %s43 = ssub.s32 256, 256
      %44 = vsyncadd [#allocation6], %s43
      %s45 = sshll.u32 [#allocation7], 4
      %s46 = int_to_ptr.vmem [resolvable:$true] %s45
      %51 = dma.hbm_to_vmem [thread:$0]  %s2, 256, %s46, [#allocation6], 128, 128, 8
    $region13: #{tpu_custom_call.1} parent=1 // pred_fallthru
      _
    // Predicated region
    $region14: #{tpu_custom_call.1} parent=1 // pred_check
      _
    $region15: #{tpu_custom_call.1} parent=1 // pred_check_branch
      %53 = sbr.rel (0) target = $region17
    $region16: #{tpu_custom_call.1} parent=1 // pred_region
      %s55 = ssub.s32 256, 256
      %56 = vsyncadd [#allocation9], %s55
      %s57 = sshll.u32 [#allocation8], 4
      %s58 = int_to_ptr.vmem [resolvable:$true] %s57
      %63 = dma.hbm_to_vmem [thread:$0]  %s3, 256, %s58, [#allocation9], 128, 128, 8
    $region17: #{tpu_custom_call.1} parent=1 // pred_fallthru
      _
    // Predicated region
    $region18: #{tpu_custom_call.1} parent=1 // pred_check
      _
    $region19: #{tpu_custom_call.1} parent=1 // pred_check_branch
      %65 = sbr.rel (0) target = $region21
    $region20: #{tpu_custom_call.1} parent=1 // pred_region
      %s67 = ssub.s32 256, 256
      %68 = vsyncadd [#allocation9], %s67
      %s69 = sshll.u32 [#allocation10], 4
      %s70 = int_to_ptr.vmem [resolvable:$true] %s69
      %75 = dma.hbm_to_vmem [thread:$0]  %s4, 256, %s70, [#allocation9], 128, 128, 8
    $region21: #{tpu_custom_call.1} parent=1 // pred_fallthru
      _
    // Predicated region
    $region22: #{tpu_custom_call.1} parent=1 // pred_check
      _
    $region23: #{tpu_custom_call.1} parent=1 // pred_check_branch
      %77 = sbr.rel (0) target = $region25
    $region24: #{tpu_custom_call.1} parent=1 // pred_region
      %s79 = ssub.s32 256, 256
      %80 = vsyncadd [#allocation12], %s79
      %s81 = sshll.u32 [#allocation11], 4
      %s82 = int_to_ptr.vmem [resolvable:$true] %s81
      %87 = dma.hbm_to_vmem [thread:$0]  %s5, 256, %s82, [#allocation12], 128, 128, 8
    $region25: #{tpu_custom_call.1} parent=1 // pred_fallthru
      _
    // Predicated region
    $region26: #{tpu_custom_call.1} parent=1 // pred_check
      _
    $region27: #{tpu_custom_call.1} parent=1 // pred_check_branch
      %89 = sbr.rel (0) target = $region29
    $region28: #{tpu_custom_call.1} parent=1 // pred_region
      %90 = dma.done [#allocation3], 2048
    $region29: #{tpu_custom_call.1} parent=1 // pred_fallthru
      _
    // Predicated region
    $region30: #{tpu_custom_call.1} parent=1 // pred_check
      _
    $region31: #{tpu_custom_call.1} parent=1 // pred_check_branch
      %92 = sbr.rel (0) target = $region33
    $region32: #{tpu_custom_call.1} parent=1 // pred_region
      %93 = dma.done [#allocation6], 2048
    $region33: #{tpu_custom_call.1} parent=1 // pred_fallthru
      _
    // Predicated region
    $region34: #{tpu_custom_call.1} parent=1 // pred_check
      _
    $region35: #{tpu_custom_call.1} parent=1 // pred_check_branch
      %95 = sbr.rel (0) target = $region37
    $region36: #{tpu_custom_call.1} parent=1 // pred_region
      %96 = dma.done [#allocation6], 256
    $region37: #{tpu_custom_call.1} parent=1 // pred_fallthru
      _
    // Predicated region
    $region38: #{tpu_custom_call.1} parent=1 // pred_check
      _
    $region39: #{tpu_custom_call.1} parent=1 // pred_check_branch
      %98 = sbr.rel (0) target = $region41
    $region40: #{tpu_custom_call.1} parent=1 // pred_region
      %99 = dma.done [#allocation9], 256
    $region41: #{tpu_custom_call.1} parent=1 // pred_fallthru
      _
    // Predicated region
    $region42: #{tpu_custom_call.1} parent=1 // pred_check
      _
    $region43: #{tpu_custom_call.1} parent=1 // pred_check_branch
      %101 = sbr.rel (0) target = $region45
    $region44: #{tpu_custom_call.1} parent=1 // pred_region
      %102 = dma.done [#allocation9], 256
    $region45: #{tpu_custom_call.1} parent=1 // pred_fallthru
      _
    // Predicated region
    $region46: #{tpu_custom_call.1} parent=1 // pred_check
      _
    $region47: #{tpu_custom_call.1} parent=1 // pred_check_branch
      %104 = sbr.rel (0) target = $region49
    $region48: #{tpu_custom_call.1} parent=1 // pred_region
      %105 = dma.done [#allocation12], 256
    $region49: #{tpu_custom_call.1} parent=1 // pred_fallthru
      _
    %v106 = vld [vmem:[#allocation7] sm:$0xff]
    %v107 = vld [vmem:[#allocation7 + $0x8] sm:$0xff]
    %v108 = vld [vmem:[#allocation8] sm:$0xff]
    %v109 = vld [vmem:[#allocation8 + $0x8] sm:$0xff]
    %v110 = vld [vmem:[#allocation10] sm:$0xff]
    %v111 = vld [vmem:[#allocation10 + $0x8] sm:$0xff]
    %v112 = vld [vmem:[#allocation11] sm:$0xff]
    %v113 = vld [vmem:[#allocation11 + $0x8] sm:$0xff]
    %v114 = vld [vmem:[#allocation2] sm:$0xff]
    %v115 = vld [vmem:[#allocation2 + $0x8] sm:$0xff]
    %v116 = vld [vmem:[#allocation2 + $0x10] sm:$0xff]
    %v117 = vld [vmem:[#allocation2 + $0x18] sm:$0xff]
    %v118 = vld [vmem:[#allocation2 + $0x20] sm:$0xff]
    %v119 = vld [vmem:[#allocation2 + $0x28] sm:$0xff]
    %v120 = vld [vmem:[#allocation2 + $0x30] sm:$0xff]
    %v121 = vld [vmem:[#allocation2 + $0x38] sm:$0xff]
    %v122 = vld [vmem:[#allocation2 + $0x40] sm:$0xff]
    %v123 = vld [vmem:[#allocation2 + $0x48] sm:$0xff]
    %v124 = vld [vmem:[#allocation2 + $0x50] sm:$0xff]
    %v125 = vld [vmem:[#allocation2 + $0x58] sm:$0xff]
    %v126 = vld [vmem:[#allocation2 + $0x60] sm:$0xff]
    %v127 = vld [vmem:[#allocation2 + $0x68] sm:$0xff]
    %v128 = vld [vmem:[#allocation2 + $0x70] sm:$0xff]
    %v129 = vld [vmem:[#allocation2 + $0x78] sm:$0xff]
    %v130 = vld [vmem:[#allocation5] sm:$0xff]
    %v131 = vld [vmem:[#allocation5 + $0x8] sm:$0xff]
    %v132 = vld [vmem:[#allocation5 + $0x10] sm:$0xff]
    %v133 = vld [vmem:[#allocation5 + $0x18] sm:$0xff]
    %v134 = vld [vmem:[#allocation5 + $0x20] sm:$0xff]
    %v135 = vld [vmem:[#allocation5 + $0x28] sm:$0xff]
    %v136 = vld [vmem:[#allocation5 + $0x30] sm:$0xff]
    %v137 = vld [vmem:[#allocation5 + $0x38] sm:$0xff]
    %v138 = vld [vmem:[#allocation5 + $0x40] sm:$0xff]
    %v139 = vld [vmem:[#allocation5 + $0x48] sm:$0xff]
    %v140 = vld [vmem:[#allocation5 + $0x50] sm:$0xff]
    %v141 = vld [vmem:[#allocation5 + $0x58] sm:$0xff]
    %v142 = vld [vmem:[#allocation5 + $0x60] sm:$0xff]
    %v143 = vld [vmem:[#allocation5 + $0x68] sm:$0xff]
    %v144 = vld [vmem:[#allocation5 + $0x70] sm:$0xff]
    %v145 = vld [vmem:[#allocation5 + $0x78] sm:$0xff]
    %v146 = vsub.f32 0.0, %v114
    %v147 = vsub.f32 0.0, %v115
    %v148 = vsub.f32 0.0, %v116
    %v149 = vsub.f32 0.0, %v117
    %v150 = vsub.f32 0.0, %v118
    %v151 = vsub.f32 0.0, %v119
    %v152 = vsub.f32 0.0, %v120
    %v153 = vsub.f32 0.0, %v121
    %v154 = vsub.f32 0.0, %v122
    %v155 = vsub.f32 0.0, %v123
    %v156 = vsub.f32 0.0, %v124
    %v157 = vsub.f32 0.0, %v125
    %v158 = vsub.f32 0.0, %v126
    %v159 = vsub.f32 0.0, %v127
    %v160 = vsub.f32 0.0, %v128
    %v161 = vsub.f32 0.0, %v129
    %v162 = vmul.f32 %v146, 1.442695
    %v163 = vpow.pop %v162
    %v164 = vmul.f32 %v147, 1.442695
    %v165 = vpow.pop %v164
    %v166 = vmul.f32 %v148, 1.442695
    %v167 = vpow.pop %v166
    %v168 = vmul.f32 %v149, 1.442695
    %v169 = vpow.pop %v168
    %v170 = vmul.f32 %v150, 1.442695
    %v171 = vpow.pop %v170
    %v172 = vmul.f32 %v151, 1.442695
    %v173 = vpow.pop %v172
    %v174 = vmul.f32 %v152, 1.442695
    %v175 = vpow.pop %v174
    %v176 = vmul.f32 %v153, 1.442695
    %v177 = vpow.pop %v176
    %v178 = vmul.f32 %v154, 1.442695
    %v179 = vpow.pop %v178
    %v180 = vmul.f32 %v155, 1.442695
    %v181 = vpow.pop %v180
    %v182 = vmul.f32 %v156, 1.442695
    %v183 = vpow.pop %v182
    %v184 = vmul.f32 %v157, 1.442695
    %v185 = vpow.pop %v184
    %v186 = vmul.f32 %v158, 1.442695
    %v187 = vpow.pop %v186
    %v188 = vmul.f32 %v159, 1.442695
    %v189 = vpow.pop %v188
    %v190 = vmul.f32 %v160, 1.442695
    %v191 = vpow.pop %v190
    %v192 = vmul.f32 %v161, 1.442695
    %v193 = vpow.pop %v192
    %v194 = vadd.f32 %v163, 1.0
    %v195 = vadd.f32 %v165, 1.0
    %v196 = vadd.f32 %v167, 1.0
    %v197 = vadd.f32 %v169, 1.0
    %v198 = vadd.f32 %v171, 1.0
    %v199 = vadd.f32 %v173, 1.0
    %v200 = vadd.f32 %v175, 1.0
    %v201 = vadd.f32 %v177, 1.0
    %v202 = vadd.f32 %v179, 1.0
    %v203 = vadd.f32 %v181, 1.0
    %v204 = vadd.f32 %v183, 1.0
    %v205 = vadd.f32 %v185, 1.0
    %v206 = vadd.f32 %v187, 1.0
    %v207 = vadd.f32 %v189, 1.0
    %v208 = vadd.f32 %v191, 1.0
    %v209 = vadd.f32 %v193, 1.0
    %v210 = vrcp.pop %v194
    %v211 = vmul.f32 1.0, %v210
    %v212 = vrcp.pop %v195
    %v213 = vmul.f32 1.0, %v212
    %v214 = vrcp.pop %v196
    %v215 = vmul.f32 1.0, %v214
    %v216 = vrcp.pop %v197
    %v217 = vmul.f32 1.0, %v216
    %v218 = vrcp.pop %v198
    %v219 = vmul.f32 1.0, %v218
    %v220 = vrcp.pop %v199
    %v221 = vmul.f32 1.0, %v220
    %v222 = vrcp.pop %v200
    %v223 = vmul.f32 1.0, %v222
    %v224 = vrcp.pop %v201
    %v225 = vmul.f32 1.0, %v224
    %v226 = vrcp.pop %v202
    %v227 = vmul.f32 1.0, %v226
    %v228 = vrcp.pop %v203
    %v229 = vmul.f32 1.0, %v228
    %v230 = vrcp.pop %v204
    %v231 = vmul.f32 1.0, %v230
    %v232 = vrcp.pop %v205
    %v233 = vmul.f32 1.0, %v232
    %v234 = vrcp.pop %v206
    %v235 = vmul.f32 1.0, %v234
    %v236 = vrcp.pop %v207
    %v237 = vmul.f32 1.0, %v236
    %v238 = vrcp.pop %v208
    %v239 = vmul.f32 1.0, %v238
    %v240 = vrcp.pop %v209
    %v241 = vmul.f32 1.0, %v240
    %vm242 = vcmask 130048
    %v244 = vsel %vm242, %v211, 0
    %v247 = vsel %vm242, %v213, 0
    %v250 = vsel %vm242, %v215, 0
    %v253 = vsel %vm242, %v217, 0
    %v256 = vsel %vm242, %v219, 0
    %v259 = vsel %vm242, %v221, 0
    %v262 = vsel %vm242, %v223, 0
    %v265 = vsel %vm242, %v225, 0
    %v268 = vsel %vm242, %v227, 0
    %v271 = vsel %vm242, %v229, 0
    %v274 = vsel %vm242, %v231, 0
    %v277 = vsel %vm242, %v233, 0
    %v280 = vsel %vm242, %v235, 0
    %v283 = vsel %vm242, %v237, 0
    %v286 = vsel %vm242, %v239, 0
    %v289 = vsel %vm242, %v241, 0
    %v292 = vsel %vm242, %v130, 0
    %v295 = vsel %vm242, %v131, 0
    %v298 = vsel %vm242, %v132, 0
    %v301 = vsel %vm242, %v133, 0
    %v304 = vsel %vm242, %v134, 0
    %v307 = vsel %vm242, %v135, 0
    %v310 = vsel %vm242, %v136, 0
    %v313 = vsel %vm242, %v137, 0
    %v316 = vsel %vm242, %v138, 0
    %v319 = vsel %vm242, %v139, 0
    %v322 = vsel %vm242, %v140, 0
    %v325 = vsel %vm242, %v141, 0
    %v328 = vsel %vm242, %v142, 0
    %v331 = vsel %vm242, %v143, 0
    %v334 = vsel %vm242, %v144, 0
    %v337 = vsel %vm242, %v145, 0
    %339 = vmatprep.subr.mxu0 0.0
    %340 = vmatpush1.msra.mxu0 0.0
    %341 = vmatprep.subr.mxu0 0.0
    %342 = vmatpush1.msra.mxu0 0.0
    %343 = vmatprep.subr.mxu0 0.0
    %344 = vmatpush1.msra.mxu0 0.0
    %345 = vmatprep.subr.mxu0 0.0
    %346 = vmatpush1.msra.mxu0 0.0
    %347 = vmatprep.subr.mxu0 0.0
    %348 = vmatpush1.msra.mxu0 0.0
    %349 = vmatprep.subr.mxu0 0.0
    %350 = vmatpush1.msra.mxu0 0.0
    %351 = vmatprep.subr.mxu0 0.0
    %352 = vmatpush1.msra.mxu0 0.0
    %353 = vmatprep.subr.mxu0 0.0
    %354 = vmatpush1.msra.mxu0 0.0
    %355 = vmatprep.subr.mxu0 0.0
    %356 = vmatpush1.msra.mxu0 0.0
    %357 = vmatprep.subr.mxu0 0.0
    %358 = vmatpush1.msra.mxu0 0.0
    %359 = vmatprep.subr.mxu0 0.0
    %360 = vmatpush1.msra.mxu0 0.0
    %361 = vmatprep.subr.mxu0 0.0
    %362 = vmatpush1.msra.mxu0 0.0
    %363 = vmatprep.subr.mxu0 0.0
    %364 = vmatpush1.msra.mxu0 0.0
    %365 = vmatprep.subr.mxu0 0.0
    %366 = vmatpush1.msra.mxu0 0.0
    %367 = vmatprep.subr.mxu0 0.0
    %368 = vmatpush1.msra.mxu0 %v109
    %369 = vmatprep.subr.mxu0 0.0
    %370 = vmatpush1.msra.mxu0 %v108
    %371 = vmatprep.subr.mxu0 0.0
    %372 = vmatpush2.msra.mxu0 0.0
    %373 = vmatprep.subr.mxu0 0.0
    %374 = vmatpush2.msra.mxu0 0.0
    %375 = vmatprep.subr.mxu0 0.0
    %376 = vmatpush2.msra.mxu0 0.0
    %377 = vmatprep.subr.mxu0 0.0
    %378 = vmatpush2.msra.mxu0 0.0
    %379 = vmatprep.subr.mxu0 0.0
    %380 = vmatpush2.msra.mxu0 0.0
    %381 = vmatprep.subr.mxu0 0.0
    %382 = vmatpush2.msra.mxu0 0.0
    %383 = vmatprep.subr.mxu0 0.0
    %384 = vmatpush2.msra.mxu0 0.0
    %385 = vmatprep.subr.mxu0 0.0
    %386 = vmatpush2.msra.mxu0 0.0
    %387 = vmatprep.subr.mxu0 0.0
    %388 = vmatpush2.msra.mxu0 0.0
    %389 = vmatprep.subr.mxu0 0.0
    %390 = vmatpush2.msra.mxu0 0.0
    %391 = vmatprep.subr.mxu0 0.0
    %392 = vmatpush2.msra.mxu0 0.0
    %393 = vmatprep.subr.mxu0 0.0
    %394 = vmatpush2.msra.mxu0 0.0
    %395 = vmatprep.subr.mxu0 0.0
    %396 = vmatpush2.msra.mxu0 0.0
    %397 = vmatprep.subr.mxu0 0.0
    %398 = vmatpush2.msra.mxu0 0.0
    %399 = vmatprep.subr.mxu0 0.0
    %400 = vmatpush2.msra.mxu0 0.0
    %401 = vmatprep.subr.mxu0 0.0
    %402 = vmatpush2.msra.mxu0 0.0
    %403 = vmatprep.mubr.f32.mxu0 0.0
    %404 = vmatmul.mubr.f32.gmra.mxu0 %v244
    %v405 = vpop.f32.mrf.mxu0
    %v406 = vadd.f32 0.0, %v405
    %v407 = vpop.f32.mrf.mxu0
    %408 = vmatprep.mubr.f32.mxu0 0.0
    %409 = vmatmul.mubr.f32.gmra.mxu0 %v247
    %v410 = vpop.f32.mrf.mxu0
    %v411 = vadd.f32 0.0, %v410
    %v412 = vpop.f32.mrf.mxu0
    %413 = vmatprep.mubr.f32.mxu0 0.0
    %414 = vmatmul.mubr.f32.gmra.mxu0 %v250
    %v415 = vpop.f32.mrf.mxu0
    %v416 = vadd.f32 0.0, %v415
    %v417 = vpop.f32.mrf.mxu0
    %418 = vmatprep.mubr.f32.mxu0 0.0
    %419 = vmatmul.mubr.f32.gmra.mxu0 %v253
    %v420 = vpop.f32.mrf.mxu0
    %v421 = vadd.f32 0.0, %v420
    %v422 = vpop.f32.mrf.mxu0
    %423 = vmatprep.mubr.f32.mxu0 0.0
    %424 = vmatmul.mubr.f32.gmra.mxu0 %v256
    %v425 = vpop.f32.mrf.mxu0
    %v426 = vadd.f32 0.0, %v425
    %v427 = vpop.f32.mrf.mxu0
    %428 = vmatprep.mubr.f32.mxu0 0.0
    %429 = vmatmul.mubr.f32.gmra.mxu0 %v259
    %v430 = vpop.f32.mrf.mxu0
    %v431 = vadd.f32 0.0, %v430
    %v432 = vpop.f32.mrf.mxu0
    %433 = vmatprep.mubr.f32.mxu0 0.0
    %434 = vmatmul.mubr.f32.gmra.mxu0 %v262
    %v435 = vpop.f32.mrf.mxu0
    %v436 = vadd.f32 0.0, %v435
    %v437 = vpop.f32.mrf.mxu0
    %438 = vmatprep.mubr.f32.mxu0 0.0
    %439 = vmatmul.mubr.f32.gmra.mxu0 %v265
    %v440 = vpop.f32.mrf.mxu0
    %v441 = vadd.f32 0.0, %v440
    %v442 = vpop.f32.mrf.mxu0
    %443 = vmatprep.mubr.f32.mxu0 0.0
    %444 = vmatmul.mubr.f32.gmra.mxu0 %v268
    %v445 = vpop.f32.mrf.mxu0
    %v446 = vadd.f32 0.0, %v445
    %v447 = vpop.f32.mrf.mxu0
    %448 = vmatprep.mubr.f32.mxu0 0.0
    %449 = vmatmul.mubr.f32.gmra.mxu0 %v271
    %v450 = vpop.f32.mrf.mxu0
    %v451 = vadd.f32 0.0, %v450
    %v452 = vpop.f32.mrf.mxu0
    %453 = vmatprep.mubr.f32.mxu0 0.0
    %454 = vmatmul.mubr.f32.gmra.mxu0 %v274
    %v455 = vpop.f32.mrf.mxu0
    %v456 = vadd.f32 0.0, %v455
    %v457 = vpop.f32.mrf.mxu0
    %458 = vmatprep.mubr.f32.mxu0 0.0
    %459 = vmatmul.mubr.f32.gmra.mxu0 %v277
    %v460 = vpop.f32.mrf.mxu0
    %v461 = vadd.f32 0.0, %v460
    %v462 = vpop.f32.mrf.mxu0
    %463 = vmatprep.mubr.f32.mxu0 0.0
    %464 = vmatmul.mubr.f32.gmra.mxu0 %v280
    %v465 = vpop.f32.mrf.mxu0
    %v466 = vadd.f32 0.0, %v465
    %v467 = vpop.f32.mrf.mxu0
    %468 = vmatprep.mubr.f32.mxu0 0.0
    %469 = vmatmul.mubr.f32.gmra.mxu0 %v283
    %v470 = vpop.f32.mrf.mxu0
    %v471 = vadd.f32 0.0, %v470
    %v472 = vpop.f32.mrf.mxu0
    %473 = vmatprep.mubr.f32.mxu0 0.0
    %474 = vmatmul.mubr.f32.gmra.mxu0 %v286
    %v475 = vpop.f32.mrf.mxu0
    %v476 = vadd.f32 0.0, %v475
    %v477 = vpop.f32.mrf.mxu0
    %478 = vmatprep.mubr.f32.mxu0 0.0
    %479 = vmatmul.mubr.f32.gmra.mxu0 %v289
    %v480 = vpop.f32.mrf.mxu0
    %v481 = vadd.f32 0.0, %v480
    %v482 = vpop.f32.mrf.mxu0
    %483 = vmatprep.mubr.f32.mxu0 0.0
    %484 = vmatmul.mubr.f32.gmra.mxu0 %v292
    %v485 = vpop.f32.mrf.mxu0
    %v486 = vadd.f32 0.0, %v485
    %v487 = vpop.f32.mrf.mxu0
    %488 = vmatprep.mubr.f32.mxu0 0.0
    %489 = vmatmul.mubr.f32.gmra.mxu0 %v295
    %v490 = vpop.f32.mrf.mxu0
    %v491 = vadd.f32 0.0, %v490
    %v492 = vpop.f32.mrf.mxu0
    %493 = vmatprep.mubr.f32.mxu0 0.0
    %494 = vmatmul.mubr.f32.gmra.mxu0 %v298
    %v495 = vpop.f32.mrf.mxu0
    %v496 = vadd.f32 0.0, %v495
    %v497 = vpop.f32.mrf.mxu0
    %498 = vmatprep.mubr.f32.mxu0 0.0
    %499 = vmatmul.mubr.f32.gmra.mxu0 %v301
    %v500 = vpop.f32.mrf.mxu0
    %v501 = vadd.f32 0.0, %v500
    %v502 = vpop.f32.mrf.mxu0
    %503 = vmatprep.mubr.f32.mxu0 0.0
    %504 = vmatmul.mubr.f32.gmra.mxu0 %v304
    %v505 = vpop.f32.mrf.mxu0
    %v506 = vadd.f32 0.0, %v505
    %v507 = vpop.f32.mrf.mxu0
    %508 = vmatprep.mubr.f32.mxu0 0.0
    %509 = vmatmul.mubr.f32.gmra.mxu0 %v307
    %v510 = vpop.f32.mrf.mxu0
    %v511 = vadd.f32 0.0, %v510
    %v512 = vpop.f32.mrf.mxu0
    %513 = vmatprep.mubr.f32.mxu0 0.0
    %514 = vmatmul.mubr.f32.gmra.mxu0 %v310
    %v515 = vpop.f32.mrf.mxu0
    %v516 = vadd.f32 0.0, %v515
    %v517 = vpop.f32.mrf.mxu0
    %518 = vmatprep.mubr.f32.mxu0 0.0
    %519 = vmatmul.mubr.f32.gmra.mxu0 %v313
    %v520 = vpop.f32.mrf.mxu0
    %v521 = vadd.f32 0.0, %v520
    %v522 = vpop.f32.mrf.mxu0
    %523 = vmatprep.mubr.f32.mxu0 0.0
    %524 = vmatmul.mubr.f32.gmra.mxu0 %v316
    %v525 = vpop.f32.mrf.mxu0
    %v526 = vadd.f32 0.0, %v525
    %v527 = vpop.f32.mrf.mxu0
    %528 = vmatprep.mubr.f32.mxu0 0.0
    %529 = vmatmul.mubr.f32.gmra.mxu0 %v319
    %v530 = vpop.f32.mrf.mxu0
    %v531 = vadd.f32 0.0, %v530
    %v532 = vpop.f32.mrf.mxu0
    %533 = vmatprep.mubr.f32.mxu0 0.0
    %534 = vmatmul.mubr.f32.gmra.mxu0 %v322
    %v535 = vpop.f32.mrf.mxu0
    %v536 = vadd.f32 0.0, %v535
    %v537 = vpop.f32.mrf.mxu0
    %538 = vmatprep.mubr.f32.mxu0 0.0
    %539 = vmatmul.mubr.f32.gmra.mxu0 %v325
    %v540 = vpop.f32.mrf.mxu0
    %v541 = vadd.f32 0.0, %v540
    %v542 = vpop.f32.mrf.mxu0
    %543 = vmatprep.mubr.f32.mxu0 0.0
    %544 = vmatmul.mubr.f32.gmra.mxu0 %v328
    %v545 = vpop.f32.mrf.mxu0
    %v546 = vadd.f32 0.0, %v545
    %v547 = vpop.f32.mrf.mxu0
    %548 = vmatprep.mubr.f32.mxu0 0.0
    %549 = vmatmul.mubr.f32.gmra.mxu0 %v331
    %v550 = vpop.f32.mrf.mxu0
    %v551 = vadd.f32 0.0, %v550
    %v552 = vpop.f32.mrf.mxu0
    %553 = vmatprep.mubr.f32.mxu0 0.0
    %554 = vmatmul.mubr.f32.gmra.mxu0 %v334
    %v555 = vpop.f32.mrf.mxu0
    %v556 = vadd.f32 0.0, %v555
    %v557 = vpop.f32.mrf.mxu0
    %558 = vmatprep.mubr.f32.mxu0 0.0
    %559 = vmatmul.mubr.f32.gmra.mxu0 %v337
    %v560 = vpop.f32.mrf.mxu0
    %v561 = vadd.f32 0.0, %v560
    %v562 = vpop.f32.mrf.mxu0
    %563 = vdwg.mxu0
    %564 = vmatprep.subr.mxu0 0.0
    %565 = vmatpush1.msra.mxu0 0.0
    %566 = vmatprep.subr.mxu0 0.0
    %567 = vmatpush1.msra.mxu0 0.0
    %568 = vmatprep.subr.mxu0 0.0
    %569 = vmatpush1.msra.mxu0 0.0
    %570 = vmatprep.subr.mxu0 0.0
    %571 = vmatpush1.msra.mxu0 0.0
    %572 = vmatprep.subr.mxu0 0.0
    %573 = vmatpush1.msra.mxu0 0.0
    %574 = vmatprep.subr.mxu0 0.0
    %575 = vmatpush1.msra.mxu0 0.0
    %576 = vmatprep.subr.mxu0 0.0
    %577 = vmatpush1.msra.mxu0 0.0
    %578 = vmatprep.subr.mxu0 0.0
    %579 = vmatpush1.msra.mxu0 0.0
    %580 = vmatprep.subr.mxu0 0.0
    %581 = vmatpush1.msra.mxu0 0.0
    %582 = vmatprep.subr.mxu0 0.0
    %583 = vmatpush1.msra.mxu0 0.0
    %584 = vmatprep.subr.mxu0 0.0
    %585 = vmatpush1.msra.mxu0 0.0
    %586 = vmatprep.subr.mxu0 0.0
    %587 = vmatpush1.msra.mxu0 0.0
    %588 = vmatprep.subr.mxu0 0.0
    %589 = vmatpush1.msra.mxu0 0.0
    %590 = vmatprep.subr.mxu0 0.0
    %591 = vmatpush1.msra.mxu0 0.0
    %592 = vmatprep.subr.mxu0 0.0
    %593 = vmatpush1.msra.mxu0 %v113
    %594 = vmatprep.subr.mxu0 0.0
    %595 = vmatpush1.msra.mxu0 %v112
    %596 = vmatprep.subr.mxu0 0.0
    %597 = vmatpush2.msra.mxu0 0.0
    %598 = vmatprep.subr.mxu0 0.0
    %599 = vmatpush2.msra.mxu0 0.0
    %600 = vmatprep.subr.mxu0 0.0
    %601 = vmatpush2.msra.mxu0 0.0
    %602 = vmatprep.subr.mxu0 0.0
    %603 = vmatpush2.msra.mxu0 0.0
    %604 = vmatprep.subr.mxu0 0.0
    %605 = vmatpush2.msra.mxu0 0.0
    %606 = vmatprep.subr.mxu0 0.0
    %607 = vmatpush2.msra.mxu0 0.0
    %608 = vmatprep.subr.mxu0 0.0
    %609 = vmatpush2.msra.mxu0 0.0
    %610 = vmatprep.subr.mxu0 0.0
    %611 = vmatpush2.msra.mxu0 0.0
    %612 = vmatprep.subr.mxu0 0.0
    %613 = vmatpush2.msra.mxu0 0.0
    %614 = vmatprep.subr.mxu0 0.0
    %615 = vmatpush2.msra.mxu0 0.0
    %616 = vmatprep.subr.mxu0 0.0
    %617 = vmatpush2.msra.mxu0 0.0
    %618 = vmatprep.subr.mxu0 0.0
    %619 = vmatpush2.msra.mxu0 0.0
    %620 = vmatprep.subr.mxu0 0.0
    %621 = vmatpush2.msra.mxu0 0.0
    %622 = vmatprep.subr.mxu0 0.0
    %623 = vmatpush2.msra.mxu0 0.0
    %624 = vmatprep.subr.mxu0 0.0
    %625 = vmatpush2.msra.mxu0 0.0
    %626 = vmatprep.subr.mxu0 0.0
    %627 = vmatpush2.msra.mxu0 0.0
    %628 = vmatprep.mubr.f32.mxu0 0.0
    %629 = vmatmul.mubr.f32.gmra.mxu0 %v244
    %v630 = vpop.f32.mrf.mxu0
    %v631 = vadd.f32 0.0, %v630
    %v632 = vpop.f32.mrf.mxu0
    %633 = vmatprep.mubr.f32.mxu0 0.0
    %634 = vmatmul.mubr.f32.gmra.mxu0 %v247
    %v635 = vpop.f32.mrf.mxu0
    %v636 = vadd.f32 0.0, %v635
    %v637 = vpop.f32.mrf.mxu0
    %638 = vmatprep.mubr.f32.mxu0 0.0
    %639 = vmatmul.mubr.f32.gmra.mxu0 %v250
    %v640 = vpop.f32.mrf.mxu0
    %v641 = vadd.f32 0.0, %v640
    %v642 = vpop.f32.mrf.mxu0
    %643 = vmatprep.mubr.f32.mxu0 0.0
    %644 = vmatmul.mubr.f32.gmra.mxu0 %v253
    %v645 = vpop.f32.mrf.mxu0
    %v646 = vadd.f32 0.0, %v645
    %v647 = vpop.f32.mrf.mxu0
    %648 = vmatprep.mubr.f32.mxu0 0.0
    %649 = vmatmul.mubr.f32.gmra.mxu0 %v256
    %v650 = vpop.f32.mrf.mxu0
    %v651 = vadd.f32 0.0, %v650
    %v652 = vpop.f32.mrf.mxu0
    %653 = vmatprep.mubr.f32.mxu0 0.0
    %654 = vmatmul.mubr.f32.gmra.mxu0 %v259
    %v655 = vpop.f32.mrf.mxu0
    %v656 = vadd.f32 0.0, %v655
    %v657 = vpop.f32.mrf.mxu0
    %658 = vmatprep.mubr.f32.mxu0 0.0
    %659 = vmatmul.mubr.f32.gmra.mxu0 %v262
    %v660 = vpop.f32.mrf.mxu0
    %v661 = vadd.f32 0.0, %v660
    %v662 = vpop.f32.mrf.mxu0
    %663 = vmatprep.mubr.f32.mxu0 0.0
    %664 = vmatmul.mubr.f32.gmra.mxu0 %v265
    %v665 = vpop.f32.mrf.mxu0
    %v666 = vadd.f32 0.0, %v665
    %v667 = vpop.f32.mrf.mxu0
    %668 = vmatprep.mubr.f32.mxu0 0.0
    %669 = vmatmul.mubr.f32.gmra.mxu0 %v268
    %v670 = vpop.f32.mrf.mxu0
    %v671 = vadd.f32 0.0, %v670
    %v672 = vpop.f32.mrf.mxu0
    %673 = vmatprep.mubr.f32.mxu0 0.0
    %674 = vmatmul.mubr.f32.gmra.mxu0 %v271
    %v675 = vpop.f32.mrf.mxu0
    %v676 = vadd.f32 0.0, %v675
    %v677 = vpop.f32.mrf.mxu0
    %678 = vmatprep.mubr.f32.mxu0 0.0
    %679 = vmatmul.mubr.f32.gmra.mxu0 %v274
    %v680 = vpop.f32.mrf.mxu0
    %v681 = vadd.f32 0.0, %v680
    %v682 = vpop.f32.mrf.mxu0
    %683 = vmatprep.mubr.f32.mxu0 0.0
    %684 = vmatmul.mubr.f32.gmra.mxu0 %v277
    %v685 = vpop.f32.mrf.mxu0
    %v686 = vadd.f32 0.0, %v685
    %v687 = vpop.f32.mrf.mxu0
    %688 = vmatprep.mubr.f32.mxu0 0.0
    %689 = vmatmul.mubr.f32.gmra.mxu0 %v280
    %v690 = vpop.f32.mrf.mxu0
    %v691 = vadd.f32 0.0, %v690
    %v692 = vpop.f32.mrf.mxu0
    %693 = vmatprep.mubr.f32.mxu0 0.0
    %694 = vmatmul.mubr.f32.gmra.mxu0 %v283
    %v695 = vpop.f32.mrf.mxu0
    %v696 = vadd.f32 0.0, %v695
    %v697 = vpop.f32.mrf.mxu0
    %698 = vmatprep.mubr.f32.mxu0 0.0
    %699 = vmatmul.mubr.f32.gmra.mxu0 %v286
    %v700 = vpop.f32.mrf.mxu0
    %v701 = vadd.f32 0.0, %v700
    %v702 = vpop.f32.mrf.mxu0
    %703 = vmatprep.mubr.f32.mxu0 0.0
    %704 = vmatmul.mubr.f32.gmra.mxu0 %v289
    %v705 = vpop.f32.mrf.mxu0
    %v706 = vadd.f32 0.0, %v705
    %v707 = vpop.f32.mrf.mxu0
    %708 = vmatprep.mubr.f32.mxu0 0.0
    %709 = vmatmul.mubr.f32.gmra.mxu0 %v292
    %v710 = vpop.f32.mrf.mxu0
    %v711 = vadd.f32 0.0, %v710
    %v712 = vpop.f32.mrf.mxu0
    %713 = vmatprep.mubr.f32.mxu0 0.0
    %714 = vmatmul.mubr.f32.gmra.mxu0 %v295
    %v715 = vpop.f32.mrf.mxu0
    %v716 = vadd.f32 0.0, %v715
    %v717 = vpop.f32.mrf.mxu0
    %718 = vmatprep.mubr.f32.mxu0 0.0
    %719 = vmatmul.mubr.f32.gmra.mxu0 %v298
    %v720 = vpop.f32.mrf.mxu0
    %v721 = vadd.f32 0.0, %v720
    %v722 = vpop.f32.mrf.mxu0
    %723 = vmatprep.mubr.f32.mxu0 0.0
    %724 = vmatmul.mubr.f32.gmra.mxu0 %v301
    %v725 = vpop.f32.mrf.mxu0
    %v726 = vadd.f32 0.0, %v725
    %v727 = vpop.f32.mrf.mxu0
    %728 = vmatprep.mubr.f32.mxu0 0.0
    %729 = vmatmul.mubr.f32.gmra.mxu0 %v304
    %v730 = vpop.f32.mrf.mxu0
    %v731 = vadd.f32 0.0, %v730
    %v732 = vpop.f32.mrf.mxu0
    %733 = vmatprep.mubr.f32.mxu0 0.0
    %734 = vmatmul.mubr.f32.gmra.mxu0 %v307
    %v735 = vpop.f32.mrf.mxu0
    %v736 = vadd.f32 0.0, %v735
    %v737 = vpop.f32.mrf.mxu0
    %738 = vmatprep.mubr.f32.mxu0 0.0
    %739 = vmatmul.mubr.f32.gmra.mxu0 %v310
    %v740 = vpop.f32.mrf.mxu0
    %v741 = vadd.f32 0.0, %v740
    %v742 = vpop.f32.mrf.mxu0
    %743 = vmatprep.mubr.f32.mxu0 0.0
    %744 = vmatmul.mubr.f32.gmra.mxu0 %v313
    %v745 = vpop.f32.mrf.mxu0
    %v746 = vadd.f32 0.0, %v745
    %v747 = vpop.f32.mrf.mxu0
    %748 = vmatprep.mubr.f32.mxu0 0.0
    %749 = vmatmul.mubr.f32.gmra.mxu0 %v316
    %v750 = vpop.f32.mrf.mxu0
    %v751 = vadd.f32 0.0, %v750
    %v752 = vpop.f32.mrf.mxu0
    %753 = vmatprep.mubr.f32.mxu0 0.0
    %754 = vmatmul.mubr.f32.gmra.mxu0 %v319
    %v755 = vpop.f32.mrf.mxu0
    %v756 = vadd.f32 0.0, %v755
    %v757 = vpop.f32.mrf.mxu0
    %758 = vmatprep.mubr.f32.mxu0 0.0
    %759 = vmatmul.mubr.f32.gmra.mxu0 %v322
    %v760 = vpop.f32.mrf.mxu0
    %v761 = vadd.f32 0.0, %v760
    %v762 = vpop.f32.mrf.mxu0
    %763 = vmatprep.mubr.f32.mxu0 0.0
    %764 = vmatmul.mubr.f32.gmra.mxu0 %v325
    %v765 = vpop.f32.mrf.mxu0
    %v766 = vadd.f32 0.0, %v765
    %v767 = vpop.f32.mrf.mxu0
    %768 = vmatprep.mubr.f32.mxu0 0.0
    %769 = vmatmul.mubr.f32.gmra.mxu0 %v328
    %v770 = vpop.f32.mrf.mxu0
    %v771 = vadd.f32 0.0, %v770
    %v772 = vpop.f32.mrf.mxu0
    %773 = vmatprep.mubr.f32.mxu0 0.0
    %774 = vmatmul.mubr.f32.gmra.mxu0 %v331
    %v775 = vpop.f32.mrf.mxu0
    %v776 = vadd.f32 0.0, %v775
    %v777 = vpop.f32.mrf.mxu0
    %778 = vmatprep.mubr.f32.mxu0 0.0
    %779 = vmatmul.mubr.f32.gmra.mxu0 %v334
    %v780 = vpop.f32.mrf.mxu0
    %v781 = vadd.f32 0.0, %v780
    %v782 = vpop.f32.mrf.mxu0
    %783 = vmatprep.mubr.f32.mxu0 0.0
    %784 = vmatmul.mubr.f32.gmra.mxu0 %v337
    %v785 = vpop.f32.mrf.mxu0
    %v786 = vadd.f32 0.0, %v785
    %v787 = vpop.f32.mrf.mxu0
    %788 = vdwg.mxu0
    %v790 = vsel %vm242, %v106, 0
    %v793 = vsel %vm242, %v107, 0
    %795 = vmatprep.subr.mxu0 0.0
    %796 = vmatpush1.msra.mxu0 0.0
    %797 = vmatprep.subr.mxu0 0.0
    %798 = vmatpush1.msra.mxu0 0.0
    %799 = vmatprep.subr.mxu0 0.0
    %800 = vmatpush1.msra.mxu0 0.0
    %801 = vmatprep.subr.mxu0 0.0
    %802 = vmatpush1.msra.mxu0 0.0
    %803 = vmatprep.subr.mxu0 0.0
    %804 = vmatpush1.msra.mxu0 0.0
    %805 = vmatprep.subr.mxu0 0.0
    %806 = vmatpush1.msra.mxu0 0.0
    %807 = vmatprep.subr.mxu0 0.0
    %808 = vmatpush1.msra.mxu0 0.0
    %809 = vmatprep.subr.mxu0 0.0
    %810 = vmatpush1.msra.mxu0 0.0
    %811 = vmatprep.subr.mxu0 0.0
    %812 = vmatpush1.msra.mxu0 0.0
    %813 = vmatprep.subr.mxu0 0.0
    %814 = vmatpush1.msra.mxu0 0.0
    %815 = vmatprep.subr.mxu0 0.0
    %816 = vmatpush1.msra.mxu0 0.0
    %817 = vmatprep.subr.mxu0 0.0
    %818 = vmatpush1.msra.mxu0 0.0
    %819 = vmatprep.subr.mxu0 0.0
    %820 = vmatpush1.msra.mxu0 0.0
    %821 = vmatprep.subr.mxu0 0.0
    %822 = vmatpush1.msra.mxu0 0.0
    %823 = vmatprep.subr.mxu0 0.0
    %824 = vmatpush1.msra.mxu0 %v411
    %825 = vmatprep.subr.mxu0 0.0
    %826 = vmatpush1.msra.mxu0 %v406
    %827 = vmatprep.subr.mxu0 0.0
    %828 = vmatpush2.msra.mxu0 0.0
    %829 = vmatprep.subr.mxu0 0.0
    %830 = vmatpush2.msra.mxu0 0.0
    %831 = vmatprep.subr.mxu0 0.0
    %832 = vmatpush2.msra.mxu0 0.0
    %833 = vmatprep.subr.mxu0 0.0
    %834 = vmatpush2.msra.mxu0 0.0
    %835 = vmatprep.subr.mxu0 0.0
    %836 = vmatpush2.msra.mxu0 0.0
    %837 = vmatprep.subr.mxu0 0.0
    %838 = vmatpush2.msra.mxu0 0.0
    %839 = vmatprep.subr.mxu0 0.0
    %840 = vmatpush2.msra.mxu0 0.0
    %841 = vmatprep.subr.mxu0 0.0
    %842 = vmatpush2.msra.mxu0 0.0
    %843 = vmatprep.subr.mxu0 0.0
    %844 = vmatpush2.msra.mxu0 0.0
    %845 = vmatprep.subr.mxu0 0.0
    %846 = vmatpush2.msra.mxu0 0.0
    %847 = vmatprep.subr.mxu0 0.0
    %848 = vmatpush2.msra.mxu0 0.0
    %849 = vmatprep.subr.mxu0 0.0
    %850 = vmatpush2.msra.mxu0 0.0
    %851 = vmatprep.subr.mxu0 0.0
    %852 = vmatpush2.msra.mxu0 0.0
    %853 = vmatprep.subr.mxu0 0.0
    %854 = vmatpush2.msra.mxu0 0.0
    %855 = vmatprep.subr.mxu0 0.0
    %856 = vmatpush2.msra.mxu0 0.0
    %857 = vmatprep.subr.mxu0 0.0
    %858 = vmatpush2.msra.mxu0 0.0
    %859 = vmatprep.mubr.f32.mxu0 0.0
    %860 = vmatmul.mubr.f32.gmra.mxu0 %v790
    %v861 = vpop.f32.mrf.mxu0
    %v862 = vadd.f32 0.0, %v861
    %v863 = vpop.f32.mrf.mxu0
    %864 = vmatprep.mubr.f32.mxu0 0.0
    %865 = vmatmul.mubr.f32.gmra.mxu0 %v793
    %v866 = vpop.f32.mrf.mxu0
    %v867 = vadd.f32 0.0, %v866
    %v868 = vpop.f32.mrf.mxu0
    %869 = vdwg.mxu0
    %870 = vmatprep.subr.mxu0 0.0
    %871 = vmatpush1.msra.mxu0 0.0
    %872 = vmatprep.subr.mxu0 0.0
    %873 = vmatpush1.msra.mxu0 0.0
    %874 = vmatprep.subr.mxu0 0.0
    %875 = vmatpush1.msra.mxu0 0.0
    %876 = vmatprep.subr.mxu0 0.0
    %877 = vmatpush1.msra.mxu0 0.0
    %878 = vmatprep.subr.mxu0 0.0
    %879 = vmatpush1.msra.mxu0 0.0
    %880 = vmatprep.subr.mxu0 0.0
    %881 = vmatpush1.msra.mxu0 0.0
    %882 = vmatprep.subr.mxu0 0.0
    %883 = vmatpush1.msra.mxu0 0.0
    %884 = vmatprep.subr.mxu0 0.0
    %885 = vmatpush1.msra.mxu0 0.0
    %886 = vmatprep.subr.mxu0 0.0
    %887 = vmatpush1.msra.mxu0 0.0
    %888 = vmatprep.subr.mxu0 0.0
    %889 = vmatpush1.msra.mxu0 0.0
    %890 = vmatprep.subr.mxu0 0.0
    %891 = vmatpush1.msra.mxu0 0.0
    %892 = vmatprep.subr.mxu0 0.0
    %893 = vmatpush1.msra.mxu0 0.0
    %894 = vmatprep.subr.mxu0 0.0
    %895 = vmatpush1.msra.mxu0 0.0
    %896 = vmatprep.subr.mxu0 0.0
    %897 = vmatpush1.msra.mxu0 0.0
    %898 = vmatprep.subr.mxu0 0.0
    %899 = vmatpush1.msra.mxu0 %v421
    %900 = vmatprep.subr.mxu0 0.0
    %901 = vmatpush1.msra.mxu0 %v416
    %902 = vmatprep.subr.mxu0 0.0
    %903 = vmatpush2.msra.mxu0 0.0
    %904 = vmatprep.subr.mxu0 0.0
    %905 = vmatpush2.msra.mxu0 0.0
    %906 = vmatprep.subr.mxu0 0.0
    %907 = vmatpush2.msra.mxu0 0.0
    %908 = vmatprep.subr.mxu0 0.0
    %909 = vmatpush2.msra.mxu0 0.0
    %910 = vmatprep.subr.mxu0 0.0
    %911 = vmatpush2.msra.mxu0 0.0
    %912 = vmatprep.subr.mxu0 0.0
    %913 = vmatpush2.msra.mxu0 0.0
    %914 = vmatprep.subr.mxu0 0.0
    %915 = vmatpush2.msra.mxu0 0.0
    %916 = vmatprep.subr.mxu0 0.0
    %917 = vmatpush2.msra.mxu0 0.0
    %918 = vmatprep.subr.mxu0 0.0
    %919 = vmatpush2.msra.mxu0 0.0
    %920 = vmatprep.subr.mxu0 0.0
    %921 = vmatpush2.msra.mxu0 0.0
    %922 = vmatprep.subr.mxu0 0.0
    %923 = vmatpush2.msra.mxu0 0.0
    %924 = vmatprep.subr.mxu0 0.0
    %925 = vmatpush2.msra.mxu0 0.0
    %926 = vmatprep.subr.mxu0 0.0
    %927 = vmatpush2.msra.mxu0 0.0
    %928 = vmatprep.subr.mxu0 0.0
    %929 = vmatpush2.msra.mxu0 0.0
    %930 = vmatprep.subr.mxu0 0.0
    %931 = vmatpush2.msra.mxu0 0.0
    %932 = vmatprep.subr.mxu0 0.0
    %933 = vmatpush2.msra.mxu0 0.0
    %934 = vmatprep.mubr.f32.mxu0 0.0
    %935 = vmatmul.mubr.f32.gmra.mxu0 %v790
    %v936 = vpop.f32.mrf.mxu0
    %v937 = vadd.f32 0.0, %v936
    %v938 = vpop.f32.mrf.mxu0
    %939 = vmatprep.mubr.f32.mxu0 0.0
    %940 = vmatmul.mubr.f32.gmra.mxu0 %v793
    %v941 = vpop.f32.mrf.mxu0
    %v942 = vadd.f32 0.0, %v941
    %v943 = vpop.f32.mrf.mxu0
    %944 = vdwg.mxu0
    %945 = vmatprep.subr.mxu0 0.0
    %946 = vmatpush1.msra.mxu0 0.0
    %947 = vmatprep.subr.mxu0 0.0
    %948 = vmatpush1.msra.mxu0 0.0
    %949 = vmatprep.subr.mxu0 0.0
    %950 = vmatpush1.msra.mxu0 0.0
    %951 = vmatprep.subr.mxu0 0.0
    %952 = vmatpush1.msra.mxu0 0.0
    %953 = vmatprep.subr.mxu0 0.0
    %954 = vmatpush1.msra.mxu0 0.0
    %955 = vmatprep.subr.mxu0 0.0
    %956 = vmatpush1.msra.mxu0 0.0
    %957 = vmatprep.subr.mxu0 0.0
    %958 = vmatpush1.msra.mxu0 0.0
    %959 = vmatprep.subr.mxu0 0.0
    %960 = vmatpush1.msra.mxu0 0.0
    %961 = vmatprep.subr.mxu0 0.0
    %962 = vmatpush1.msra.mxu0 0.0
    %963 = vmatprep.subr.mxu0 0.0
    %964 = vmatpush1.msra.mxu0 0.0
    %965 = vmatprep.subr.mxu0 0.0
    %966 = vmatpush1.msra.mxu0 0.0
    %967 = vmatprep.subr.mxu0 0.0
    %968 = vmatpush1.msra.mxu0 0.0
    %969 = vmatprep.subr.mxu0 0.0
    %970 = vmatpush1.msra.mxu0 0.0
    %971 = vmatprep.subr.mxu0 0.0
    %972 = vmatpush1.msra.mxu0 0.0
    %973 = vmatprep.subr.mxu0 0.0
    %974 = vmatpush1.msra.mxu0 %v431
    %975 = vmatprep.subr.mxu0 0.0
    %976 = vmatpush1.msra.mxu0 %v426
    %977 = vmatprep.subr.mxu0 0.0
    %978 = vmatpush2.msra.mxu0 0.0
    %979 = vmatprep.subr.mxu0 0.0
    %980 = vmatpush2.msra.mxu0 0.0
    %981 = vmatprep.subr.mxu0 0.0
    %982 = vmatpush2.msra.mxu0 0.0
    %983 = vmatprep.subr.mxu0 0.0
    %984 = vmatpush2.msra.mxu0 0.0
    %985 = vmatprep.subr.mxu0 0.0
    %986 = vmatpush2.msra.mxu0 0.0
    %987 = vmatprep.subr.mxu0 0.0
    %988 = vmatpush2.msra.mxu0 0.0
    %989 = vmatprep.subr.mxu0 0.0
    %990 = vmatpush2.msra.mxu0 0.0
    %991 = vmatprep.subr.mxu0 0.0
    %992 = vmatpush2.msra.mxu0 0.0
    %993 = vmatprep.subr.mxu0 0.0
    %994 = vmatpush2.msra.mxu0 0.0
    %995 = vmatprep.subr.mxu0 0.0
    %996 = vmatpush2.msra.mxu0 0.0
    %997 = vmatprep.subr.mxu0 0.0
    %998 = vmatpush2.msra.mxu0 0.0
    %999 = vmatprep.subr.mxu0 0.0
    %1000 = vmatpush2.msra.mxu0 0.0
    %1001 = vmatprep.subr.mxu0 0.0
    %1002 = vmatpush2.msra.mxu0 0.0
    %1003 = vmatprep.subr.mxu0 0.0
    %1004 = vmatpush2.msra.mxu0 0.0
    %1005 = vmatprep.subr.mxu0 0.0
    %1006 = vmatpush2.msra.mxu0 0.0
    %1007 = vmatprep.subr.mxu0 0.0
    %1008 = vmatpush2.msra.mxu0 0.0
    %1009 = vmatprep.mubr.f32.mxu0 0.0
    %1010 = vmatmul.mubr.f32.gmra.mxu0 %v790
    %v1011 = vpop.f32.mrf.mxu0
    %v1012 = vadd.f32 0.0, %v1011
    %v1013 = vpop.f32.mrf.mxu0
    %1014 = vmatprep.mubr.f32.mxu0 0.0
    %1015 = vmatmul.mubr.f32.gmra.mxu0 %v793
    %v1016 = vpop.f32.mrf.mxu0
    %v1017 = vadd.f32 0.0, %v1016
    %v1018 = vpop.f32.mrf.mxu0
    %1019 = vdwg.mxu0
    %1020 = vmatprep.subr.mxu0 0.0
    %1021 = vmatpush1.msra.mxu0 0.0
    %1022 = vmatprep.subr.mxu0 0.0
    %1023 = vmatpush1.msra.mxu0 0.0
    %1024 = vmatprep.subr.mxu0 0.0
    %1025 = vmatpush1.msra.mxu0 0.0
    %1026 = vmatprep.subr.mxu0 0.0
    %1027 = vmatpush1.msra.mxu0 0.0
    %1028 = vmatprep.subr.mxu0 0.0
    %1029 = vmatpush1.msra.mxu0 0.0
    %1030 = vmatprep.subr.mxu0 0.0
    %1031 = vmatpush1.msra.mxu0 0.0
    %1032 = vmatprep.subr.mxu0 0.0
    %1033 = vmatpush1.msra.mxu0 0.0
    %1034 = vmatprep.subr.mxu0 0.0
    %1035 = vmatpush1.msra.mxu0 0.0
    %1036 = vmatprep.subr.mxu0 0.0
    %1037 = vmatpush1.msra.mxu0 0.0
    %1038 = vmatprep.subr.mxu0 0.0
    %1039 = vmatpush1.msra.mxu0 0.0
    %1040 = vmatprep.subr.mxu0 0.0
    %1041 = vmatpush1.msra.mxu0 0.0
    %1042 = vmatprep.subr.mxu0 0.0
    %1043 = vmatpush1.msra.mxu0 0.0
    %1044 = vmatprep.subr.mxu0 0.0
    %1045 = vmatpush1.msra.mxu0 0.0
    %1046 = vmatprep.subr.mxu0 0.0
    %1047 = vmatpush1.msra.mxu0 0.0
    %1048 = vmatprep.subr.mxu0 0.0
    %1049 = vmatpush1.msra.mxu0 %v441
    %1050 = vmatprep.subr.mxu0 0.0
    %1051 = vmatpush1.msra.mxu0 %v436
    %1052 = vmatprep.subr.mxu0 0.0
    %1053 = vmatpush2.msra.mxu0 0.0
    %1054 = vmatprep.subr.mxu0 0.0
    %1055 = vmatpush2.msra.mxu0 0.0
    %1056 = vmatprep.subr.mxu0 0.0
    %1057 = vmatpush2.msra.mxu0 0.0
    %1058 = vmatprep.subr.mxu0 0.0
    %1059 = vmatpush2.msra.mxu0 0.0
    %1060 = vmatprep.subr.mxu0 0.0
    %1061 = vmatpush2.msra.mxu0 0.0
    %1062 = vmatprep.subr.mxu0 0.0
    %1063 = vmatpush2.msra.mxu0 0.0
    %1064 = vmatprep.subr.mxu0 0.0
    %1065 = vmatpush2.msra.mxu0 0.0
    %1066 = vmatprep.subr.mxu0 0.0
    %1067 = vmatpush2.msra.mxu0 0.0
    %1068 = vmatprep.subr.mxu0 0.0
    %1069 = vmatpush2.msra.mxu0 0.0
    %1070 = vmatprep.subr.mxu0 0.0
    %1071 = vmatpush2.msra.mxu0 0.0
    %1072 = vmatprep.subr.mxu0 0.0
    %1073 = vmatpush2.msra.mxu0 0.0
    %1074 = vmatprep.subr.mxu0 0.0
    %1075 = vmatpush2.msra.mxu0 0.0
    %1076 = vmatprep.subr.mxu0 0.0
    %1077 = vmatpush2.msra.mxu0 0.0
    %1078 = vmatprep.subr.mxu0 0.0
    %1079 = vmatpush2.msra.mxu0 0.0
    %1080 = vmatprep.subr.mxu0 0.0
    %1081 = vmatpush2.msra.mxu0 0.0
    %1082 = vmatprep.subr.mxu0 0.0
    %1083 = vmatpush2.msra.mxu0 0.0
    %1084 = vmatprep.mubr.f32.mxu0 0.0
    %1085 = vmatmul.mubr.f32.gmra.mxu0 %v790
    %v1086 = vpop.f32.mrf.mxu0
    %v1087 = vadd.f32 0.0, %v1086
    %v1088 = vpop.f32.mrf.mxu0
    %1089 = vmatprep.mubr.f32.mxu0 0.0
    %1090 = vmatmul.mubr.f32.gmra.mxu0 %v793
    %v1091 = vpop.f32.mrf.mxu0
    %v1092 = vadd.f32 0.0, %v1091
    %v1093 = vpop.f32.mrf.mxu0
    %1094 = vdwg.mxu0
    %1095 = vmatprep.subr.mxu0 0.0
    %1096 = vmatpush1.msra.mxu0 0.0
    %1097 = vmatprep.subr.mxu0 0.0
    %1098 = vmatpush1.msra.mxu0 0.0
    %1099 = vmatprep.subr.mxu0 0.0
    %1100 = vmatpush1.msra.mxu0 0.0
    %1101 = vmatprep.subr.mxu0 0.0
    %1102 = vmatpush1.msra.mxu0 0.0
    %1103 = vmatprep.subr.mxu0 0.0
    %1104 = vmatpush1.msra.mxu0 0.0
    %1105 = vmatprep.subr.mxu0 0.0
    %1106 = vmatpush1.msra.mxu0 0.0
    %1107 = vmatprep.subr.mxu0 0.0
    %1108 = vmatpush1.msra.mxu0 0.0
    %1109 = vmatprep.subr.mxu0 0.0
    %1110 = vmatpush1.msra.mxu0 0.0
    %1111 = vmatprep.subr.mxu0 0.0
    %1112 = vmatpush1.msra.mxu0 0.0
    %1113 = vmatprep.subr.mxu0 0.0
    %1114 = vmatpush1.msra.mxu0 0.0
    %1115 = vmatprep.subr.mxu0 0.0
    %1116 = vmatpush1.msra.mxu0 0.0
    %1117 = vmatprep.subr.mxu0 0.0
    %1118 = vmatpush1.msra.mxu0 0.0
    %1119 = vmatprep.subr.mxu0 0.0
    %1120 = vmatpush1.msra.mxu0 0.0
    %1121 = vmatprep.subr.mxu0 0.0
    %1122 = vmatpush1.msra.mxu0 0.0
    %1123 = vmatprep.subr.mxu0 0.0
    %1124 = vmatpush1.msra.mxu0 %v451
    %1125 = vmatprep.subr.mxu0 0.0
    %1126 = vmatpush1.msra.mxu0 %v446
    %1127 = vmatprep.subr.mxu0 0.0
    %1128 = vmatpush2.msra.mxu0 0.0
    %1129 = vmatprep.subr.mxu0 0.0
    %1130 = vmatpush2.msra.mxu0 0.0
    %1131 = vmatprep.subr.mxu0 0.0
    %1132 = vmatpush2.msra.mxu0 0.0
    %1133 = vmatprep.subr.mxu0 0.0
    %1134 = vmatpush2.msra.mxu0 0.0
    %1135 = vmatprep.subr.mxu0 0.0
    %1136 = vmatpush2.msra.mxu0 0.0
    %1137 = vmatprep.subr.mxu0 0.0
    %1138 = vmatpush2.msra.mxu0 0.0
    %1139 = vmatprep.subr.mxu0 0.0
    %1140 = vmatpush2.msra.mxu0 0.0
    %1141 = vmatprep.subr.mxu0 0.0
    %1142 = vmatpush2.msra.mxu0 0.0
    %1143 = vmatprep.subr.mxu0 0.0
    %1144 = vmatpush2.msra.mxu0 0.0
    %1145 = vmatprep.subr.mxu0 0.0
    %1146 = vmatpush2.msra.mxu0 0.0
    %1147 = vmatprep.subr.mxu0 0.0
    %1148 = vmatpush2.msra.mxu0 0.0
    %1149 = vmatprep.subr.mxu0 0.0
    %1150 = vmatpush2.msra.mxu0 0.0
    %1151 = vmatprep.subr.mxu0 0.0
    %1152 = vmatpush2.msra.mxu0 0.0
    %1153 = vmatprep.subr.mxu0 0.0
    %1154 = vmatpush2.msra.mxu0 0.0
    %1155 = vmatprep.subr.mxu0 0.0
    %1156 = vmatpush2.msra.mxu0 0.0
    %1157 = vmatprep.subr.mxu0 0.0
    %1158 = vmatpush2.msra.mxu0 0.0
    %1159 = vmatprep.mubr.f32.mxu0 0.0
    %1160 = vmatmul.mubr.f32.gmra.mxu0 %v790
    %v1161 = vpop.f32.mrf.mxu0
    %v1162 = vadd.f32 0.0, %v1161
    %v1163 = vpop.f32.mrf.mxu0
    %1164 = vmatprep.mubr.f32.mxu0 0.0
    %1165 = vmatmul.mubr.f32.gmra.mxu0 %v793
    %v1166 = vpop.f32.mrf.mxu0
    %v1167 = vadd.f32 0.0, %v1166
    %v1168 = vpop.f32.mrf.mxu0
    %1169 = vdwg.mxu0
    %1170 = vmatprep.subr.mxu0 0.0
    %1171 = vmatpush1.msra.mxu0 0.0
    %1172 = vmatprep.subr.mxu0 0.0
    %1173 = vmatpush1.msra.mxu0 0.0
    %1174 = vmatprep.subr.mxu0 0.0
    %1175 = vmatpush1.msra.mxu0 0.0
    %1176 = vmatprep.subr.mxu0 0.0
    %1177 = vmatpush1.msra.mxu0 0.0
    %1178 = vmatprep.subr.mxu0 0.0
    %1179 = vmatpush1.msra.mxu0 0.0
    %1180 = vmatprep.subr.mxu0 0.0
    %1181 = vmatpush1.msra.mxu0 0.0
    %1182 = vmatprep.subr.mxu0 0.0
    %1183 = vmatpush1.msra.mxu0 0.0
    %1184 = vmatprep.subr.mxu0 0.0
    %1185 = vmatpush1.msra.mxu0 0.0
    %1186 = vmatprep.subr.mxu0 0.0
    %1187 = vmatpush1.msra.mxu0 0.0
    %1188 = vmatprep.subr.mxu0 0.0
    %1189 = vmatpush1.msra.mxu0 0.0
    %1190 = vmatprep.subr.mxu0 0.0
    %1191 = vmatpush1.msra.mxu0 0.0
    %1192 = vmatprep.subr.mxu0 0.0
    %1193 = vmatpush1.msra.mxu0 0.0
    %1194 = vmatprep.subr.mxu0 0.0
    %1195 = vmatpush1.msra.mxu0 0.0
    %1196 = vmatprep.subr.mxu0 0.0
    %1197 = vmatpush1.msra.mxu0 0.0
    %1198 = vmatprep.subr.mxu0 0.0
    %1199 = vmatpush1.msra.mxu0 %v461
    %1200 = vmatprep.subr.mxu0 0.0
    %1201 = vmatpush1.msra.mxu0 %v456
    %1202 = vmatprep.subr.mxu0 0.0
    %1203 = vmatpush2.msra.mxu0 0.0
    %1204 = vmatprep.subr.mxu0 0.0
    %1205 = vmatpush2.msra.mxu0 0.0
    %1206 = vmatprep.subr.mxu0 0.0
    %1207 = vmatpush2.msra.mxu0 0.0
    %1208 = vmatprep.subr.mxu0 0.0
    %1209 = vmatpush2.msra.mxu0 0.0
    %1210 = vmatprep.subr.mxu0 0.0
    %1211 = vmatpush2.msra.mxu0 0.0
    %1212 = vmatprep.subr.mxu0 0.0
    %1213 = vmatpush2.msra.mxu0 0.0
    %1214 = vmatprep.subr.mxu0 0.0
    %1215 = vmatpush2.msra.mxu0 0.0
    %1216 = vmatprep.subr.mxu0 0.0
    %1217 = vmatpush2.msra.mxu0 0.0
    %1218 = vmatprep.subr.mxu0 0.0
    %1219 = vmatpush2.msra.mxu0 0.0
    %1220 = vmatprep.subr.mxu0 0.0
    %1221 = vmatpush2.msra.mxu0 0.0
    %1222 = vmatprep.subr.mxu0 0.0
    %1223 = vmatpush2.msra.mxu0 0.0
    %1224 = vmatprep.subr.mxu0 0.0
    %1225 = vmatpush2.msra.mxu0 0.0
    %1226 = vmatprep.subr.mxu0 0.0
    %1227 = vmatpush2.msra.mxu0 0.0
    %1228 = vmatprep.subr.mxu0 0.0
    %1229 = vmatpush2.msra.mxu0 0.0
    %1230 = vmatprep.subr.mxu0 0.0
    %1231 = vmatpush2.msra.mxu0 0.0
    %1232 = vmatprep.subr.mxu0 0.0
    %1233 = vmatpush2.msra.mxu0 0.0
    %1234 = vmatprep.mubr.f32.mxu0 0.0
    %1235 = vmatmul.mubr.f32.gmra.mxu0 %v790
    %v1236 = vpop.f32.mrf.mxu0
    %v1237 = vadd.f32 0.0, %v1236
    %v1238 = vpop.f32.mrf.mxu0
    %1239 = vmatprep.mubr.f32.mxu0 0.0
    %1240 = vmatmul.mubr.f32.gmra.mxu0 %v793
    %v1241 = vpop.f32.mrf.mxu0
    %v1242 = vadd.f32 0.0, %v1241
    %v1243 = vpop.f32.mrf.mxu0
    %1244 = vdwg.mxu0
    %1245 = vmatprep.subr.mxu0 0.0
    %1246 = vmatpush1.msra.mxu0 0.0
    %1247 = vmatprep.subr.mxu0 0.0
    %1248 = vmatpush1.msra.mxu0 0.0
    %1249 = vmatprep.subr.mxu0 0.0
    %1250 = vmatpush1.msra.mxu0 0.0
    %1251 = vmatprep.subr.mxu0 0.0
    %1252 = vmatpush1.msra.mxu0 0.0
    %1253 = vmatprep.subr.mxu0 0.0
    %1254 = vmatpush1.msra.mxu0 0.0
    %1255 = vmatprep.subr.mxu0 0.0
    %1256 = vmatpush1.msra.mxu0 0.0
    %1257 = vmatprep.subr.mxu0 0.0
    %1258 = vmatpush1.msra.mxu0 0.0
    %1259 = vmatprep.subr.mxu0 0.0
    %1260 = vmatpush1.msra.mxu0 0.0
    %1261 = vmatprep.subr.mxu0 0.0
    %1262 = vmatpush1.msra.mxu0 0.0
    %1263 = vmatprep.subr.mxu0 0.0
    %1264 = vmatpush1.msra.mxu0 0.0
    %1265 = vmatprep.subr.mxu0 0.0
    %1266 = vmatpush1.msra.mxu0 0.0
    %1267 = vmatprep.subr.mxu0 0.0
    %1268 = vmatpush1.msra.mxu0 0.0
    %1269 = vmatprep.subr.mxu0 0.0
    %1270 = vmatpush1.msra.mxu0 0.0
    %1271 = vmatprep.subr.mxu0 0.0
    %1272 = vmatpush1.msra.mxu0 0.0
    %1273 = vmatprep.subr.mxu0 0.0
    %1274 = vmatpush1.msra.mxu0 %v471
    %1275 = vmatprep.subr.mxu0 0.0
    %1276 = vmatpush1.msra.mxu0 %v466
    %1277 = vmatprep.subr.mxu0 0.0
    %1278 = vmatpush2.msra.mxu0 0.0
    %1279 = vmatprep.subr.mxu0 0.0
    %1280 = vmatpush2.msra.mxu0 0.0
    %1281 = vmatprep.subr.mxu0 0.0
    %1282 = vmatpush2.msra.mxu0 0.0
    %1283 = vmatprep.subr.mxu0 0.0
    %1284 = vmatpush2.msra.mxu0 0.0
    %1285 = vmatprep.subr.mxu0 0.0
    %1286 = vmatpush2.msra.mxu0 0.0
    %1287 = vmatprep.subr.mxu0 0.0
    %1288 = vmatpush2.msra.mxu0 0.0
    %1289 = vmatprep.subr.mxu0 0.0
    %1290 = vmatpush2.msra.mxu0 0.0
    %1291 = vmatprep.subr.mxu0 0.0
    %1292 = vmatpush2.msra.mxu0 0.0
    %1293 = vmatprep.subr.mxu0 0.0
    %1294 = vmatpush2.msra.mxu0 0.0
    %1295 = vmatprep.subr.mxu0 0.0
    %1296 = vmatpush2.msra.mxu0 0.0
    %1297 = vmatprep.subr.mxu0 0.0
    %1298 = vmatpush2.msra.mxu0 0.0
    %1299 = vmatprep.subr.mxu0 0.0
    %1300 = vmatpush2.msra.mxu0 0.0
    %1301 = vmatprep.subr.mxu0 0.0
    %1302 = vmatpush2.msra.mxu0 0.0
    %1303 = vmatprep.subr.mxu0 0.0
    %1304 = vmatpush2.msra.mxu0 0.0
    %1305 = vmatprep.subr.mxu0 0.0
    %1306 = vmatpush2.msra.mxu0 0.0
    %1307 = vmatprep.subr.mxu0 0.0
    %1308 = vmatpush2.msra.mxu0 0.0
    %1309 = vmatprep.mubr.f32.mxu0 0.0
    %1310 = vmatmul.mubr.f32.gmra.mxu0 %v790
    %v1311 = vpop.f32.mrf.mxu0
    %v1312 = vadd.f32 0.0, %v1311
    %v1313 = vpop.f32.mrf.mxu0
    %1314 = vmatprep.mubr.f32.mxu0 0.0
    %1315 = vmatmul.mubr.f32.gmra.mxu0 %v793
    %v1316 = vpop.f32.mrf.mxu0
    %v1317 = vadd.f32 0.0, %v1316
    %v1318 = vpop.f32.mrf.mxu0
    %1319 = vdwg.mxu0
    %1320 = vmatprep.subr.mxu0 0.0
    %1321 = vmatpush1.msra.mxu0 0.0
    %1322 = vmatprep.subr.mxu0 0.0
    %1323 = vmatpush1.msra.mxu0 0.0
    %1324 = vmatprep.subr.mxu0 0.0
    %1325 = vmatpush1.msra.mxu0 0.0
    %1326 = vmatprep.subr.mxu0 0.0
    %1327 = vmatpush1.msra.mxu0 0.0
    %1328 = vmatprep.subr.mxu0 0.0
    %1329 = vmatpush1.msra.mxu0 0.0
    %1330 = vmatprep.subr.mxu0 0.0
    %1331 = vmatpush1.msra.mxu0 0.0
    %1332 = vmatprep.subr.mxu0 0.0
    %1333 = vmatpush1.msra.mxu0 0.0
    %1334 = vmatprep.subr.mxu0 0.0
    %1335 = vmatpush1.msra.mxu0 0.0
    %1336 = vmatprep.subr.mxu0 0.0
    %1337 = vmatpush1.msra.mxu0 0.0
    %1338 = vmatprep.subr.mxu0 0.0
    %1339 = vmatpush1.msra.mxu0 0.0
    %1340 = vmatprep.subr.mxu0 0.0
    %1341 = vmatpush1.msra.mxu0 0.0
    %1342 = vmatprep.subr.mxu0 0.0
    %1343 = vmatpush1.msra.mxu0 0.0
    %1344 = vmatprep.subr.mxu0 0.0
    %1345 = vmatpush1.msra.mxu0 0.0
    %1346 = vmatprep.subr.mxu0 0.0
    %1347 = vmatpush1.msra.mxu0 0.0
    %1348 = vmatprep.subr.mxu0 0.0
    %1349 = vmatpush1.msra.mxu0 %v481
    %1350 = vmatprep.subr.mxu0 0.0
    %1351 = vmatpush1.msra.mxu0 %v476
    %1352 = vmatprep.subr.mxu0 0.0
    %1353 = vmatpush2.msra.mxu0 0.0
    %1354 = vmatprep.subr.mxu0 0.0
    %1355 = vmatpush2.msra.mxu0 0.0
    %1356 = vmatprep.subr.mxu0 0.0
    %1357 = vmatpush2.msra.mxu0 0.0
    %1358 = vmatprep.subr.mxu0 0.0
    %1359 = vmatpush2.msra.mxu0 0.0
    %1360 = vmatprep.subr.mxu0 0.0
    %1361 = vmatpush2.msra.mxu0 0.0
    %1362 = vmatprep.subr.mxu0 0.0
    %1363 = vmatpush2.msra.mxu0 0.0
    %1364 = vmatprep.subr.mxu0 0.0
    %1365 = vmatpush2.msra.mxu0 0.0
    %1366 = vmatprep.subr.mxu0 0.0
    %1367 = vmatpush2.msra.mxu0 0.0
    %1368 = vmatprep.subr.mxu0 0.0
    %1369 = vmatpush2.msra.mxu0 0.0
    %1370 = vmatprep.subr.mxu0 0.0
    %1371 = vmatpush2.msra.mxu0 0.0
    %1372 = vmatprep.subr.mxu0 0.0
    %1373 = vmatpush2.msra.mxu0 0.0
    %1374 = vmatprep.subr.mxu0 0.0
    %1375 = vmatpush2.msra.mxu0 0.0
    %1376 = vmatprep.subr.mxu0 0.0
    %1377 = vmatpush2.msra.mxu0 0.0
    %1378 = vmatprep.subr.mxu0 0.0
    %1379 = vmatpush2.msra.mxu0 0.0
    %1380 = vmatprep.subr.mxu0 0.0
    %1381 = vmatpush2.msra.mxu0 0.0
    %1382 = vmatprep.subr.mxu0 0.0
    %1383 = vmatpush2.msra.mxu0 0.0
    %1384 = vmatprep.mubr.f32.mxu0 0.0
    %1385 = vmatmul.mubr.f32.gmra.mxu0 %v790
    %v1386 = vpop.f32.mrf.mxu0
    %v1387 = vadd.f32 0.0, %v1386
    %v1388 = vpop.f32.mrf.mxu0
    %1389 = vmatprep.mubr.f32.mxu0 0.0
    %1390 = vmatmul.mubr.f32.gmra.mxu0 %v793
    %v1391 = vpop.f32.mrf.mxu0
    %v1392 = vadd.f32 0.0, %v1391
    %v1393 = vpop.f32.mrf.mxu0
    %1394 = vdwg.mxu0
    %1395 = vmatprep.subr.mxu0 0.0
    %1396 = vmatpush1.msra.mxu0 0.0
    %1397 = vmatprep.subr.mxu0 0.0
    %1398 = vmatpush1.msra.mxu0 0.0
    %1399 = vmatprep.subr.mxu0 0.0
    %1400 = vmatpush1.msra.mxu0 0.0
    %1401 = vmatprep.subr.mxu0 0.0
    %1402 = vmatpush1.msra.mxu0 0.0
    %1403 = vmatprep.subr.mxu0 0.0
    %1404 = vmatpush1.msra.mxu0 0.0
    %1405 = vmatprep.subr.mxu0 0.0
    %1406 = vmatpush1.msra.mxu0 0.0
    %1407 = vmatprep.subr.mxu0 0.0
    %1408 = vmatpush1.msra.mxu0 0.0
    %1409 = vmatprep.subr.mxu0 0.0
    %1410 = vmatpush1.msra.mxu0 0.0
    %1411 = vmatprep.subr.mxu0 0.0
    %1412 = vmatpush1.msra.mxu0 0.0
    %1413 = vmatprep.subr.mxu0 0.0
    %1414 = vmatpush1.msra.mxu0 0.0
    %1415 = vmatprep.subr.mxu0 0.0
    %1416 = vmatpush1.msra.mxu0 0.0
    %1417 = vmatprep.subr.mxu0 0.0
    %1418 = vmatpush1.msra.mxu0 0.0
    %1419 = vmatprep.subr.mxu0 0.0
    %1420 = vmatpush1.msra.mxu0 0.0
    %1421 = vmatprep.subr.mxu0 0.0
    %1422 = vmatpush1.msra.mxu0 0.0
    %1423 = vmatprep.subr.mxu0 0.0
    %1424 = vmatpush1.msra.mxu0 %v491
    %1425 = vmatprep.subr.mxu0 0.0
    %1426 = vmatpush1.msra.mxu0 %v486
    %1427 = vmatprep.subr.mxu0 0.0
    %1428 = vmatpush2.msra.mxu0 0.0
    %1429 = vmatprep.subr.mxu0 0.0
    %1430 = vmatpush2.msra.mxu0 0.0
    %1431 = vmatprep.subr.mxu0 0.0
    %1432 = vmatpush2.msra.mxu0 0.0
    %1433 = vmatprep.subr.mxu0 0.0
    %1434 = vmatpush2.msra.mxu0 0.0
    %1435 = vmatprep.subr.mxu0 0.0
    %1436 = vmatpush2.msra.mxu0 0.0
    %1437 = vmatprep.subr.mxu0 0.0
    %1438 = vmatpush2.msra.mxu0 0.0
    %1439 = vmatprep.subr.mxu0 0.0
    %1440 = vmatpush2.msra.mxu0 0.0
    %1441 = vmatprep.subr.mxu0 0.0
    %1442 = vmatpush2.msra.mxu0 0.0
    %1443 = vmatprep.subr.mxu0 0.0
    %1444 = vmatpush2.msra.mxu0 0.0
    %1445 = vmatprep.subr.mxu0 0.0
    %1446 = vmatpush2.msra.mxu0 0.0
    %1447 = vmatprep.subr.mxu0 0.0
    %1448 = vmatpush2.msra.mxu0 0.0
    %1449 = vmatprep.subr.mxu0 0.0
    %1450 = vmatpush2.msra.mxu0 0.0
    %1451 = vmatprep.subr.mxu0 0.0
    %1452 = vmatpush2.msra.mxu0 0.0
    %1453 = vmatprep.subr.mxu0 0.0
    %1454 = vmatpush2.msra.mxu0 0.0
    %1455 = vmatprep.subr.mxu0 0.0
    %1456 = vmatpush2.msra.mxu0 0.0
    %1457 = vmatprep.subr.mxu0 0.0
    %1458 = vmatpush2.msra.mxu0 0.0
    %1459 = vmatprep.mubr.f32.mxu0 0.0
    %1460 = vmatmul.mubr.f32.gmra.mxu0 %v790
    %v1461 = vpop.f32.mrf.mxu0
    %v1462 = vadd.f32 0.0, %v1461
    %v1463 = vpop.f32.mrf.mxu0
    %1464 = vmatprep.mubr.f32.mxu0 0.0
    %1465 = vmatmul.mubr.f32.gmra.mxu0 %v793
    %v1466 = vpop.f32.mrf.mxu0
    %v1467 = vadd.f32 0.0, %v1466
    %v1468 = vpop.f32.mrf.mxu0
    %1469 = vdwg.mxu0
    %1470 = vmatprep.subr.mxu0 0.0
    %1471 = vmatpush1.msra.mxu0 0.0
    %1472 = vmatprep.subr.mxu0 0.0
    %1473 = vmatpush1.msra.mxu0 0.0
    %1474 = vmatprep.subr.mxu0 0.0
    %1475 = vmatpush1.msra.mxu0 0.0
    %1476 = vmatprep.subr.mxu0 0.0
    %1477 = vmatpush1.msra.mxu0 0.0
    %1478 = vmatprep.subr.mxu0 0.0
    %1479 = vmatpush1.msra.mxu0 0.0
    %1480 = vmatprep.subr.mxu0 0.0
    %1481 = vmatpush1.msra.mxu0 0.0
    %1482 = vmatprep.subr.mxu0 0.0
    %1483 = vmatpush1.msra.mxu0 0.0
    %1484 = vmatprep.subr.mxu0 0.0
    %1485 = vmatpush1.msra.mxu0 0.0
    %1486 = vmatprep.subr.mxu0 0.0
    %1487 = vmatpush1.msra.mxu0 0.0
    %1488 = vmatprep.subr.mxu0 0.0
    %1489 = vmatpush1.msra.mxu0 0.0
    %1490 = vmatprep.subr.mxu0 0.0
    %1491 = vmatpush1.msra.mxu0 0.0
    %1492 = vmatprep.subr.mxu0 0.0
    %1493 = vmatpush1.msra.mxu0 0.0
    %1494 = vmatprep.subr.mxu0 0.0
    %1495 = vmatpush1.msra.mxu0 0.0
    %1496 = vmatprep.subr.mxu0 0.0
    %1497 = vmatpush1.msra.mxu0 0.0
    %1498 = vmatprep.subr.mxu0 0.0
    %1499 = vmatpush1.msra.mxu0 %v501
    %1500 = vmatprep.subr.mxu0 0.0
    %1501 = vmatpush1.msra.mxu0 %v496
    %1502 = vmatprep.subr.mxu0 0.0
    %1503 = vmatpush2.msra.mxu0 0.0
    %1504 = vmatprep.subr.mxu0 0.0
    %1505 = vmatpush2.msra.mxu0 0.0
    %1506 = vmatprep.subr.mxu0 0.0
    %1507 = vmatpush2.msra.mxu0 0.0
    %1508 = vmatprep.subr.mxu0 0.0
    %1509 = vmatpush2.msra.mxu0 0.0
    %1510 = vmatprep.subr.mxu0 0.0
    %1511 = vmatpush2.msra.mxu0 0.0
    %1512 = vmatprep.subr.mxu0 0.0
    %1513 = vmatpush2.msra.mxu0 0.0
    %1514 = vmatprep.subr.mxu0 0.0
    %1515 = vmatpush2.msra.mxu0 0.0
    %1516 = vmatprep.subr.mxu0 0.0
    %1517 = vmatpush2.msra.mxu0 0.0
    %1518 = vmatprep.subr.mxu0 0.0
    %1519 = vmatpush2.msra.mxu0 0.0
    %1520 = vmatprep.subr.mxu0 0.0
    %1521 = vmatpush2.msra.mxu0 0.0
    %1522 = vmatprep.subr.mxu0 0.0
    %1523 = vmatpush2.msra.mxu0 0.0
    %1524 = vmatprep.subr.mxu0 0.0
    %1525 = vmatpush2.msra.mxu0 0.0
    %1526 = vmatprep.subr.mxu0 0.0
    %1527 = vmatpush2.msra.mxu0 0.0
    %1528 = vmatprep.subr.mxu0 0.0
    %1529 = vmatpush2.msra.mxu0 0.0
    %1530 = vmatprep.subr.mxu0 0.0
    %1531 = vmatpush2.msra.mxu0 0.0
    %1532 = vmatprep.subr.mxu0 0.0
    %1533 = vmatpush2.msra.mxu0 0.0
    %1534 = vmatprep.mubr.f32.mxu0 0.0
    %1535 = vmatmul.mubr.f32.gmra.mxu0 %v790
    %v1536 = vpop.f32.mrf.mxu0
    %v1537 = vadd.f32 0.0, %v1536
    %v1538 = vpop.f32.mrf.mxu0
    %1539 = vmatprep.mubr.f32.mxu0 0.0
    %1540 = vmatmul.mubr.f32.gmra.mxu0 %v793
    %v1541 = vpop.f32.mrf.mxu0
    %v1542 = vadd.f32 0.0, %v1541
    %v1543 = vpop.f32.mrf.mxu0
    %1544 = vdwg.mxu0
    %1545 = vmatprep.subr.mxu0 0.0
    %1546 = vmatpush1.msra.mxu0 0.0
    %1547 = vmatprep.subr.mxu0 0.0
    %1548 = vmatpush1.msra.mxu0 0.0
    %1549 = vmatprep.subr.mxu0 0.0
    %1550 = vmatpush1.msra.mxu0 0.0
    %1551 = vmatprep.subr.mxu0 0.0
    %1552 = vmatpush1.msra.mxu0 0.0
    %1553 = vmatprep.subr.mxu0 0.0
    %1554 = vmatpush1.msra.mxu0 0.0
    %1555 = vmatprep.subr.mxu0 0.0
    %1556 = vmatpush1.msra.mxu0 0.0
    %1557 = vmatprep.subr.mxu0 0.0
    %1558 = vmatpush1.msra.mxu0 0.0
    %1559 = vmatprep.subr.mxu0 0.0
    %1560 = vmatpush1.msra.mxu0 0.0
    %1561 = vmatprep.subr.mxu0 0.0
    %1562 = vmatpush1.msra.mxu0 0.0
    %1563 = vmatprep.subr.mxu0 0.0
    %1564 = vmatpush1.msra.mxu0 0.0
    %1565 = vmatprep.subr.mxu0 0.0
    %1566 = vmatpush1.msra.mxu0 0.0
    %1567 = vmatprep.subr.mxu0 0.0
    %1568 = vmatpush1.msra.mxu0 0.0
    %1569 = vmatprep.subr.mxu0 0.0
    %1570 = vmatpush1.msra.mxu0 0.0
    %1571 = vmatprep.subr.mxu0 0.0
    %1572 = vmatpush1.msra.mxu0 0.0
    %1573 = vmatprep.subr.mxu0 0.0
    %1574 = vmatpush1.msra.mxu0 %v511
    %1575 = vmatprep.subr.mxu0 0.0
    %1576 = vmatpush1.msra.mxu0 %v506
    %1577 = vmatprep.subr.mxu0 0.0
    %1578 = vmatpush2.msra.mxu0 0.0
    %1579 = vmatprep.subr.mxu0 0.0
    %1580 = vmatpush2.msra.mxu0 0.0
    %1581 = vmatprep.subr.mxu0 0.0
    %1582 = vmatpush2.msra.mxu0 0.0
    %1583 = vmatprep.subr.mxu0 0.0
    %1584 = vmatpush2.msra.mxu0 0.0
    %1585 = vmatprep.subr.mxu0 0.0
    %1586 = vmatpush2.msra.mxu0 0.0
    %1587 = vmatprep.subr.mxu0 0.0
    %1588 = vmatpush2.msra.mxu0 0.0
    %1589 = vmatprep.subr.mxu0 0.0
    %1590 = vmatpush2.msra.mxu0 0.0
    %1591 = vmatprep.subr.mxu0 0.0
    %1592 = vmatpush2.msra.mxu0 0.0
    %1593 = vmatprep.subr.mxu0 0.0
    %1594 = vmatpush2.msra.mxu0 0.0
    %1595 = vmatprep.subr.mxu0 0.0
    %1596 = vmatpush2.msra.mxu0 0.0
    %1597 = vmatprep.subr.mxu0 0.0
    %1598 = vmatpush2.msra.mxu0 0.0
    %1599 = vmatprep.subr.mxu0 0.0
    %1600 = vmatpush2.msra.mxu0 0.0
    %1601 = vmatprep.subr.mxu0 0.0
    %1602 = vmatpush2.msra.mxu0 0.0
    %1603 = vmatprep.subr.mxu0 0.0
    %1604 = vmatpush2.msra.mxu0 0.0
    %1605 = vmatprep.subr.mxu0 0.0
    %1606 = vmatpush2.msra.mxu0 0.0
    %1607 = vmatprep.subr.mxu0 0.0
    %1608 = vmatpush2.msra.mxu0 0.0
    %1609 = vmatprep.mubr.f32.mxu0 0.0
    %1610 = vmatmul.mubr.f32.gmra.mxu0 %v790
    %v1611 = vpop.f32.mrf.mxu0
    %v1612 = vadd.f32 0.0, %v1611
    %v1613 = vpop.f32.mrf.mxu0
    %1614 = vmatprep.mubr.f32.mxu0 0.0
    %1615 = vmatmul.mubr.f32.gmra.mxu0 %v793
    %v1616 = vpop.f32.mrf.mxu0
    %v1617 = vadd.f32 0.0, %v1616
    %v1618 = vpop.f32.mrf.mxu0
    %1619 = vdwg.mxu0
    %1620 = vmatprep.subr.mxu0 0.0
    %1621 = vmatpush1.msra.mxu0 0.0
    %1622 = vmatprep.subr.mxu0 0.0
    %1623 = vmatpush1.msra.mxu0 0.0
    %1624 = vmatprep.subr.mxu0 0.0
    %1625 = vmatpush1.msra.mxu0 0.0
    %1626 = vmatprep.subr.mxu0 0.0
    %1627 = vmatpush1.msra.mxu0 0.0
    %1628 = vmatprep.subr.mxu0 0.0
    %1629 = vmatpush1.msra.mxu0 0.0
    %1630 = vmatprep.subr.mxu0 0.0
    %1631 = vmatpush1.msra.mxu0 0.0
    %1632 = vmatprep.subr.mxu0 0.0
    %1633 = vmatpush1.msra.mxu0 0.0
    %1634 = vmatprep.subr.mxu0 0.0
    %1635 = vmatpush1.msra.mxu0 0.0
    %1636 = vmatprep.subr.mxu0 0.0
    %1637 = vmatpush1.msra.mxu0 0.0
    %1638 = vmatprep.subr.mxu0 0.0
    %1639 = vmatpush1.msra.mxu0 0.0
    %1640 = vmatprep.subr.mxu0 0.0
    %1641 = vmatpush1.msra.mxu0 0.0
    %1642 = vmatprep.subr.mxu0 0.0
    %1643 = vmatpush1.msra.mxu0 0.0
    %1644 = vmatprep.subr.mxu0 0.0
    %1645 = vmatpush1.msra.mxu0 0.0
    %1646 = vmatprep.subr.mxu0 0.0
    %1647 = vmatpush1.msra.mxu0 0.0
    %1648 = vmatprep.subr.mxu0 0.0
    %1649 = vmatpush1.msra.mxu0 %v521
    %1650 = vmatprep.subr.mxu0 0.0
    %1651 = vmatpush1.msra.mxu0 %v516
    %1652 = vmatprep.subr.mxu0 0.0
    %1653 = vmatpush2.msra.mxu0 0.0
    %1654 = vmatprep.subr.mxu0 0.0
    %1655 = vmatpush2.msra.mxu0 0.0
    %1656 = vmatprep.subr.mxu0 0.0
    %1657 = vmatpush2.msra.mxu0 0.0
    %1658 = vmatprep.subr.mxu0 0.0
    %1659 = vmatpush2.msra.mxu0 0.0
    %1660 = vmatprep.subr.mxu0 0.0
    %1661 = vmatpush2.msra.mxu0 0.0
    %1662 = vmatprep.subr.mxu0 0.0
    %1663 = vmatpush2.msra.mxu0 0.0
    %1664 = vmatprep.subr.mxu0 0.0
    %1665 = vmatpush2.msra.mxu0 0.0
    %1666 = vmatprep.subr.mxu0 0.0
    %1667 = vmatpush2.msra.mxu0 0.0
    %1668 = vmatprep.subr.mxu0 0.0
    %1669 = vmatpush2.msra.mxu0 0.0
    %1670 = vmatprep.subr.mxu0 0.0
    %1671 = vmatpush2.msra.mxu0 0.0
    %1672 = vmatprep.subr.mxu0 0.0
    %1673 = vmatpush2.msra.mxu0 0.0
    %1674 = vmatprep.subr.mxu0 0.0
    %1675 = vmatpush2.msra.mxu0 0.0
    %1676 = vmatprep.subr.mxu0 0.0
    %1677 = vmatpush2.msra.mxu0 0.0
    %1678 = vmatprep.subr.mxu0 0.0
    %1679 = vmatpush2.msra.mxu0 0.0
    %1680 = vmatprep.subr.mxu0 0.0
    %1681 = vmatpush2.msra.mxu0 0.0
    %1682 = vmatprep.subr.mxu0 0.0
    %1683 = vmatpush2.msra.mxu0 0.0
    %1684 = vmatprep.mubr.f32.mxu0 0.0
    %1685 = vmatmul.mubr.f32.gmra.mxu0 %v790
    %v1686 = vpop.f32.mrf.mxu0
    %v1687 = vadd.f32 0.0, %v1686
    %v1688 = vpop.f32.mrf.mxu0
    %1689 = vmatprep.mubr.f32.mxu0 0.0
    %1690 = vmatmul.mubr.f32.gmra.mxu0 %v793
    %v1691 = vpop.f32.mrf.mxu0
    %v1692 = vadd.f32 0.0, %v1691
    %v1693 = vpop.f32.mrf.mxu0
    %1694 = vdwg.mxu0
    %1695 = vmatprep.subr.mxu0 0.0
    %1696 = vmatpush1.msra.mxu0 0.0
    %1697 = vmatprep.subr.mxu0 0.0
    %1698 = vmatpush1.msra.mxu0 0.0
    %1699 = vmatprep.subr.mxu0 0.0
    %1700 = vmatpush1.msra.mxu0 0.0
    %1701 = vmatprep.subr.mxu0 0.0
    %1702 = vmatpush1.msra.mxu0 0.0
    %1703 = vmatprep.subr.mxu0 0.0
    %1704 = vmatpush1.msra.mxu0 0.0
    %1705 = vmatprep.subr.mxu0 0.0
    %1706 = vmatpush1.msra.mxu0 0.0
    %1707 = vmatprep.subr.mxu0 0.0
    %1708 = vmatpush1.msra.mxu0 0.0
    %1709 = vmatprep.subr.mxu0 0.0
    %1710 = vmatpush1.msra.mxu0 0.0
    %1711 = vmatprep.subr.mxu0 0.0
    %1712 = vmatpush1.msra.mxu0 0.0
    %1713 = vmatprep.subr.mxu0 0.0
    %1714 = vmatpush1.msra.mxu0 0.0
    %1715 = vmatprep.subr.mxu0 0.0
    %1716 = vmatpush1.msra.mxu0 0.0
    %1717 = vmatprep.subr.mxu0 0.0
    %1718 = vmatpush1.msra.mxu0 0.0
    %1719 = vmatprep.subr.mxu0 0.0
    %1720 = vmatpush1.msra.mxu0 0.0
    %1721 = vmatprep.subr.mxu0 0.0
    %1722 = vmatpush1.msra.mxu0 0.0
    %1723 = vmatprep.subr.mxu0 0.0
    %1724 = vmatpush1.msra.mxu0 %v531
    %1725 = vmatprep.subr.mxu0 0.0
    %1726 = vmatpush1.msra.mxu0 %v526
    %1727 = vmatprep.subr.mxu0 0.0
    %1728 = vmatpush2.msra.mxu0 0.0
    %1729 = vmatprep.subr.mxu0 0.0
    %1730 = vmatpush2.msra.mxu0 0.0
    %1731 = vmatprep.subr.mxu0 0.0
    %1732 = vmatpush2.msra.mxu0 0.0
    %1733 = vmatprep.subr.mxu0 0.0
    %1734 = vmatpush2.msra.mxu0 0.0
    %1735 = vmatprep.subr.mxu0 0.0
    %1736 = vmatpush2.msra.mxu0 0.0
    %1737 = vmatprep.subr.mxu0 0.0
    %1738 = vmatpush2.msra.mxu0 0.0
    %1739 = vmatprep.subr.mxu0 0.0
    %1740 = vmatpush2.msra.mxu0 0.0
    %1741 = vmatprep.subr.mxu0 0.0
    %1742 = vmatpush2.msra.mxu0 0.0
    %1743 = vmatprep.subr.mxu0 0.0
    %1744 = vmatpush2.msra.mxu0 0.0
    %1745 = vmatprep.subr.mxu0 0.0
    %1746 = vmatpush2.msra.mxu0 0.0
    %1747 = vmatprep.subr.mxu0 0.0
    %1748 = vmatpush2.msra.mxu0 0.0
    %1749 = vmatprep.subr.mxu0 0.0
    %1750 = vmatpush2.msra.mxu0 0.0
    %1751 = vmatprep.subr.mxu0 0.0
    %1752 = vmatpush2.msra.mxu0 0.0
    %1753 = vmatprep.subr.mxu0 0.0
    %1754 = vmatpush2.msra.mxu0 0.0
    %1755 = vmatprep.subr.mxu0 0.0
    %1756 = vmatpush2.msra.mxu0 0.0
    %1757 = vmatprep.subr.mxu0 0.0
    %1758 = vmatpush2.msra.mxu0 0.0
    %1759 = vmatprep.mubr.f32.mxu0 0.0
    %1760 = vmatmul.mubr.f32.gmra.mxu0 %v790
    %v1761 = vpop.f32.mrf.mxu0
    %v1762 = vadd.f32 0.0, %v1761
    %v1763 = vpop.f32.mrf.mxu0
    %1764 = vmatprep.mubr.f32.mxu0 0.0
    %1765 = vmatmul.mubr.f32.gmra.mxu0 %v793
    %v1766 = vpop.f32.mrf.mxu0
    %v1767 = vadd.f32 0.0, %v1766
    %v1768 = vpop.f32.mrf.mxu0
    %1769 = vdwg.mxu0
    %1770 = vmatprep.subr.mxu0 0.0
    %1771 = vmatpush1.msra.mxu0 0.0
    %1772 = vmatprep.subr.mxu0 0.0
    %1773 = vmatpush1.msra.mxu0 0.0
    %1774 = vmatprep.subr.mxu0 0.0
    %1775 = vmatpush1.msra.mxu0 0.0
    %1776 = vmatprep.subr.mxu0 0.0
    %1777 = vmatpush1.msra.mxu0 0.0
    %1778 = vmatprep.subr.mxu0 0.0
    %1779 = vmatpush1.msra.mxu0 0.0
    %1780 = vmatprep.subr.mxu0 0.0
    %1781 = vmatpush1.msra.mxu0 0.0
    %1782 = vmatprep.subr.mxu0 0.0
    %1783 = vmatpush1.msra.mxu0 0.0
    %1784 = vmatprep.subr.mxu0 0.0
    %1785 = vmatpush1.msra.mxu0 0.0
    %1786 = vmatprep.subr.mxu0 0.0
    %1787 = vmatpush1.msra.mxu0 0.0
    %1788 = vmatprep.subr.mxu0 0.0
    %1789 = vmatpush1.msra.mxu0 0.0
    %1790 = vmatprep.subr.mxu0 0.0
    %1791 = vmatpush1.msra.mxu0 0.0
    %1792 = vmatprep.subr.mxu0 0.0
    %1793 = vmatpush1.msra.mxu0 0.0
    %1794 = vmatprep.subr.mxu0 0.0
    %1795 = vmatpush1.msra.mxu0 0.0
    %1796 = vmatprep.subr.mxu0 0.0
    %1797 = vmatpush1.msra.mxu0 0.0
    %1798 = vmatprep.subr.mxu0 0.0
    %1799 = vmatpush1.msra.mxu0 %v541
    %1800 = vmatprep.subr.mxu0 0.0
    %1801 = vmatpush1.msra.mxu0 %v536
    %1802 = vmatprep.subr.mxu0 0.0
    %1803 = vmatpush2.msra.mxu0 0.0
    %1804 = vmatprep.subr.mxu0 0.0
    %1805 = vmatpush2.msra.mxu0 0.0
    %1806 = vmatprep.subr.mxu0 0.0
    %1807 = vmatpush2.msra.mxu0 0.0
    %1808 = vmatprep.subr.mxu0 0.0
    %1809 = vmatpush2.msra.mxu0 0.0
    %1810 = vmatprep.subr.mxu0 0.0
    %1811 = vmatpush2.msra.mxu0 0.0
    %1812 = vmatprep.subr.mxu0 0.0
    %1813 = vmatpush2.msra.mxu0 0.0
    %1814 = vmatprep.subr.mxu0 0.0
    %1815 = vmatpush2.msra.mxu0 0.0
    %1816 = vmatprep.subr.mxu0 0.0
    %1817 = vmatpush2.msra.mxu0 0.0
    %1818 = vmatprep.subr.mxu0 0.0
    %1819 = vmatpush2.msra.mxu0 0.0
    %1820 = vmatprep.subr.mxu0 0.0
    %1821 = vmatpush2.msra.mxu0 0.0
    %1822 = vmatprep.subr.mxu0 0.0
    %1823 = vmatpush2.msra.mxu0 0.0
    %1824 = vmatprep.subr.mxu0 0.0
    %1825 = vmatpush2.msra.mxu0 0.0
    %1826 = vmatprep.subr.mxu0 0.0
    %1827 = vmatpush2.msra.mxu0 0.0
    %1828 = vmatprep.subr.mxu0 0.0
    %1829 = vmatpush2.msra.mxu0 0.0
    %1830 = vmatprep.subr.mxu0 0.0
    %1831 = vmatpush2.msra.mxu0 0.0
    %1832 = vmatprep.subr.mxu0 0.0
    %1833 = vmatpush2.msra.mxu0 0.0
    %1834 = vmatprep.mubr.f32.mxu0 0.0
    %1835 = vmatmul.mubr.f32.gmra.mxu0 %v790
    %v1836 = vpop.f32.mrf.mxu0
    %v1837 = vadd.f32 0.0, %v1836
    %v1838 = vpop.f32.mrf.mxu0
    %1839 = vmatprep.mubr.f32.mxu0 0.0
    %1840 = vmatmul.mubr.f32.gmra.mxu0 %v793
    %v1841 = vpop.f32.mrf.mxu0
    %v1842 = vadd.f32 0.0, %v1841
    %v1843 = vpop.f32.mrf.mxu0
    %1844 = vdwg.mxu0
    %1845 = vmatprep.subr.mxu0 0.0
    %1846 = vmatpush1.msra.mxu0 0.0
    %1847 = vmatprep.subr.mxu0 0.0
    %1848 = vmatpush1.msra.mxu0 0.0
    %1849 = vmatprep.subr.mxu0 0.0
    %1850 = vmatpush1.msra.mxu0 0.0
    %1851 = vmatprep.subr.mxu0 0.0
    %1852 = vmatpush1.msra.mxu0 0.0
    %1853 = vmatprep.subr.mxu0 0.0
    %1854 = vmatpush1.msra.mxu0 0.0
    %1855 = vmatprep.subr.mxu0 0.0
    %1856 = vmatpush1.msra.mxu0 0.0
    %1857 = vmatprep.subr.mxu0 0.0
    %1858 = vmatpush1.msra.mxu0 0.0
    %1859 = vmatprep.subr.mxu0 0.0
    %1860 = vmatpush1.msra.mxu0 0.0
    %1861 = vmatprep.subr.mxu0 0.0
    %1862 = vmatpush1.msra.mxu0 0.0
    %1863 = vmatprep.subr.mxu0 0.0
    %1864 = vmatpush1.msra.mxu0 0.0
    %1865 = vmatprep.subr.mxu0 0.0
    %1866 = vmatpush1.msra.mxu0 0.0
    %1867 = vmatprep.subr.mxu0 0.0
    %1868 = vmatpush1.msra.mxu0 0.0
    %1869 = vmatprep.subr.mxu0 0.0
    %1870 = vmatpush1.msra.mxu0 0.0
    %1871 = vmatprep.subr.mxu0 0.0
    %1872 = vmatpush1.msra.mxu0 0.0
    %1873 = vmatprep.subr.mxu0 0.0
    %1874 = vmatpush1.msra.mxu0 %v551
    %1875 = vmatprep.subr.mxu0 0.0
    %1876 = vmatpush1.msra.mxu0 %v546
    %1877 = vmatprep.subr.mxu0 0.0
    %1878 = vmatpush2.msra.mxu0 0.0
    %1879 = vmatprep.subr.mxu0 0.0
    %1880 = vmatpush2.msra.mxu0 0.0
    %1881 = vmatprep.subr.mxu0 0.0
    %1882 = vmatpush2.msra.mxu0 0.0
    %1883 = vmatprep.subr.mxu0 0.0
    %1884 = vmatpush2.msra.mxu0 0.0
    %1885 = vmatprep.subr.mxu0 0.0
    %1886 = vmatpush2.msra.mxu0 0.0
    %1887 = vmatprep.subr.mxu0 0.0
    %1888 = vmatpush2.msra.mxu0 0.0
    %1889 = vmatprep.subr.mxu0 0.0
    %1890 = vmatpush2.msra.mxu0 0.0
    %1891 = vmatprep.subr.mxu0 0.0
    %1892 = vmatpush2.msra.mxu0 0.0
    %1893 = vmatprep.subr.mxu0 0.0
    %1894 = vmatpush2.msra.mxu0 0.0
    %1895 = vmatprep.subr.mxu0 0.0
    %1896 = vmatpush2.msra.mxu0 0.0
    %1897 = vmatprep.subr.mxu0 0.0
    %1898 = vmatpush2.msra.mxu0 0.0
    %1899 = vmatprep.subr.mxu0 0.0
    %1900 = vmatpush2.msra.mxu0 0.0
    %1901 = vmatprep.subr.mxu0 0.0
    %1902 = vmatpush2.msra.mxu0 0.0
    %1903 = vmatprep.subr.mxu0 0.0
    %1904 = vmatpush2.msra.mxu0 0.0
    %1905 = vmatprep.subr.mxu0 0.0
    %1906 = vmatpush2.msra.mxu0 0.0
    %1907 = vmatprep.subr.mxu0 0.0
    %1908 = vmatpush2.msra.mxu0 0.0
    %1909 = vmatprep.mubr.f32.mxu0 0.0
    %1910 = vmatmul.mubr.f32.gmra.mxu0 %v790
    %v1911 = vpop.f32.mrf.mxu0
    %v1912 = vadd.f32 0.0, %v1911
    %v1913 = vpop.f32.mrf.mxu0
    %1914 = vmatprep.mubr.f32.mxu0 0.0
    %1915 = vmatmul.mubr.f32.gmra.mxu0 %v793
    %v1916 = vpop.f32.mrf.mxu0
    %v1917 = vadd.f32 0.0, %v1916
    %v1918 = vpop.f32.mrf.mxu0
    %1919 = vdwg.mxu0
    %1920 = vmatprep.subr.mxu0 0.0
    %1921 = vmatpush1.msra.mxu0 0.0
    %1922 = vmatprep.subr.mxu0 0.0
    %1923 = vmatpush1.msra.mxu0 0.0
    %1924 = vmatprep.subr.mxu0 0.0
    %1925 = vmatpush1.msra.mxu0 0.0
    %1926 = vmatprep.subr.mxu0 0.0
    %1927 = vmatpush1.msra.mxu0 0.0
    %1928 = vmatprep.subr.mxu0 0.0
    %1929 = vmatpush1.msra.mxu0 0.0
    %1930 = vmatprep.subr.mxu0 0.0
    %1931 = vmatpush1.msra.mxu0 0.0
    %1932 = vmatprep.subr.mxu0 0.0
    %1933 = vmatpush1.msra.mxu0 0.0
    %1934 = vmatprep.subr.mxu0 0.0
    %1935 = vmatpush1.msra.mxu0 0.0
    %1936 = vmatprep.subr.mxu0 0.0
    %1937 = vmatpush1.msra.mxu0 0.0
    %1938 = vmatprep.subr.mxu0 0.0
    %1939 = vmatpush1.msra.mxu0 0.0
    %1940 = vmatprep.subr.mxu0 0.0
    %1941 = vmatpush1.msra.mxu0 0.0
    %1942 = vmatprep.subr.mxu0 0.0
    %1943 = vmatpush1.msra.mxu0 0.0
    %1944 = vmatprep.subr.mxu0 0.0
    %1945 = vmatpush1.msra.mxu0 0.0
    %1946 = vmatprep.subr.mxu0 0.0
    %1947 = vmatpush1.msra.mxu0 0.0
    %1948 = vmatprep.subr.mxu0 0.0
    %1949 = vmatpush1.msra.mxu0 %v561
    %1950 = vmatprep.subr.mxu0 0.0
    %1951 = vmatpush1.msra.mxu0 %v556
    %1952 = vmatprep.subr.mxu0 0.0
    %1953 = vmatpush2.msra.mxu0 0.0
    %1954 = vmatprep.subr.mxu0 0.0
    %1955 = vmatpush2.msra.mxu0 0.0
    %1956 = vmatprep.subr.mxu0 0.0
    %1957 = vmatpush2.msra.mxu0 0.0
    %1958 = vmatprep.subr.mxu0 0.0
    %1959 = vmatpush2.msra.mxu0 0.0
    %1960 = vmatprep.subr.mxu0 0.0
    %1961 = vmatpush2.msra.mxu0 0.0
    %1962 = vmatprep.subr.mxu0 0.0
    %1963 = vmatpush2.msra.mxu0 0.0
    %1964 = vmatprep.subr.mxu0 0.0
    %1965 = vmatpush2.msra.mxu0 0.0
    %1966 = vmatprep.subr.mxu0 0.0
    %1967 = vmatpush2.msra.mxu0 0.0
    %1968 = vmatprep.subr.mxu0 0.0
    %1969 = vmatpush2.msra.mxu0 0.0
    %1970 = vmatprep.subr.mxu0 0.0
    %1971 = vmatpush2.msra.mxu0 0.0
    %1972 = vmatprep.subr.mxu0 0.0
    %1973 = vmatpush2.msra.mxu0 0.0
    %1974 = vmatprep.subr.mxu0 0.0
    %1975 = vmatpush2.msra.mxu0 0.0
    %1976 = vmatprep.subr.mxu0 0.0
    %1977 = vmatpush2.msra.mxu0 0.0
    %1978 = vmatprep.subr.mxu0 0.0
    %1979 = vmatpush2.msra.mxu0 0.0
    %1980 = vmatprep.subr.mxu0 0.0
    %1981 = vmatpush2.msra.mxu0 0.0
    %1982 = vmatprep.subr.mxu0 0.0
    %1983 = vmatpush2.msra.mxu0 0.0
    %1984 = vmatprep.mubr.f32.mxu0 0.0
    %1985 = vmatmul.mubr.f32.gmra.mxu0 %v790
    %v1986 = vpop.f32.mrf.mxu0
    %v1987 = vadd.f32 0.0, %v1986
    %v1988 = vpop.f32.mrf.mxu0
    %1989 = vmatprep.mubr.f32.mxu0 0.0
    %1990 = vmatmul.mubr.f32.gmra.mxu0 %v793
    %v1991 = vpop.f32.mrf.mxu0
    %v1992 = vadd.f32 0.0, %v1991
    %v1993 = vpop.f32.mrf.mxu0
    %1994 = vdwg.mxu0
    %v1996 = vsel %vm242, %v110, 0
    %v1999 = vsel %vm242, %v111, 0
    %2001 = vmatprep.subr.mxu0 0.0
    %2002 = vmatpush1.msra.mxu0 0.0
    %2003 = vmatprep.subr.mxu0 0.0
    %2004 = vmatpush1.msra.mxu0 0.0
    %2005 = vmatprep.subr.mxu0 0.0
    %2006 = vmatpush1.msra.mxu0 0.0
    %2007 = vmatprep.subr.mxu0 0.0
    %2008 = vmatpush1.msra.mxu0 0.0
    %2009 = vmatprep.subr.mxu0 0.0
    %2010 = vmatpush1.msra.mxu0 0.0
    %2011 = vmatprep.subr.mxu0 0.0
    %2012 = vmatpush1.msra.mxu0 0.0
    %2013 = vmatprep.subr.mxu0 0.0
    %2014 = vmatpush1.msra.mxu0 0.0
    %2015 = vmatprep.subr.mxu0 0.0
    %2016 = vmatpush1.msra.mxu0 0.0
    %2017 = vmatprep.subr.mxu0 0.0
    %2018 = vmatpush1.msra.mxu0 0.0
    %2019 = vmatprep.subr.mxu0 0.0
    %2020 = vmatpush1.msra.mxu0 0.0
    %2021 = vmatprep.subr.mxu0 0.0
    %2022 = vmatpush1.msra.mxu0 0.0
    %2023 = vmatprep.subr.mxu0 0.0
    %2024 = vmatpush1.msra.mxu0 0.0
    %2025 = vmatprep.subr.mxu0 0.0
    %2026 = vmatpush1.msra.mxu0 0.0
    %2027 = vmatprep.subr.mxu0 0.0
    %2028 = vmatpush1.msra.mxu0 0.0
    %2029 = vmatprep.subr.mxu0 0.0
    %2030 = vmatpush1.msra.mxu0 %v636
    %2031 = vmatprep.subr.mxu0 0.0
    %2032 = vmatpush1.msra.mxu0 %v631
    %2033 = vmatprep.subr.mxu0 0.0
    %2034 = vmatpush2.msra.mxu0 0.0
    %2035 = vmatprep.subr.mxu0 0.0
    %2036 = vmatpush2.msra.mxu0 0.0
    %2037 = vmatprep.subr.mxu0 0.0
    %2038 = vmatpush2.msra.mxu0 0.0
    %2039 = vmatprep.subr.mxu0 0.0
    %2040 = vmatpush2.msra.mxu0 0.0
    %2041 = vmatprep.subr.mxu0 0.0
    %2042 = vmatpush2.msra.mxu0 0.0
    %2043 = vmatprep.subr.mxu0 0.0
    %2044 = vmatpush2.msra.mxu0 0.0
    %2045 = vmatprep.subr.mxu0 0.0
    %2046 = vmatpush2.msra.mxu0 0.0
    %2047 = vmatprep.subr.mxu0 0.0
    %2048 = vmatpush2.msra.mxu0 0.0
    %2049 = vmatprep.subr.mxu0 0.0
    %2050 = vmatpush2.msra.mxu0 0.0
    %2051 = vmatprep.subr.mxu0 0.0
    %2052 = vmatpush2.msra.mxu0 0.0
    %2053 = vmatprep.subr.mxu0 0.0
    %2054 = vmatpush2.msra.mxu0 0.0
    %2055 = vmatprep.subr.mxu0 0.0
    %2056 = vmatpush2.msra.mxu0 0.0
    %2057 = vmatprep.subr.mxu0 0.0
    %2058 = vmatpush2.msra.mxu0 0.0
    %2059 = vmatprep.subr.mxu0 0.0
    %2060 = vmatpush2.msra.mxu0 0.0
    %2061 = vmatprep.subr.mxu0 0.0
    %2062 = vmatpush2.msra.mxu0 0.0
    %2063 = vmatprep.subr.mxu0 0.0
    %2064 = vmatpush2.msra.mxu0 0.0
    %2065 = vmatprep.mubr.f32.mxu0 0.0
    %2066 = vmatmul.mubr.f32.gmra.mxu0 %v1996
    %v2067 = vpop.f32.mrf.mxu0
    %v2068 = vadd.f32 0.0, %v2067
    %v2069 = vpop.f32.mrf.mxu0
    %2070 = vmatprep.mubr.f32.mxu0 0.0
    %2071 = vmatmul.mubr.f32.gmra.mxu0 %v1999
    %v2072 = vpop.f32.mrf.mxu0
    %v2073 = vadd.f32 0.0, %v2072
    %v2074 = vpop.f32.mrf.mxu0
    %2075 = vdwg.mxu0
    %2076 = vmatprep.subr.mxu0 0.0
    %2077 = vmatpush1.msra.mxu0 0.0
    %2078 = vmatprep.subr.mxu0 0.0
    %2079 = vmatpush1.msra.mxu0 0.0
    %2080 = vmatprep.subr.mxu0 0.0
    %2081 = vmatpush1.msra.mxu0 0.0
    %2082 = vmatprep.subr.mxu0 0.0
    %2083 = vmatpush1.msra.mxu0 0.0
    %2084 = vmatprep.subr.mxu0 0.0
    %2085 = vmatpush1.msra.mxu0 0.0
    %2086 = vmatprep.subr.mxu0 0.0
    %2087 = vmatpush1.msra.mxu0 0.0
    %2088 = vmatprep.subr.mxu0 0.0
    %2089 = vmatpush1.msra.mxu0 0.0
    %2090 = vmatprep.subr.mxu0 0.0
    %2091 = vmatpush1.msra.mxu0 0.0
    %2092 = vmatprep.subr.mxu0 0.0
    %2093 = vmatpush1.msra.mxu0 0.0
    %2094 = vmatprep.subr.mxu0 0.0
    %2095 = vmatpush1.msra.mxu0 0.0
    %2096 = vmatprep.subr.mxu0 0.0
    %2097 = vmatpush1.msra.mxu0 0.0
    %2098 = vmatprep.subr.mxu0 0.0
    %2099 = vmatpush1.msra.mxu0 0.0
    %2100 = vmatprep.subr.mxu0 0.0
    %2101 = vmatpush1.msra.mxu0 0.0
    %2102 = vmatprep.subr.mxu0 0.0
    %2103 = vmatpush1.msra.mxu0 0.0
    %2104 = vmatprep.subr.mxu0 0.0
    %2105 = vmatpush1.msra.mxu0 %v646
    %2106 = vmatprep.subr.mxu0 0.0
    %2107 = vmatpush1.msra.mxu0 %v641
    %2108 = vmatprep.subr.mxu0 0.0
    %2109 = vmatpush2.msra.mxu0 0.0
    %2110 = vmatprep.subr.mxu0 0.0
    %2111 = vmatpush2.msra.mxu0 0.0
    %2112 = vmatprep.subr.mxu0 0.0
    %2113 = vmatpush2.msra.mxu0 0.0
    %2114 = vmatprep.subr.mxu0 0.0
    %2115 = vmatpush2.msra.mxu0 0.0
    %2116 = vmatprep.subr.mxu0 0.0
    %2117 = vmatpush2.msra.mxu0 0.0
    %2118 = vmatprep.subr.mxu0 0.0
    %2119 = vmatpush2.msra.mxu0 0.0
    %2120 = vmatprep.subr.mxu0 0.0
    %2121 = vmatpush2.msra.mxu0 0.0
    %2122 = vmatprep.subr.mxu0 0.0
    %2123 = vmatpush2.msra.mxu0 0.0
    %2124 = vmatprep.subr.mxu0 0.0
    %2125 = vmatpush2.msra.mxu0 0.0
    %2126 = vmatprep.subr.mxu0 0.0
    %2127 = vmatpush2.msra.mxu0 0.0
    %2128 = vmatprep.subr.mxu0 0.0
    %2129 = vmatpush2.msra.mxu0 0.0
    %2130 = vmatprep.subr.mxu0 0.0
    %2131 = vmatpush2.msra.mxu0 0.0
    %2132 = vmatprep.subr.mxu0 0.0
    %2133 = vmatpush2.msra.mxu0 0.0
    %2134 = vmatprep.subr.mxu0 0.0
    %2135 = vmatpush2.msra.mxu0 0.0
    %2136 = vmatprep.subr.mxu0 0.0
    %2137 = vmatpush2.msra.mxu0 0.0
    %2138 = vmatprep.subr.mxu0 0.0
    %2139 = vmatpush2.msra.mxu0 0.0
    %2140 = vmatprep.mubr.f32.mxu0 0.0
    %2141 = vmatmul.mubr.f32.gmra.mxu0 %v1996
    %v2142 = vpop.f32.mrf.mxu0
    %v2143 = vadd.f32 0.0, %v2142
    %v2144 = vpop.f32.mrf.mxu0
    %2145 = vmatprep.mubr.f32.mxu0 0.0
    %2146 = vmatmul.mubr.f32.gmra.mxu0 %v1999
    %v2147 = vpop.f32.mrf.mxu0
    %v2148 = vadd.f32 0.0, %v2147
    %v2149 = vpop.f32.mrf.mxu0
    %2150 = vdwg.mxu0
    %2151 = vmatprep.subr.mxu0 0.0
    %2152 = vmatpush1.msra.mxu0 0.0
    %2153 = vmatprep.subr.mxu0 0.0
    %2154 = vmatpush1.msra.mxu0 0.0
    %2155 = vmatprep.subr.mxu0 0.0
    %2156 = vmatpush1.msra.mxu0 0.0
    %2157 = vmatprep.subr.mxu0 0.0
    %2158 = vmatpush1.msra.mxu0 0.0
    %2159 = vmatprep.subr.mxu0 0.0
    %2160 = vmatpush1.msra.mxu0 0.0
    %2161 = vmatprep.subr.mxu0 0.0
    %2162 = vmatpush1.msra.mxu0 0.0
    %2163 = vmatprep.subr.mxu0 0.0
    %2164 = vmatpush1.msra.mxu0 0.0
    %2165 = vmatprep.subr.mxu0 0.0
    %2166 = vmatpush1.msra.mxu0 0.0
    %2167 = vmatprep.subr.mxu0 0.0
    %2168 = vmatpush1.msra.mxu0 0.0
    %2169 = vmatprep.subr.mxu0 0.0
    %2170 = vmatpush1.msra.mxu0 0.0
    %2171 = vmatprep.subr.mxu0 0.0
    %2172 = vmatpush1.msra.mxu0 0.0
    %2173 = vmatprep.subr.mxu0 0.0
    %2174 = vmatpush1.msra.mxu0 0.0
    %2175 = vmatprep.subr.mxu0 0.0
    %2176 = vmatpush1.msra.mxu0 0.0
    %2177 = vmatprep.subr.mxu0 0.0
    %2178 = vmatpush1.msra.mxu0 0.0
    %2179 = vmatprep.subr.mxu0 0.0
    %2180 = vmatpush1.msra.mxu0 %v656
    %2181 = vmatprep.subr.mxu0 0.0
    %2182 = vmatpush1.msra.mxu0 %v651
    %2183 = vmatprep.subr.mxu0 0.0
    %2184 = vmatpush2.msra.mxu0 0.0
    %2185 = vmatprep.subr.mxu0 0.0
    %2186 = vmatpush2.msra.mxu0 0.0
    %2187 = vmatprep.subr.mxu0 0.0
    %2188 = vmatpush2.msra.mxu0 0.0
    %2189 = vmatprep.subr.mxu0 0.0
    %2190 = vmatpush2.msra.mxu0 0.0
    %2191 = vmatprep.subr.mxu0 0.0
    %2192 = vmatpush2.msra.mxu0 0.0
    %2193 = vmatprep.subr.mxu0 0.0
    %2194 = vmatpush2.msra.mxu0 0.0
    %2195 = vmatprep.subr.mxu0 0.0
    %2196 = vmatpush2.msra.mxu0 0.0
    %2197 = vmatprep.subr.mxu0 0.0
    %2198 = vmatpush2.msra.mxu0 0.0
    %2199 = vmatprep.subr.mxu0 0.0
    %2200 = vmatpush2.msra.mxu0 0.0
    %2201 = vmatprep.subr.mxu0 0.0
    %2202 = vmatpush2.msra.mxu0 0.0
    %2203 = vmatprep.subr.mxu0 0.0
    %2204 = vmatpush2.msra.mxu0 0.0
    %2205 = vmatprep.subr.mxu0 0.0
    %2206 = vmatpush2.msra.mxu0 0.0
    %2207 = vmatprep.subr.mxu0 0.0
    %2208 = vmatpush2.msra.mxu0 0.0
    %2209 = vmatprep.subr.mxu0 0.0
    %2210 = vmatpush2.msra.mxu0 0.0
    %2211 = vmatprep.subr.mxu0 0.0
    %2212 = vmatpush2.msra.mxu0 0.0
    %2213 = vmatprep.subr.mxu0 0.0
    %2214 = vmatpush2.msra.mxu0 0.0
    %2215 = vmatprep.mubr.f32.mxu0 0.0
    %2216 = vmatmul.mubr.f32.gmra.mxu0 %v1996
    %v2217 = vpop.f32.mrf.mxu0
    %v2218 = vadd.f32 0.0, %v2217
    %v2219 = vpop.f32.mrf.mxu0
    %2220 = vmatprep.mubr.f32.mxu0 0.0
    %2221 = vmatmul.mubr.f32.gmra.mxu0 %v1999
    %v2222 = vpop.f32.mrf.mxu0
    %v2223 = vadd.f32 0.0, %v2222
    %v2224 = vpop.f32.mrf.mxu0
    %2225 = vdwg.mxu0
    %2226 = vmatprep.subr.mxu0 0.0
    %2227 = vmatpush1.msra.mxu0 0.0
    %2228 = vmatprep.subr.mxu0 0.0
    %2229 = vmatpush1.msra.mxu0 0.0
    %2230 = vmatprep.subr.mxu0 0.0
    %2231 = vmatpush1.msra.mxu0 0.0
    %2232 = vmatprep.subr.mxu0 0.0
    %2233 = vmatpush1.msra.mxu0 0.0
    %2234 = vmatprep.subr.mxu0 0.0
    %2235 = vmatpush1.msra.mxu0 0.0
    %2236 = vmatprep.subr.mxu0 0.0
    %2237 = vmatpush1.msra.mxu0 0.0
    %2238 = vmatprep.subr.mxu0 0.0
    %2239 = vmatpush1.msra.mxu0 0.0
    %2240 = vmatprep.subr.mxu0 0.0
    %2241 = vmatpush1.msra.mxu0 0.0
    %2242 = vmatprep.subr.mxu0 0.0
    %2243 = vmatpush1.msra.mxu0 0.0
    %2244 = vmatprep.subr.mxu0 0.0
    %2245 = vmatpush1.msra.mxu0 0.0
    %2246 = vmatprep.subr.mxu0 0.0
    %2247 = vmatpush1.msra.mxu0 0.0
    %2248 = vmatprep.subr.mxu0 0.0
    %2249 = vmatpush1.msra.mxu0 0.0
    %2250 = vmatprep.subr.mxu0 0.0
    %2251 = vmatpush1.msra.mxu0 0.0
    %2252 = vmatprep.subr.mxu0 0.0
    %2253 = vmatpush1.msra.mxu0 0.0
    %2254 = vmatprep.subr.mxu0 0.0
    %2255 = vmatpush1.msra.mxu0 %v666
    %2256 = vmatprep.subr.mxu0 0.0
    %2257 = vmatpush1.msra.mxu0 %v661
    %2258 = vmatprep.subr.mxu0 0.0
    %2259 = vmatpush2.msra.mxu0 0.0
    %2260 = vmatprep.subr.mxu0 0.0
    %2261 = vmatpush2.msra.mxu0 0.0
    %2262 = vmatprep.subr.mxu0 0.0
    %2263 = vmatpush2.msra.mxu0 0.0
    %2264 = vmatprep.subr.mxu0 0.0
    %2265 = vmatpush2.msra.mxu0 0.0
    %2266 = vmatprep.subr.mxu0 0.0
    %2267 = vmatpush2.msra.mxu0 0.0
    %2268 = vmatprep.subr.mxu0 0.0
    %2269 = vmatpush2.msra.mxu0 0.0
    %2270 = vmatprep.subr.mxu0 0.0
    %2271 = vmatpush2.msra.mxu0 0.0
    %2272 = vmatprep.subr.mxu0 0.0
    %2273 = vmatpush2.msra.mxu0 0.0
    %2274 = vmatprep.subr.mxu0 0.0
    %2275 = vmatpush2.msra.mxu0 0.0
    %2276 = vmatprep.subr.mxu0 0.0
    %2277 = vmatpush2.msra.mxu0 0.0
    %2278 = vmatprep.subr.mxu0 0.0
    %2279 = vmatpush2.msra.mxu0 0.0
    %2280 = vmatprep.subr.mxu0 0.0
    %2281 = vmatpush2.msra.mxu0 0.0
    %2282 = vmatprep.subr.mxu0 0.0
    %2283 = vmatpush2.msra.mxu0 0.0
    %2284 = vmatprep.subr.mxu0 0.0
    %2285 = vmatpush2.msra.mxu0 0.0
    %2286 = vmatprep.subr.mxu0 0.0
    %2287 = vmatpush2.msra.mxu0 0.0
    %2288 = vmatprep.subr.mxu0 0.0
    %2289 = vmatpush2.msra.mxu0 0.0
    %2290 = vmatprep.mubr.f32.mxu0 0.0
    %2291 = vmatmul.mubr.f32.gmra.mxu0 %v1996
    %v2292 = vpop.f32.mrf.mxu0
    %v2293 = vadd.f32 0.0, %v2292
    %v2294 = vpop.f32.mrf.mxu0
    %2295 = vmatprep.mubr.f32.mxu0 0.0
    %2296 = vmatmul.mubr.f32.gmra.mxu0 %v1999
    %v2297 = vpop.f32.mrf.mxu0
    %v2298 = vadd.f32 0.0, %v2297
    %v2299 = vpop.f32.mrf.mxu0
    %2300 = vdwg.mxu0
    %2301 = vmatprep.subr.mxu0 0.0
    %2302 = vmatpush1.msra.mxu0 0.0
    %2303 = vmatprep.subr.mxu0 0.0
    %2304 = vmatpush1.msra.mxu0 0.0
    %2305 = vmatprep.subr.mxu0 0.0
    %2306 = vmatpush1.msra.mxu0 0.0
    %2307 = vmatprep.subr.mxu0 0.0
    %2308 = vmatpush1.msra.mxu0 0.0
    %2309 = vmatprep.subr.mxu0 0.0
    %2310 = vmatpush1.msra.mxu0 0.0
    %2311 = vmatprep.subr.mxu0 0.0
    %2312 = vmatpush1.msra.mxu0 0.0
    %2313 = vmatprep.subr.mxu0 0.0
    %2314 = vmatpush1.msra.mxu0 0.0
    %2315 = vmatprep.subr.mxu0 0.0
    %2316 = vmatpush1.msra.mxu0 0.0
    %2317 = vmatprep.subr.mxu0 0.0
    %2318 = vmatpush1.msra.mxu0 0.0
    %2319 = vmatprep.subr.mxu0 0.0
    %2320 = vmatpush1.msra.mxu0 0.0
    %2321 = vmatprep.subr.mxu0 0.0
    %2322 = vmatpush1.msra.mxu0 0.0
    %2323 = vmatprep.subr.mxu0 0.0
    %2324 = vmatpush1.msra.mxu0 0.0
    %2325 = vmatprep.subr.mxu0 0.0
    %2326 = vmatpush1.msra.mxu0 0.0
    %2327 = vmatprep.subr.mxu0 0.0
    %2328 = vmatpush1.msra.mxu0 0.0
    %2329 = vmatprep.subr.mxu0 0.0
    %2330 = vmatpush1.msra.mxu0 %v676
    %2331 = vmatprep.subr.mxu0 0.0
    %2332 = vmatpush1.msra.mxu0 %v671
    %2333 = vmatprep.subr.mxu0 0.0
    %2334 = vmatpush2.msra.mxu0 0.0
    %2335 = vmatprep.subr.mxu0 0.0
    %2336 = vmatpush2.msra.mxu0 0.0
    %2337 = vmatprep.subr.mxu0 0.0
    %2338 = vmatpush2.msra.mxu0 0.0
    %2339 = vmatprep.subr.mxu0 0.0
    %2340 = vmatpush2.msra.mxu0 0.0
    %2341 = vmatprep.subr.mxu0 0.0
    %2342 = vmatpush2.msra.mxu0 0.0
    %2343 = vmatprep.subr.mxu0 0.0
    %2344 = vmatpush2.msra.mxu0 0.0
    %2345 = vmatprep.subr.mxu0 0.0
    %2346 = vmatpush2.msra.mxu0 0.0
    %2347 = vmatprep.subr.mxu0 0.0
    %2348 = vmatpush2.msra.mxu0 0.0
    %2349 = vmatprep.subr.mxu0 0.0
    %2350 = vmatpush2.msra.mxu0 0.0
    %2351 = vmatprep.subr.mxu0 0.0
    %2352 = vmatpush2.msra.mxu0 0.0
    %2353 = vmatprep.subr.mxu0 0.0
    %2354 = vmatpush2.msra.mxu0 0.0
    %2355 = vmatprep.subr.mxu0 0.0
    %2356 = vmatpush2.msra.mxu0 0.0
    %2357 = vmatprep.subr.mxu0 0.0
    %2358 = vmatpush2.msra.mxu0 0.0
    %2359 = vmatprep.subr.mxu0 0.0
    %2360 = vmatpush2.msra.mxu0 0.0
    %2361 = vmatprep.subr.mxu0 0.0
    %2362 = vmatpush2.msra.mxu0 0.0
    %2363 = vmatprep.subr.mxu0 0.0
    %2364 = vmatpush2.msra.mxu0 0.0
    %2365 = vmatprep.mubr.f32.mxu0 0.0
    %2366 = vmatmul.mubr.f32.gmra.mxu0 %v1996
    %v2367 = vpop.f32.mrf.mxu0
    %v2368 = vadd.f32 0.0, %v2367
    %v2369 = vpop.f32.mrf.mxu0
    %2370 = vmatprep.mubr.f32.mxu0 0.0
    %2371 = vmatmul.mubr.f32.gmra.mxu0 %v1999
    %v2372 = vpop.f32.mrf.mxu0
    %v2373 = vadd.f32 0.0, %v2372
    %v2374 = vpop.f32.mrf.mxu0
    %2375 = vdwg.mxu0
    %2376 = vmatprep.subr.mxu0 0.0
    %2377 = vmatpush1.msra.mxu0 0.0
    %2378 = vmatprep.subr.mxu0 0.0
    %2379 = vmatpush1.msra.mxu0 0.0
    %2380 = vmatprep.subr.mxu0 0.0
    %2381 = vmatpush1.msra.mxu0 0.0
    %2382 = vmatprep.subr.mxu0 0.0
    %2383 = vmatpush1.msra.mxu0 0.0
    %2384 = vmatprep.subr.mxu0 0.0
    %2385 = vmatpush1.msra.mxu0 0.0
    %2386 = vmatprep.subr.mxu0 0.0
    %2387 = vmatpush1.msra.mxu0 0.0
    %2388 = vmatprep.subr.mxu0 0.0
    %2389 = vmatpush1.msra.mxu0 0.0
    %2390 = vmatprep.subr.mxu0 0.0
    %2391 = vmatpush1.msra.mxu0 0.0
    %2392 = vmatprep.subr.mxu0 0.0
    %2393 = vmatpush1.msra.mxu0 0.0
    %2394 = vmatprep.subr.mxu0 0.0
    %2395 = vmatpush1.msra.mxu0 0.0
    %2396 = vmatprep.subr.mxu0 0.0
    %2397 = vmatpush1.msra.mxu0 0.0
    %2398 = vmatprep.subr.mxu0 0.0
    %2399 = vmatpush1.msra.mxu0 0.0
    %2400 = vmatprep.subr.mxu0 0.0
    %2401 = vmatpush1.msra.mxu0 0.0
    %2402 = vmatprep.subr.mxu0 0.0
    %2403 = vmatpush1.msra.mxu0 0.0
    %2404 = vmatprep.subr.mxu0 0.0
    %2405 = vmatpush1.msra.mxu0 %v686
    %2406 = vmatprep.subr.mxu0 0.0
    %2407 = vmatpush1.msra.mxu0 %v681
    %2408 = vmatprep.subr.mxu0 0.0
    %2409 = vmatpush2.msra.mxu0 0.0
    %2410 = vmatprep.subr.mxu0 0.0
    %2411 = vmatpush2.msra.mxu0 0.0
    %2412 = vmatprep.subr.mxu0 0.0
    %2413 = vmatpush2.msra.mxu0 0.0
    %2414 = vmatprep.subr.mxu0 0.0
    %2415 = vmatpush2.msra.mxu0 0.0
    %2416 = vmatprep.subr.mxu0 0.0
    %2417 = vmatpush2.msra.mxu0 0.0
    %2418 = vmatprep.subr.mxu0 0.0
    %2419 = vmatpush2.msra.mxu0 0.0
    %2420 = vmatprep.subr.mxu0 0.0
    %2421 = vmatpush2.msra.mxu0 0.0
    %2422 = vmatprep.subr.mxu0 0.0
    %2423 = vmatpush2.msra.mxu0 0.0
    %2424 = vmatprep.subr.mxu0 0.0
    %2425 = vmatpush2.msra.mxu0 0.0
    %2426 = vmatprep.subr.mxu0 0.0
    %2427 = vmatpush2.msra.mxu0 0.0
    %2428 = vmatprep.subr.mxu0 0.0
    %2429 = vmatpush2.msra.mxu0 0.0
    %2430 = vmatprep.subr.mxu0 0.0
    %2431 = vmatpush2.msra.mxu0 0.0
    %2432 = vmatprep.subr.mxu0 0.0
    %2433 = vmatpush2.msra.mxu0 0.0
    %2434 = vmatprep.subr.mxu0 0.0
    %2435 = vmatpush2.msra.mxu0 0.0
    %2436 = vmatprep.subr.mxu0 0.0
    %2437 = vmatpush2.msra.mxu0 0.0
    %2438 = vmatprep.subr.mxu0 0.0
    %2439 = vmatpush2.msra.mxu0 0.0
    %2440 = vmatprep.mubr.f32.mxu0 0.0
    %2441 = vmatmul.mubr.f32.gmra.mxu0 %v1996
    %v2442 = vpop.f32.mrf.mxu0
    %v2443 = vadd.f32 0.0, %v2442
    %v2444 = vpop.f32.mrf.mxu0
    %2445 = vmatprep.mubr.f32.mxu0 0.0
    %2446 = vmatmul.mubr.f32.gmra.mxu0 %v1999
    %v2447 = vpop.f32.mrf.mxu0
    %v2448 = vadd.f32 0.0, %v2447
    %v2449 = vpop.f32.mrf.mxu0
    %2450 = vdwg.mxu0
    %2451 = vmatprep.subr.mxu0 0.0
    %2452 = vmatpush1.msra.mxu0 0.0
    %2453 = vmatprep.subr.mxu0 0.0
    %2454 = vmatpush1.msra.mxu0 0.0
    %2455 = vmatprep.subr.mxu0 0.0
    %2456 = vmatpush1.msra.mxu0 0.0
    %2457 = vmatprep.subr.mxu0 0.0
    %2458 = vmatpush1.msra.mxu0 0.0
    %2459 = vmatprep.subr.mxu0 0.0
    %2460 = vmatpush1.msra.mxu0 0.0
    %2461 = vmatprep.subr.mxu0 0.0
    %2462 = vmatpush1.msra.mxu0 0.0
    %2463 = vmatprep.subr.mxu0 0.0
    %2464 = vmatpush1.msra.mxu0 0.0
    %2465 = vmatprep.subr.mxu0 0.0
    %2466 = vmatpush1.msra.mxu0 0.0
    %2467 = vmatprep.subr.mxu0 0.0
    %2468 = vmatpush1.msra.mxu0 0.0
    %2469 = vmatprep.subr.mxu0 0.0
    %2470 = vmatpush1.msra.mxu0 0.0
    %2471 = vmatprep.subr.mxu0 0.0
    %2472 = vmatpush1.msra.mxu0 0.0
    %2473 = vmatprep.subr.mxu0 0.0
    %2474 = vmatpush1.msra.mxu0 0.0
    %2475 = vmatprep.subr.mxu0 0.0
    %2476 = vmatpush1.msra.mxu0 0.0
    %2477 = vmatprep.subr.mxu0 0.0
    %2478 = vmatpush1.msra.mxu0 0.0
    %2479 = vmatprep.subr.mxu0 0.0
    %2480 = vmatpush1.msra.mxu0 %v696
    %2481 = vmatprep.subr.mxu0 0.0
    %2482 = vmatpush1.msra.mxu0 %v691
    %2483 = vmatprep.subr.mxu0 0.0
    %2484 = vmatpush2.msra.mxu0 0.0
    %2485 = vmatprep.subr.mxu0 0.0
    %2486 = vmatpush2.msra.mxu0 0.0
    %2487 = vmatprep.subr.mxu0 0.0
    %2488 = vmatpush2.msra.mxu0 0.0
    %2489 = vmatprep.subr.mxu0 0.0
    %2490 = vmatpush2.msra.mxu0 0.0
    %2491 = vmatprep.subr.mxu0 0.0
    %2492 = vmatpush2.msra.mxu0 0.0
    %2493 = vmatprep.subr.mxu0 0.0
    %2494 = vmatpush2.msra.mxu0 0.0
    %2495 = vmatprep.subr.mxu0 0.0
    %2496 = vmatpush2.msra.mxu0 0.0
    %2497 = vmatprep.subr.mxu0 0.0
    %2498 = vmatpush2.msra.mxu0 0.0
    %2499 = vmatprep.subr.mxu0 0.0
    %2500 = vmatpush2.msra.mxu0 0.0
    %2501 = vmatprep.subr.mxu0 0.0
    %2502 = vmatpush2.msra.mxu0 0.0
    %2503 = vmatprep.subr.mxu0 0.0
    %2504 = vmatpush2.msra.mxu0 0.0
    %2505 = vmatprep.subr.mxu0 0.0
    %2506 = vmatpush2.msra.mxu0 0.0
    %2507 = vmatprep.subr.mxu0 0.0
    %2508 = vmatpush2.msra.mxu0 0.0
    %2509 = vmatprep.subr.mxu0 0.0
    %2510 = vmatpush2.msra.mxu0 0.0
    %2511 = vmatprep.subr.mxu0 0.0
    %2512 = vmatpush2.msra.mxu0 0.0
    %2513 = vmatprep.subr.mxu0 0.0
    %2514 = vmatpush2.msra.mxu0 0.0
    %2515 = vmatprep.mubr.f32.mxu0 0.0
    %2516 = vmatmul.mubr.f32.gmra.mxu0 %v1996
    %v2517 = vpop.f32.mrf.mxu0
    %v2518 = vadd.f32 0.0, %v2517
    %v2519 = vpop.f32.mrf.mxu0
    %2520 = vmatprep.mubr.f32.mxu0 0.0
    %2521 = vmatmul.mubr.f32.gmra.mxu0 %v1999
    %v2522 = vpop.f32.mrf.mxu0
    %v2523 = vadd.f32 0.0, %v2522
    %v2524 = vpop.f32.mrf.mxu0
    %2525 = vdwg.mxu0
    %2526 = vmatprep.subr.mxu0 0.0
    %2527 = vmatpush1.msra.mxu0 0.0
    %2528 = vmatprep.subr.mxu0 0.0
    %2529 = vmatpush1.msra.mxu0 0.0
    %2530 = vmatprep.subr.mxu0 0.0
    %2531 = vmatpush1.msra.mxu0 0.0
    %2532 = vmatprep.subr.mxu0 0.0
    %2533 = vmatpush1.msra.mxu0 0.0
    %2534 = vmatprep.subr.mxu0 0.0
    %2535 = vmatpush1.msra.mxu0 0.0
    %2536 = vmatprep.subr.mxu0 0.0
    %2537 = vmatpush1.msra.mxu0 0.0
    %2538 = vmatprep.subr.mxu0 0.0
    %2539 = vmatpush1.msra.mxu0 0.0
    %2540 = vmatprep.subr.mxu0 0.0
    %2541 = vmatpush1.msra.mxu0 0.0
    %2542 = vmatprep.subr.mxu0 0.0
    %2543 = vmatpush1.msra.mxu0 0.0
    %2544 = vmatprep.subr.mxu0 0.0
    %2545 = vmatpush1.msra.mxu0 0.0
    %2546 = vmatprep.subr.mxu0 0.0
    %2547 = vmatpush1.msra.mxu0 0.0
    %2548 = vmatprep.subr.mxu0 0.0
    %2549 = vmatpush1.msra.mxu0 0.0
    %2550 = vmatprep.subr.mxu0 0.0
    %2551 = vmatpush1.msra.mxu0 0.0
    %2552 = vmatprep.subr.mxu0 0.0
    %2553 = vmatpush1.msra.mxu0 0.0
    %2554 = vmatprep.subr.mxu0 0.0
    %2555 = vmatpush1.msra.mxu0 %v706
    %2556 = vmatprep.subr.mxu0 0.0
    %2557 = vmatpush1.msra.mxu0 %v701
    %2558 = vmatprep.subr.mxu0 0.0
    %2559 = vmatpush2.msra.mxu0 0.0
    %2560 = vmatprep.subr.mxu0 0.0
    %2561 = vmatpush2.msra.mxu0 0.0
    %2562 = vmatprep.subr.mxu0 0.0
    %2563 = vmatpush2.msra.mxu0 0.0
    %2564 = vmatprep.subr.mxu0 0.0
    %2565 = vmatpush2.msra.mxu0 0.0
    %2566 = vmatprep.subr.mxu0 0.0
    %2567 = vmatpush2.msra.mxu0 0.0
    %2568 = vmatprep.subr.mxu0 0.0
    %2569 = vmatpush2.msra.mxu0 0.0
    %2570 = vmatprep.subr.mxu0 0.0
    %2571 = vmatpush2.msra.mxu0 0.0
    %2572 = vmatprep.subr.mxu0 0.0
    %2573 = vmatpush2.msra.mxu0 0.0
    %2574 = vmatprep.subr.mxu0 0.0
    %2575 = vmatpush2.msra.mxu0 0.0
    %2576 = vmatprep.subr.mxu0 0.0
    %2577 = vmatpush2.msra.mxu0 0.0
    %2578 = vmatprep.subr.mxu0 0.0
    %2579 = vmatpush2.msra.mxu0 0.0
    %2580 = vmatprep.subr.mxu0 0.0
    %2581 = vmatpush2.msra.mxu0 0.0
    %2582 = vmatprep.subr.mxu0 0.0
    %2583 = vmatpush2.msra.mxu0 0.0
    %2584 = vmatprep.subr.mxu0 0.0
    %2585 = vmatpush2.msra.mxu0 0.0
    %2586 = vmatprep.subr.mxu0 0.0
    %2587 = vmatpush2.msra.mxu0 0.0
    %2588 = vmatprep.subr.mxu0 0.0
    %2589 = vmatpush2.msra.mxu0 0.0
    %2590 = vmatprep.mubr.f32.mxu0 0.0
    %2591 = vmatmul.mubr.f32.gmra.mxu0 %v1996
    %v2592 = vpop.f32.mrf.mxu0
    %v2593 = vadd.f32 0.0, %v2592
    %v2594 = vpop.f32.mrf.mxu0
    %2595 = vmatprep.mubr.f32.mxu0 0.0
    %2596 = vmatmul.mubr.f32.gmra.mxu0 %v1999
    %v2597 = vpop.f32.mrf.mxu0
    %v2598 = vadd.f32 0.0, %v2597
    %v2599 = vpop.f32.mrf.mxu0
    %2600 = vdwg.mxu0
    %2601 = vmatprep.subr.mxu0 0.0
    %2602 = vmatpush1.msra.mxu0 0.0
    %2603 = vmatprep.subr.mxu0 0.0
    %2604 = vmatpush1.msra.mxu0 0.0
    %2605 = vmatprep.subr.mxu0 0.0
    %2606 = vmatpush1.msra.mxu0 0.0
    %2607 = vmatprep.subr.mxu0 0.0
    %2608 = vmatpush1.msra.mxu0 0.0
    %2609 = vmatprep.subr.mxu0 0.0
    %2610 = vmatpush1.msra.mxu0 0.0
    %2611 = vmatprep.subr.mxu0 0.0
    %2612 = vmatpush1.msra.mxu0 0.0
    %2613 = vmatprep.subr.mxu0 0.0
    %2614 = vmatpush1.msra.mxu0 0.0
    %2615 = vmatprep.subr.mxu0 0.0
    %2616 = vmatpush1.msra.mxu0 0.0
    %2617 = vmatprep.subr.mxu0 0.0
    %2618 = vmatpush1.msra.mxu0 0.0
    %2619 = vmatprep.subr.mxu0 0.0
    %2620 = vmatpush1.msra.mxu0 0.0
    %2621 = vmatprep.subr.mxu0 0.0
    %2622 = vmatpush1.msra.mxu0 0.0
    %2623 = vmatprep.subr.mxu0 0.0
    %2624 = vmatpush1.msra.mxu0 0.0
    %2625 = vmatprep.subr.mxu0 0.0
    %2626 = vmatpush1.msra.mxu0 0.0
    %2627 = vmatprep.subr.mxu0 0.0
    %2628 = vmatpush1.msra.mxu0 0.0
    %2629 = vmatprep.subr.mxu0 0.0
    %2630 = vmatpush1.msra.mxu0 %v716
    %2631 = vmatprep.subr.mxu0 0.0
    %2632 = vmatpush1.msra.mxu0 %v711
    %2633 = vmatprep.subr.mxu0 0.0
    %2634 = vmatpush2.msra.mxu0 0.0
    %2635 = vmatprep.subr.mxu0 0.0
    %2636 = vmatpush2.msra.mxu0 0.0
    %2637 = vmatprep.subr.mxu0 0.0
    %2638 = vmatpush2.msra.mxu0 0.0
    %2639 = vmatprep.subr.mxu0 0.0
    %2640 = vmatpush2.msra.mxu0 0.0
    %2641 = vmatprep.subr.mxu0 0.0
    %2642 = vmatpush2.msra.mxu0 0.0
    %2643 = vmatprep.subr.mxu0 0.0
    %2644 = vmatpush2.msra.mxu0 0.0
    %2645 = vmatprep.subr.mxu0 0.0
    %2646 = vmatpush2.msra.mxu0 0.0
    %2647 = vmatprep.subr.mxu0 0.0
    %2648 = vmatpush2.msra.mxu0 0.0
    %2649 = vmatprep.subr.mxu0 0.0
    %2650 = vmatpush2.msra.mxu0 0.0
    %2651 = vmatprep.subr.mxu0 0.0
    %2652 = vmatpush2.msra.mxu0 0.0
    %2653 = vmatprep.subr.mxu0 0.0
    %2654 = vmatpush2.msra.mxu0 0.0
    %2655 = vmatprep.subr.mxu0 0.0
    %2656 = vmatpush2.msra.mxu0 0.0
    %2657 = vmatprep.subr.mxu0 0.0
    %2658 = vmatpush2.msra.mxu0 0.0
    %2659 = vmatprep.subr.mxu0 0.0
    %2660 = vmatpush2.msra.mxu0 0.0
    %2661 = vmatprep.subr.mxu0 0.0
    %2662 = vmatpush2.msra.mxu0 0.0
    %2663 = vmatprep.subr.mxu0 0.0
    %2664 = vmatpush2.msra.mxu0 0.0
    %2665 = vmatprep.mubr.f32.mxu0 0.0
    %2666 = vmatmul.mubr.f32.gmra.mxu0 %v1996
    %v2667 = vpop.f32.mrf.mxu0
    %v2668 = vadd.f32 0.0, %v2667
    %v2669 = vpop.f32.mrf.mxu0
    %2670 = vmatprep.mubr.f32.mxu0 0.0
    %2671 = vmatmul.mubr.f32.gmra.mxu0 %v1999
    %v2672 = vpop.f32.mrf.mxu0
    %v2673 = vadd.f32 0.0, %v2672
    %v2674 = vpop.f32.mrf.mxu0
    %2675 = vdwg.mxu0
    %2676 = vmatprep.subr.mxu0 0.0
    %2677 = vmatpush1.msra.mxu0 0.0
    %2678 = vmatprep.subr.mxu0 0.0
    %2679 = vmatpush1.msra.mxu0 0.0
    %2680 = vmatprep.subr.mxu0 0.0
    %2681 = vmatpush1.msra.mxu0 0.0
    %2682 = vmatprep.subr.mxu0 0.0
    %2683 = vmatpush1.msra.mxu0 0.0
    %2684 = vmatprep.subr.mxu0 0.0
    %2685 = vmatpush1.msra.mxu0 0.0
    %2686 = vmatprep.subr.mxu0 0.0
    %2687 = vmatpush1.msra.mxu0 0.0
    %2688 = vmatprep.subr.mxu0 0.0
    %2689 = vmatpush1.msra.mxu0 0.0
    %2690 = vmatprep.subr.mxu0 0.0
    %2691 = vmatpush1.msra.mxu0 0.0
    %2692 = vmatprep.subr.mxu0 0.0
    %2693 = vmatpush1.msra.mxu0 0.0
    %2694 = vmatprep.subr.mxu0 0.0
    %2695 = vmatpush1.msra.mxu0 0.0
    %2696 = vmatprep.subr.mxu0 0.0
    %2697 = vmatpush1.msra.mxu0 0.0
    %2698 = vmatprep.subr.mxu0 0.0
    %2699 = vmatpush1.msra.mxu0 0.0
    %2700 = vmatprep.subr.mxu0 0.0
    %2701 = vmatpush1.msra.mxu0 0.0
    %2702 = vmatprep.subr.mxu0 0.0
    %2703 = vmatpush1.msra.mxu0 0.0
    %2704 = vmatprep.subr.mxu0 0.0
    %2705 = vmatpush1.msra.mxu0 %v726
    %2706 = vmatprep.subr.mxu0 0.0
    %2707 = vmatpush1.msra.mxu0 %v721
    %2708 = vmatprep.subr.mxu0 0.0
    %2709 = vmatpush2.msra.mxu0 0.0
    %2710 = vmatprep.subr.mxu0 0.0
    %2711 = vmatpush2.msra.mxu0 0.0
    %2712 = vmatprep.subr.mxu0 0.0
    %2713 = vmatpush2.msra.mxu0 0.0
    %2714 = vmatprep.subr.mxu0 0.0
    %2715 = vmatpush2.msra.mxu0 0.0
    %2716 = vmatprep.subr.mxu0 0.0
    %2717 = vmatpush2.msra.mxu0 0.0
    %2718 = vmatprep.subr.mxu0 0.0
    %2719 = vmatpush2.msra.mxu0 0.0
    %2720 = vmatprep.subr.mxu0 0.0
    %2721 = vmatpush2.msra.mxu0 0.0
    %2722 = vmatprep.subr.mxu0 0.0
    %2723 = vmatpush2.msra.mxu0 0.0
    %2724 = vmatprep.subr.mxu0 0.0
    %2725 = vmatpush2.msra.mxu0 0.0
    %2726 = vmatprep.subr.mxu0 0.0
    %2727 = vmatpush2.msra.mxu0 0.0
    %2728 = vmatprep.subr.mxu0 0.0
    %2729 = vmatpush2.msra.mxu0 0.0
    %2730 = vmatprep.subr.mxu0 0.0
    %2731 = vmatpush2.msra.mxu0 0.0
    %2732 = vmatprep.subr.mxu0 0.0
    %2733 = vmatpush2.msra.mxu0 0.0
    %2734 = vmatprep.subr.mxu0 0.0
    %2735 = vmatpush2.msra.mxu0 0.0
    %2736 = vmatprep.subr.mxu0 0.0
    %2737 = vmatpush2.msra.mxu0 0.0
    %2738 = vmatprep.subr.mxu0 0.0
    %2739 = vmatpush2.msra.mxu0 0.0
    %2740 = vmatprep.mubr.f32.mxu0 0.0
    %2741 = vmatmul.mubr.f32.gmra.mxu0 %v1996
    %v2742 = vpop.f32.mrf.mxu0
    %v2743 = vadd.f32 0.0, %v2742
    %v2744 = vpop.f32.mrf.mxu0
    %2745 = vmatprep.mubr.f32.mxu0 0.0
    %2746 = vmatmul.mubr.f32.gmra.mxu0 %v1999
    %v2747 = vpop.f32.mrf.mxu0
    %v2748 = vadd.f32 0.0, %v2747
    %v2749 = vpop.f32.mrf.mxu0
    %2750 = vdwg.mxu0
    %2751 = vmatprep.subr.mxu0 0.0
    %2752 = vmatpush1.msra.mxu0 0.0
    %2753 = vmatprep.subr.mxu0 0.0
    %2754 = vmatpush1.msra.mxu0 0.0
    %2755 = vmatprep.subr.mxu0 0.0
    %2756 = vmatpush1.msra.mxu0 0.0
    %2757 = vmatprep.subr.mxu0 0.0
    %2758 = vmatpush1.msra.mxu0 0.0
    %2759 = vmatprep.subr.mxu0 0.0
    %2760 = vmatpush1.msra.mxu0 0.0
    %2761 = vmatprep.subr.mxu0 0.0
    %2762 = vmatpush1.msra.mxu0 0.0
    %2763 = vmatprep.subr.mxu0 0.0
    %2764 = vmatpush1.msra.mxu0 0.0
    %2765 = vmatprep.subr.mxu0 0.0
    %2766 = vmatpush1.msra.mxu0 0.0
    %2767 = vmatprep.subr.mxu0 0.0
    %2768 = vmatpush1.msra.mxu0 0.0
    %2769 = vmatprep.subr.mxu0 0.0
    %2770 = vmatpush1.msra.mxu0 0.0
    %2771 = vmatprep.subr.mxu0 0.0
    %2772 = vmatpush1.msra.mxu0 0.0
    %2773 = vmatprep.subr.mxu0 0.0
    %2774 = vmatpush1.msra.mxu0 0.0
    %2775 = vmatprep.subr.mxu0 0.0
    %2776 = vmatpush1.msra.mxu0 0.0
    %2777 = vmatprep.subr.mxu0 0.0
    %2778 = vmatpush1.msra.mxu0 0.0
    %2779 = vmatprep.subr.mxu0 0.0
    %2780 = vmatpush1.msra.mxu0 %v736
    %2781 = vmatprep.subr.mxu0 0.0
    %2782 = vmatpush1.msra.mxu0 %v731
    %2783 = vmatprep.subr.mxu0 0.0
    %2784 = vmatpush2.msra.mxu0 0.0
    %2785 = vmatprep.subr.mxu0 0.0
    %2786 = vmatpush2.msra.mxu0 0.0
    %2787 = vmatprep.subr.mxu0 0.0
    %2788 = vmatpush2.msra.mxu0 0.0
    %2789 = vmatprep.subr.mxu0 0.0
    %2790 = vmatpush2.msra.mxu0 0.0
    %2791 = vmatprep.subr.mxu0 0.0
    %2792 = vmatpush2.msra.mxu0 0.0
    %2793 = vmatprep.subr.mxu0 0.0
    %2794 = vmatpush2.msra.mxu0 0.0
    %2795 = vmatprep.subr.mxu0 0.0
    %2796 = vmatpush2.msra.mxu0 0.0
    %2797 = vmatprep.subr.mxu0 0.0
    %2798 = vmatpush2.msra.mxu0 0.0
    %2799 = vmatprep.subr.mxu0 0.0
    %2800 = vmatpush2.msra.mxu0 0.0
    %2801 = vmatprep.subr.mxu0 0.0
    %2802 = vmatpush2.msra.mxu0 0.0
    %2803 = vmatprep.subr.mxu0 0.0
    %2804 = vmatpush2.msra.mxu0 0.0
    %2805 = vmatprep.subr.mxu0 0.0
    %2806 = vmatpush2.msra.mxu0 0.0
    %2807 = vmatprep.subr.mxu0 0.0
    %2808 = vmatpush2.msra.mxu0 0.0
    %2809 = vmatprep.subr.mxu0 0.0
    %2810 = vmatpush2.msra.mxu0 0.0
    %2811 = vmatprep.subr.mxu0 0.0
    %2812 = vmatpush2.msra.mxu0 0.0
    %2813 = vmatprep.subr.mxu0 0.0
    %2814 = vmatpush2.msra.mxu0 0.0
    %2815 = vmatprep.mubr.f32.mxu0 0.0
    %2816 = vmatmul.mubr.f32.gmra.mxu0 %v1996
    %v2817 = vpop.f32.mrf.mxu0
    %v2818 = vadd.f32 0.0, %v2817
    %v2819 = vpop.f32.mrf.mxu0
    %2820 = vmatprep.mubr.f32.mxu0 0.0
    %2821 = vmatmul.mubr.f32.gmra.mxu0 %v1999
    %v2822 = vpop.f32.mrf.mxu0
    %v2823 = vadd.f32 0.0, %v2822
    %v2824 = vpop.f32.mrf.mxu0
    %2825 = vdwg.mxu0
    %2826 = vmatprep.subr.mxu0 0.0
    %2827 = vmatpush1.msra.mxu0 0.0
    %2828 = vmatprep.subr.mxu0 0.0
    %2829 = vmatpush1.msra.mxu0 0.0
    %2830 = vmatprep.subr.mxu0 0.0
    %2831 = vmatpush1.msra.mxu0 0.0
    %2832 = vmatprep.subr.mxu0 0.0
    %2833 = vmatpush1.msra.mxu0 0.0
    %2834 = vmatprep.subr.mxu0 0.0
    %2835 = vmatpush1.msra.mxu0 0.0
    %2836 = vmatprep.subr.mxu0 0.0
    %2837 = vmatpush1.msra.mxu0 0.0
    %2838 = vmatprep.subr.mxu0 0.0
    %2839 = vmatpush1.msra.mxu0 0.0
    %2840 = vmatprep.subr.mxu0 0.0
    %2841 = vmatpush1.msra.mxu0 0.0
    %2842 = vmatprep.subr.mxu0 0.0
    %2843 = vmatpush1.msra.mxu0 0.0
    %2844 = vmatprep.subr.mxu0 0.0
    %2845 = vmatpush1.msra.mxu0 0.0
    %2846 = vmatprep.subr.mxu0 0.0
    %2847 = vmatpush1.msra.mxu0 0.0
    %2848 = vmatprep.subr.mxu0 0.0
    %2849 = vmatpush1.msra.mxu0 0.0
    %2850 = vmatprep.subr.mxu0 0.0
    %2851 = vmatpush1.msra.mxu0 0.0
    %2852 = vmatprep.subr.mxu0 0.0
    %2853 = vmatpush1.msra.mxu0 0.0
    %2854 = vmatprep.subr.mxu0 0.0
    %2855 = vmatpush1.msra.mxu0 %v746
    %2856 = vmatprep.subr.mxu0 0.0
    %2857 = vmatpush1.msra.mxu0 %v741
    %2858 = vmatprep.subr.mxu0 0.0
    %2859 = vmatpush2.msra.mxu0 0.0
    %2860 = vmatprep.subr.mxu0 0.0
    %2861 = vmatpush2.msra.mxu0 0.0
    %2862 = vmatprep.subr.mxu0 0.0
    %2863 = vmatpush2.msra.mxu0 0.0
    %2864 = vmatprep.subr.mxu0 0.0
    %2865 = vmatpush2.msra.mxu0 0.0
    %2866 = vmatprep.subr.mxu0 0.0
    %2867 = vmatpush2.msra.mxu0 0.0
    %2868 = vmatprep.subr.mxu0 0.0
    %2869 = vmatpush2.msra.mxu0 0.0
    %2870 = vmatprep.subr.mxu0 0.0
    %2871 = vmatpush2.msra.mxu0 0.0
    %2872 = vmatprep.subr.mxu0 0.0
    %2873 = vmatpush2.msra.mxu0 0.0
    %2874 = vmatprep.subr.mxu0 0.0
    %2875 = vmatpush2.msra.mxu0 0.0
    %2876 = vmatprep.subr.mxu0 0.0
    %2877 = vmatpush2.msra.mxu0 0.0
    %2878 = vmatprep.subr.mxu0 0.0
    %2879 = vmatpush2.msra.mxu0 0.0
    %2880 = vmatprep.subr.mxu0 0.0
    %2881 = vmatpush2.msra.mxu0 0.0
    %2882 = vmatprep.subr.mxu0 0.0
    %2883 = vmatpush2.msra.mxu0 0.0
    %2884 = vmatprep.subr.mxu0 0.0
    %2885 = vmatpush2.msra.mxu0 0.0
    %2886 = vmatprep.subr.mxu0 0.0
    %2887 = vmatpush2.msra.mxu0 0.0
    %2888 = vmatprep.subr.mxu0 0.0
    %2889 = vmatpush2.msra.mxu0 0.0
    %2890 = vmatprep.mubr.f32.mxu0 0.0
    %2891 = vmatmul.mubr.f32.gmra.mxu0 %v1996
    %v2892 = vpop.f32.mrf.mxu0
    %v2893 = vadd.f32 0.0, %v2892
    %v2894 = vpop.f32.mrf.mxu0
    %2895 = vmatprep.mubr.f32.mxu0 0.0
    %2896 = vmatmul.mubr.f32.gmra.mxu0 %v1999
    %v2897 = vpop.f32.mrf.mxu0
    %v2898 = vadd.f32 0.0, %v2897
    %v2899 = vpop.f32.mrf.mxu0
    %2900 = vdwg.mxu0
    %2901 = vmatprep.subr.mxu0 0.0
    %2902 = vmatpush1.msra.mxu0 0.0
    %2903 = vmatprep.subr.mxu0 0.0
    %2904 = vmatpush1.msra.mxu0 0.0
    %2905 = vmatprep.subr.mxu0 0.0
    %2906 = vmatpush1.msra.mxu0 0.0
    %2907 = vmatprep.subr.mxu0 0.0
    %2908 = vmatpush1.msra.mxu0 0.0
    %2909 = vmatprep.subr.mxu0 0.0
    %2910 = vmatpush1.msra.mxu0 0.0
    %2911 = vmatprep.subr.mxu0 0.0
    %2912 = vmatpush1.msra.mxu0 0.0
    %2913 = vmatprep.subr.mxu0 0.0
    %2914 = vmatpush1.msra.mxu0 0.0
    %2915 = vmatprep.subr.mxu0 0.0
    %2916 = vmatpush1.msra.mxu0 0.0
    %2917 = vmatprep.subr.mxu0 0.0
    %2918 = vmatpush1.msra.mxu0 0.0
    %2919 = vmatprep.subr.mxu0 0.0
    %2920 = vmatpush1.msra.mxu0 0.0
    %2921 = vmatprep.subr.mxu0 0.0
    %2922 = vmatpush1.msra.mxu0 0.0
    %2923 = vmatprep.subr.mxu0 0.0
    %2924 = vmatpush1.msra.mxu0 0.0
    %2925 = vmatprep.subr.mxu0 0.0
    %2926 = vmatpush1.msra.mxu0 0.0
    %2927 = vmatprep.subr.mxu0 0.0
    %2928 = vmatpush1.msra.mxu0 0.0
    %2929 = vmatprep.subr.mxu0 0.0
    %2930 = vmatpush1.msra.mxu0 %v756
    %2931 = vmatprep.subr.mxu0 0.0
    %2932 = vmatpush1.msra.mxu0 %v751
    %2933 = vmatprep.subr.mxu0 0.0
    %2934 = vmatpush2.msra.mxu0 0.0
    %2935 = vmatprep.subr.mxu0 0.0
    %2936 = vmatpush2.msra.mxu0 0.0
    %2937 = vmatprep.subr.mxu0 0.0
    %2938 = vmatpush2.msra.mxu0 0.0
    %2939 = vmatprep.subr.mxu0 0.0
    %2940 = vmatpush2.msra.mxu0 0.0
    %2941 = vmatprep.subr.mxu0 0.0
    %2942 = vmatpush2.msra.mxu0 0.0
    %2943 = vmatprep.subr.mxu0 0.0
    %2944 = vmatpush2.msra.mxu0 0.0
    %2945 = vmatprep.subr.mxu0 0.0
    %2946 = vmatpush2.msra.mxu0 0.0
    %2947 = vmatprep.subr.mxu0 0.0
    %2948 = vmatpush2.msra.mxu0 0.0
    %2949 = vmatprep.subr.mxu0 0.0
    %2950 = vmatpush2.msra.mxu0 0.0
    %2951 = vmatprep.subr.mxu0 0.0
    %2952 = vmatpush2.msra.mxu0 0.0
    %2953 = vmatprep.subr.mxu0 0.0
    %2954 = vmatpush2.msra.mxu0 0.0
    %2955 = vmatprep.subr.mxu0 0.0
    %2956 = vmatpush2.msra.mxu0 0.0
    %2957 = vmatprep.subr.mxu0 0.0
    %2958 = vmatpush2.msra.mxu0 0.0
    %2959 = vmatprep.subr.mxu0 0.0
    %2960 = vmatpush2.msra.mxu0 0.0
    %2961 = vmatprep.subr.mxu0 0.0
    %2962 = vmatpush2.msra.mxu0 0.0
    %2963 = vmatprep.subr.mxu0 0.0
    %2964 = vmatpush2.msra.mxu0 0.0
    %2965 = vmatprep.mubr.f32.mxu0 0.0
    %2966 = vmatmul.mubr.f32.gmra.mxu0 %v1996
    %v2967 = vpop.f32.mrf.mxu0
    %v2968 = vadd.f32 0.0, %v2967
    %v2969 = vpop.f32.mrf.mxu0
    %2970 = vmatprep.mubr.f32.mxu0 0.0
    %2971 = vmatmul.mubr.f32.gmra.mxu0 %v1999
    %v2972 = vpop.f32.mrf.mxu0
    %v2973 = vadd.f32 0.0, %v2972
    %v2974 = vpop.f32.mrf.mxu0
    %2975 = vdwg.mxu0
    %2976 = vmatprep.subr.mxu0 0.0
    %2977 = vmatpush1.msra.mxu0 0.0
    %2978 = vmatprep.subr.mxu0 0.0
    %2979 = vmatpush1.msra.mxu0 0.0
    %2980 = vmatprep.subr.mxu0 0.0
    %2981 = vmatpush1.msra.mxu0 0.0
    %2982 = vmatprep.subr.mxu0 0.0
    %2983 = vmatpush1.msra.mxu0 0.0
    %2984 = vmatprep.subr.mxu0 0.0
    %2985 = vmatpush1.msra.mxu0 0.0
    %2986 = vmatprep.subr.mxu0 0.0
    %2987 = vmatpush1.msra.mxu0 0.0
    %2988 = vmatprep.subr.mxu0 0.0
    %2989 = vmatpush1.msra.mxu0 0.0
    %2990 = vmatprep.subr.mxu0 0.0
    %2991 = vmatpush1.msra.mxu0 0.0
    %2992 = vmatprep.subr.mxu0 0.0
    %2993 = vmatpush1.msra.mxu0 0.0
    %2994 = vmatprep.subr.mxu0 0.0
    %2995 = vmatpush1.msra.mxu0 0.0
    %2996 = vmatprep.subr.mxu0 0.0
    %2997 = vmatpush1.msra.mxu0 0.0
    %2998 = vmatprep.subr.mxu0 0.0
    %2999 = vmatpush1.msra.mxu0 0.0
    %3000 = vmatprep.subr.mxu0 0.0
    %3001 = vmatpush1.msra.mxu0 0.0
    %3002 = vmatprep.subr.mxu0 0.0
    %3003 = vmatpush1.msra.mxu0 0.0
    %3004 = vmatprep.subr.mxu0 0.0
    %3005 = vmatpush1.msra.mxu0 %v766
    %3006 = vmatprep.subr.mxu0 0.0
    %3007 = vmatpush1.msra.mxu0 %v761
    %3008 = vmatprep.subr.mxu0 0.0
    %3009 = vmatpush2.msra.mxu0 0.0
    %3010 = vmatprep.subr.mxu0 0.0
    %3011 = vmatpush2.msra.mxu0 0.0
    %3012 = vmatprep.subr.mxu0 0.0
    %3013 = vmatpush2.msra.mxu0 0.0
    %3014 = vmatprep.subr.mxu0 0.0
    %3015 = vmatpush2.msra.mxu0 0.0
    %3016 = vmatprep.subr.mxu0 0.0
    %3017 = vmatpush2.msra.mxu0 0.0
    %3018 = vmatprep.subr.mxu0 0.0
    %3019 = vmatpush2.msra.mxu0 0.0
    %3020 = vmatprep.subr.mxu0 0.0
    %3021 = vmatpush2.msra.mxu0 0.0
    %3022 = vmatprep.subr.mxu0 0.0
    %3023 = vmatpush2.msra.mxu0 0.0
    %3024 = vmatprep.subr.mxu0 0.0
    %3025 = vmatpush2.msra.mxu0 0.0
    %3026 = vmatprep.subr.mxu0 0.0
    %3027 = vmatpush2.msra.mxu0 0.0
    %3028 = vmatprep.subr.mxu0 0.0
    %3029 = vmatpush2.msra.mxu0 0.0
    %3030 = vmatprep.subr.mxu0 0.0
    %3031 = vmatpush2.msra.mxu0 0.0
    %3032 = vmatprep.subr.mxu0 0.0
    %3033 = vmatpush2.msra.mxu0 0.0
    %3034 = vmatprep.subr.mxu0 0.0
    %3035 = vmatpush2.msra.mxu0 0.0
    %3036 = vmatprep.subr.mxu0 0.0
    %3037 = vmatpush2.msra.mxu0 0.0
    %3038 = vmatprep.subr.mxu0 0.0
    %3039 = vmatpush2.msra.mxu0 0.0
    %3040 = vmatprep.mubr.f32.mxu0 0.0
    %3041 = vmatmul.mubr.f32.gmra.mxu0 %v1996
    %v3042 = vpop.f32.mrf.mxu0
    %v3043 = vadd.f32 0.0, %v3042
    %v3044 = vpop.f32.mrf.mxu0
    %3045 = vmatprep.mubr.f32.mxu0 0.0
    %3046 = vmatmul.mubr.f32.gmra.mxu0 %v1999
    %v3047 = vpop.f32.mrf.mxu0
    %v3048 = vadd.f32 0.0, %v3047
    %v3049 = vpop.f32.mrf.mxu0
    %3050 = vdwg.mxu0
    %3051 = vmatprep.subr.mxu0 0.0
    %3052 = vmatpush1.msra.mxu0 0.0
    %3053 = vmatprep.subr.mxu0 0.0
    %3054 = vmatpush1.msra.mxu0 0.0
    %3055 = vmatprep.subr.mxu0 0.0
    %3056 = vmatpush1.msra.mxu0 0.0
    %3057 = vmatprep.subr.mxu0 0.0
    %3058 = vmatpush1.msra.mxu0 0.0
    %3059 = vmatprep.subr.mxu0 0.0
    %3060 = vmatpush1.msra.mxu0 0.0
    %3061 = vmatprep.subr.mxu0 0.0
    %3062 = vmatpush1.msra.mxu0 0.0
    %3063 = vmatprep.subr.mxu0 0.0
    %3064 = vmatpush1.msra.mxu0 0.0
    %3065 = vmatprep.subr.mxu0 0.0
    %3066 = vmatpush1.msra.mxu0 0.0
    %3067 = vmatprep.subr.mxu0 0.0
    %3068 = vmatpush1.msra.mxu0 0.0
    %3069 = vmatprep.subr.mxu0 0.0
    %3070 = vmatpush1.msra.mxu0 0.0
    %3071 = vmatprep.subr.mxu0 0.0
    %3072 = vmatpush1.msra.mxu0 0.0
    %3073 = vmatprep.subr.mxu0 0.0
    %3074 = vmatpush1.msra.mxu0 0.0
    %3075 = vmatprep.subr.mxu0 0.0
    %3076 = vmatpush1.msra.mxu0 0.0
    %3077 = vmatprep.subr.mxu0 0.0
    %3078 = vmatpush1.msra.mxu0 0.0
    %3079 = vmatprep.subr.mxu0 0.0
    %3080 = vmatpush1.msra.mxu0 %v776
    %3081 = vmatprep.subr.mxu0 0.0
    %3082 = vmatpush1.msra.mxu0 %v771
    %3083 = vmatprep.subr.mxu0 0.0
    %3084 = vmatpush2.msra.mxu0 0.0
    %3085 = vmatprep.subr.mxu0 0.0
    %3086 = vmatpush2.msra.mxu0 0.0
    %3087 = vmatprep.subr.mxu0 0.0
    %3088 = vmatpush2.msra.mxu0 0.0
    %3089 = vmatprep.subr.mxu0 0.0
    %3090 = vmatpush2.msra.mxu0 0.0
    %3091 = vmatprep.subr.mxu0 0.0
    %3092 = vmatpush2.msra.mxu0 0.0
    %3093 = vmatprep.subr.mxu0 0.0
    %3094 = vmatpush2.msra.mxu0 0.0
    %3095 = vmatprep.subr.mxu0 0.0
    %3096 = vmatpush2.msra.mxu0 0.0
    %3097 = vmatprep.subr.mxu0 0.0
    %3098 = vmatpush2.msra.mxu0 0.0
    %3099 = vmatprep.subr.mxu0 0.0
    %3100 = vmatpush2.msra.mxu0 0.0
    %3101 = vmatprep.subr.mxu0 0.0
    %3102 = vmatpush2.msra.mxu0 0.0
    %3103 = vmatprep.subr.mxu0 0.0
    %3104 = vmatpush2.msra.mxu0 0.0
    %3105 = vmatprep.subr.mxu0 0.0
    %3106 = vmatpush2.msra.mxu0 0.0
    %3107 = vmatprep.subr.mxu0 0.0
    %3108 = vmatpush2.msra.mxu0 0.0
    %3109 = vmatprep.subr.mxu0 0.0
    %3110 = vmatpush2.msra.mxu0 0.0
    %3111 = vmatprep.subr.mxu0 0.0
    %3112 = vmatpush2.msra.mxu0 0.0
    %3113 = vmatprep.subr.mxu0 0.0
    %3114 = vmatpush2.msra.mxu0 0.0
    %3115 = vmatprep.mubr.f32.mxu0 0.0
    %3116 = vmatmul.mubr.f32.gmra.mxu0 %v1996
    %v3117 = vpop.f32.mrf.mxu0
    %v3118 = vadd.f32 0.0, %v3117
    %v3119 = vpop.f32.mrf.mxu0
    %3120 = vmatprep.mubr.f32.mxu0 0.0
    %3121 = vmatmul.mubr.f32.gmra.mxu0 %v1999
    %v3122 = vpop.f32.mrf.mxu0
    %v3123 = vadd.f32 0.0, %v3122
    %v3124 = vpop.f32.mrf.mxu0
    %3125 = vdwg.mxu0
    %3126 = vmatprep.subr.mxu0 0.0
    %3127 = vmatpush1.msra.mxu0 0.0
    %3128 = vmatprep.subr.mxu0 0.0
    %3129 = vmatpush1.msra.mxu0 0.0
    %3130 = vmatprep.subr.mxu0 0.0
    %3131 = vmatpush1.msra.mxu0 0.0
    %3132 = vmatprep.subr.mxu0 0.0
    %3133 = vmatpush1.msra.mxu0 0.0
    %3134 = vmatprep.subr.mxu0 0.0
    %3135 = vmatpush1.msra.mxu0 0.0
    %3136 = vmatprep.subr.mxu0 0.0
    %3137 = vmatpush1.msra.mxu0 0.0
    %3138 = vmatprep.subr.mxu0 0.0
    %3139 = vmatpush1.msra.mxu0 0.0
    %3140 = vmatprep.subr.mxu0 0.0
    %3141 = vmatpush1.msra.mxu0 0.0
    %3142 = vmatprep.subr.mxu0 0.0
    %3143 = vmatpush1.msra.mxu0 0.0
    %3144 = vmatprep.subr.mxu0 0.0
    %3145 = vmatpush1.msra.mxu0 0.0
    %3146 = vmatprep.subr.mxu0 0.0
    %3147 = vmatpush1.msra.mxu0 0.0
    %3148 = vmatprep.subr.mxu0 0.0
    %3149 = vmatpush1.msra.mxu0 0.0
    %3150 = vmatprep.subr.mxu0 0.0
    %3151 = vmatpush1.msra.mxu0 0.0
    %3152 = vmatprep.subr.mxu0 0.0
    %3153 = vmatpush1.msra.mxu0 0.0
    %3154 = vmatprep.subr.mxu0 0.0
    %3155 = vmatpush1.msra.mxu0 %v786
    %3156 = vmatprep.subr.mxu0 0.0
    %3157 = vmatpush1.msra.mxu0 %v781
    %3158 = vmatprep.subr.mxu0 0.0
    %3159 = vmatpush2.msra.mxu0 0.0
    %3160 = vmatprep.subr.mxu0 0.0
    %3161 = vmatpush2.msra.mxu0 0.0
    %3162 = vmatprep.subr.mxu0 0.0
    %3163 = vmatpush2.msra.mxu0 0.0
    %3164 = vmatprep.subr.mxu0 0.0
    %3165 = vmatpush2.msra.mxu0 0.0
    %3166 = vmatprep.subr.mxu0 0.0
    %3167 = vmatpush2.msra.mxu0 0.0
    %3168 = vmatprep.subr.mxu0 0.0
    %3169 = vmatpush2.msra.mxu0 0.0
    %3170 = vmatprep.subr.mxu0 0.0
    %3171 = vmatpush2.msra.mxu0 0.0
    %3172 = vmatprep.subr.mxu0 0.0
    %3173 = vmatpush2.msra.mxu0 0.0
    %3174 = vmatprep.subr.mxu0 0.0
    %3175 = vmatpush2.msra.mxu0 0.0
    %3176 = vmatprep.subr.mxu0 0.0
    %3177 = vmatpush2.msra.mxu0 0.0
    %3178 = vmatprep.subr.mxu0 0.0
    %3179 = vmatpush2.msra.mxu0 0.0
    %3180 = vmatprep.subr.mxu0 0.0
    %3181 = vmatpush2.msra.mxu0 0.0
    %3182 = vmatprep.subr.mxu0 0.0
    %3183 = vmatpush2.msra.mxu0 0.0
    %3184 = vmatprep.subr.mxu0 0.0
    %3185 = vmatpush2.msra.mxu0 0.0
    %3186 = vmatprep.subr.mxu0 0.0
    %3187 = vmatpush2.msra.mxu0 0.0
    %3188 = vmatprep.subr.mxu0 0.0
    %3189 = vmatpush2.msra.mxu0 0.0
    %3190 = vmatprep.mubr.f32.mxu0 0.0
    %3191 = vmatmul.mubr.f32.gmra.mxu0 %v1996
    %v3192 = vpop.f32.mrf.mxu0
    %v3193 = vadd.f32 0.0, %v3192
    %v3194 = vpop.f32.mrf.mxu0
    %3195 = vmatprep.mubr.f32.mxu0 0.0
    %3196 = vmatmul.mubr.f32.gmra.mxu0 %v1999
    %v3197 = vpop.f32.mrf.mxu0
    %v3198 = vadd.f32 0.0, %v3197
    %v3199 = vpop.f32.mrf.mxu0
    %3200 = vdwg.mxu0
    %v3201 = vmul.f32 %v862, %v862
    %v3202 = vmul.f32 %v867, %v867
    %v3203 = vmul.f32 %v937, %v937
    %v3204 = vmul.f32 %v942, %v942
    %v3205 = vmul.f32 %v1012, %v1012
    %v3206 = vmul.f32 %v1017, %v1017
    %v3207 = vmul.f32 %v1087, %v1087
    %v3208 = vmul.f32 %v1092, %v1092
    %v3209 = vmul.f32 %v1162, %v1162
    %v3210 = vmul.f32 %v1167, %v1167
    %v3211 = vmul.f32 %v1237, %v1237
    %v3212 = vmul.f32 %v1242, %v1242
    %v3213 = vmul.f32 %v1312, %v1312
    %v3214 = vmul.f32 %v1317, %v1317
    %v3215 = vmul.f32 %v1387, %v1387
    %v3216 = vmul.f32 %v1392, %v1392
    %v3217 = vmul.f32 %v1462, %v1462
    %v3218 = vmul.f32 %v1467, %v1467
    %v3219 = vmul.f32 %v1537, %v1537
    %v3220 = vmul.f32 %v1542, %v1542
    %v3221 = vmul.f32 %v1612, %v1612
    %v3222 = vmul.f32 %v1617, %v1617
    %v3223 = vmul.f32 %v1687, %v1687
    %v3224 = vmul.f32 %v1692, %v1692
    %v3225 = vmul.f32 %v1762, %v1762
    %v3226 = vmul.f32 %v1767, %v1767
    %v3227 = vmul.f32 %v1837, %v1837
    %v3228 = vmul.f32 %v1842, %v1842
    %v3229 = vmul.f32 %v1912, %v1912
    %v3230 = vmul.f32 %v1917, %v1917
    %v3231 = vmul.f32 %v1987, %v1987
    %v3232 = vmul.f32 %v1992, %v1992
    %v3233 = vmul.f32 %v2068, %v2068
    %v3234 = vmul.f32 %v2073, %v2073
    %v3235 = vmul.f32 %v2143, %v2143
    %v3236 = vmul.f32 %v2148, %v2148
    %v3237 = vmul.f32 %v2218, %v2218
    %v3238 = vmul.f32 %v2223, %v2223
    %v3239 = vmul.f32 %v2293, %v2293
    %v3240 = vmul.f32 %v2298, %v2298
    %v3241 = vmul.f32 %v2368, %v2368
    %v3242 = vmul.f32 %v2373, %v2373
    %v3243 = vmul.f32 %v2443, %v2443
    %v3244 = vmul.f32 %v2448, %v2448
    %v3245 = vmul.f32 %v2518, %v2518
    %v3246 = vmul.f32 %v2523, %v2523
    %v3247 = vmul.f32 %v2593, %v2593
    %v3248 = vmul.f32 %v2598, %v2598
    %v3249 = vmul.f32 %v2668, %v2668
    %v3250 = vmul.f32 %v2673, %v2673
    %v3251 = vmul.f32 %v2743, %v2743
    %v3252 = vmul.f32 %v2748, %v2748
    %v3253 = vmul.f32 %v2818, %v2818
    %v3254 = vmul.f32 %v2823, %v2823
    %v3255 = vmul.f32 %v2893, %v2893
    %v3256 = vmul.f32 %v2898, %v2898
    %v3257 = vmul.f32 %v2968, %v2968
    %v3258 = vmul.f32 %v2973, %v2973
    %v3259 = vmul.f32 %v3043, %v3043
    %v3260 = vmul.f32 %v3048, %v3048
    %v3261 = vmul.f32 %v3118, %v3118
    %v3262 = vmul.f32 %v3123, %v3123
    %v3263 = vmul.f32 %v3193, %v3193
    %v3264 = vmul.f32 %v3198, %v3198
    %v3265 = vadd.f32 %v3201, %v3233
    %v3266 = vadd.f32 %v3202, %v3234
    %v3267 = vadd.f32 %v3203, %v3235
    %v3268 = vadd.f32 %v3204, %v3236
    %v3269 = vadd.f32 %v3205, %v3237
    %v3270 = vadd.f32 %v3206, %v3238
    %v3271 = vadd.f32 %v3207, %v3239
    %v3272 = vadd.f32 %v3208, %v3240
    %v3273 = vadd.f32 %v3209, %v3241
    %v3274 = vadd.f32 %v3210, %v3242
    %v3275 = vadd.f32 %v3211, %v3243
    %v3276 = vadd.f32 %v3212, %v3244
    %v3277 = vadd.f32 %v3213, %v3245
    %v3278 = vadd.f32 %v3214, %v3246
    %v3279 = vadd.f32 %v3215, %v3247
    %v3280 = vadd.f32 %v3216, %v3248
    %v3281 = vadd.f32 %v3217, %v3249
    %v3282 = vadd.f32 %v3218, %v3250
    %v3283 = vadd.f32 %v3219, %v3251
    %v3284 = vadd.f32 %v3220, %v3252
    %v3285 = vadd.f32 %v3221, %v3253
    %v3286 = vadd.f32 %v3222, %v3254
    %v3287 = vadd.f32 %v3223, %v3255
    %v3288 = vadd.f32 %v3224, %v3256
    %v3289 = vadd.f32 %v3225, %v3257
    %v3290 = vadd.f32 %v3226, %v3258
    %v3291 = vadd.f32 %v3227, %v3259
    %v3292 = vadd.f32 %v3228, %v3260
    %v3293 = vadd.f32 %v3229, %v3261
    %v3294 = vadd.f32 %v3230, %v3262
    %v3295 = vadd.f32 %v3231, %v3263
    %v3296 = vadd.f32 %v3232, %v3264
    %v3297 = vadd.f32 %v3265, 0.0001
    %v3298 = vadd.f32 %v3266, 0.0001
    %v3299 = vadd.f32 %v3267, 0.0001
    %v3300 = vadd.f32 %v3268, 0.0001
    %v3301 = vadd.f32 %v3269, 0.0001
    %v3302 = vadd.f32 %v3270, 0.0001
    %v3303 = vadd.f32 %v3271, 0.0001
    %v3304 = vadd.f32 %v3272, 0.0001
    %v3305 = vadd.f32 %v3273, 0.0001
    %v3306 = vadd.f32 %v3274, 0.0001
    %v3307 = vadd.f32 %v3275, 0.0001
    %v3308 = vadd.f32 %v3276, 0.0001
    %v3309 = vadd.f32 %v3277, 0.0001
    %v3310 = vadd.f32 %v3278, 0.0001
    %v3311 = vadd.f32 %v3279, 0.0001
    %v3312 = vadd.f32 %v3280, 0.0001
    %v3313 = vadd.f32 %v3281, 0.0001
    %v3314 = vadd.f32 %v3282, 0.0001
    %v3315 = vadd.f32 %v3283, 0.0001
    %v3316 = vadd.f32 %v3284, 0.0001
    %v3317 = vadd.f32 %v3285, 0.0001
    %v3318 = vadd.f32 %v3286, 0.0001
    %v3319 = vadd.f32 %v3287, 0.0001
    %v3320 = vadd.f32 %v3288, 0.0001
    %v3321 = vadd.f32 %v3289, 0.0001
    %v3322 = vadd.f32 %v3290, 0.0001
    %v3323 = vadd.f32 %v3291, 0.0001
    %v3324 = vadd.f32 %v3292, 0.0001
    %v3325 = vadd.f32 %v3293, 0.0001
    %v3326 = vadd.f32 %v3294, 0.0001
    %v3327 = vadd.f32 %v3295, 0.0001
    %v3328 = vadd.f32 %v3296, 0.0001
    %v3329 = vrsqrt.pop %v3297
    %v3330 = vmul.f32 %v3297, %v3329
    %vm3331 = vcmp.eq.f32.partialorder %v3297, inf
    %v3332 = vsel %vm3331, %v3297, %v3330
    %vm3333 = vcmp.eq.f32.partialorder %v3297, 0.0
    %v3334 = vand.u32 %v3297, 2147483648
    %v3335 = vsel %vm3333, %v3334, %v3332
    %v3336 = vrsqrt.pop %v3298
    %v3337 = vmul.f32 %v3298, %v3336
    %vm3338 = vcmp.eq.f32.partialorder %v3298, inf
    %v3339 = vsel %vm3338, %v3298, %v3337
    %vm3340 = vcmp.eq.f32.partialorder %v3298, 0.0
    %v3341 = vand.u32 %v3298, 2147483648
    %v3342 = vsel %vm3340, %v3341, %v3339
    %v3343 = vrsqrt.pop %v3299
    %v3344 = vmul.f32 %v3299, %v3343
    %vm3345 = vcmp.eq.f32.partialorder %v3299, inf
    %v3346 = vsel %vm3345, %v3299, %v3344
    %vm3347 = vcmp.eq.f32.partialorder %v3299, 0.0
    %v3348 = vand.u32 %v3299, 2147483648
    %v3349 = vsel %vm3347, %v3348, %v3346
    %v3350 = vrsqrt.pop %v3300
    %v3351 = vmul.f32 %v3300, %v3350
    %vm3352 = vcmp.eq.f32.partialorder %v3300, inf
    %v3353 = vsel %vm3352, %v3300, %v3351
    %vm3354 = vcmp.eq.f32.partialorder %v3300, 0.0
    %v3355 = vand.u32 %v3300, 2147483648
    %v3356 = vsel %vm3354, %v3355, %v3353
    %v3357 = vrsqrt.pop %v3301
    %v3358 = vmul.f32 %v3301, %v3357
    %vm3359 = vcmp.eq.f32.partialorder %v3301, inf
    %v3360 = vsel %vm3359, %v3301, %v3358
    %vm3361 = vcmp.eq.f32.partialorder %v3301, 0.0
    %v3362 = vand.u32 %v3301, 2147483648
    %v3363 = vsel %vm3361, %v3362, %v3360
    %v3364 = vrsqrt.pop %v3302
    %v3365 = vmul.f32 %v3302, %v3364
    %vm3366 = vcmp.eq.f32.partialorder %v3302, inf
    %v3367 = vsel %vm3366, %v3302, %v3365
    %vm3368 = vcmp.eq.f32.partialorder %v3302, 0.0
    %v3369 = vand.u32 %v3302, 2147483648
    %v3370 = vsel %vm3368, %v3369, %v3367
    %v3371 = vrsqrt.pop %v3303
    %v3372 = vmul.f32 %v3303, %v3371
    %vm3373 = vcmp.eq.f32.partialorder %v3303, inf
    %v3374 = vsel %vm3373, %v3303, %v3372
    %vm3375 = vcmp.eq.f32.partialorder %v3303, 0.0
    %v3376 = vand.u32 %v3303, 2147483648
    %v3377 = vsel %vm3375, %v3376, %v3374
    %v3378 = vrsqrt.pop %v3304
    %v3379 = vmul.f32 %v3304, %v3378
    %vm3380 = vcmp.eq.f32.partialorder %v3304, inf
    %v3381 = vsel %vm3380, %v3304, %v3379
    %vm3382 = vcmp.eq.f32.partialorder %v3304, 0.0
    %v3383 = vand.u32 %v3304, 2147483648
    %v3384 = vsel %vm3382, %v3383, %v3381
    %v3385 = vrsqrt.pop %v3305
    %v3386 = vmul.f32 %v3305, %v3385
    %vm3387 = vcmp.eq.f32.partialorder %v3305, inf
    %v3388 = vsel %vm3387, %v3305, %v3386
    %vm3389 = vcmp.eq.f32.partialorder %v3305, 0.0
    %v3390 = vand.u32 %v3305, 2147483648
    %v3391 = vsel %vm3389, %v3390, %v3388
    %v3392 = vrsqrt.pop %v3306
    %v3393 = vmul.f32 %v3306, %v3392
    %vm3394 = vcmp.eq.f32.partialorder %v3306, inf
    %v3395 = vsel %vm3394, %v3306, %v3393
    %vm3396 = vcmp.eq.f32.partialorder %v3306, 0.0
    %v3397 = vand.u32 %v3306, 2147483648
    %v3398 = vsel %vm3396, %v3397, %v3395
    %v3399 = vrsqrt.pop %v3307
    %v3400 = vmul.f32 %v3307, %v3399
    %vm3401 = vcmp.eq.f32.partialorder %v3307, inf
    %v3402 = vsel %vm3401, %v3307, %v3400
    %vm3403 = vcmp.eq.f32.partialorder %v3307, 0.0
    %v3404 = vand.u32 %v3307, 2147483648
    %v3405 = vsel %vm3403, %v3404, %v3402
    %v3406 = vrsqrt.pop %v3308
    %v3407 = vmul.f32 %v3308, %v3406
    %vm3408 = vcmp.eq.f32.partialorder %v3308, inf
    %v3409 = vsel %vm3408, %v3308, %v3407
    %vm3410 = vcmp.eq.f32.partialorder %v3308, 0.0
    %v3411 = vand.u32 %v3308, 2147483648
    %v3412 = vsel %vm3410, %v3411, %v3409
    %v3413 = vrsqrt.pop %v3309
    %v3414 = vmul.f32 %v3309, %v3413
    %vm3415 = vcmp.eq.f32.partialorder %v3309, inf
    %v3416 = vsel %vm3415, %v3309, %v3414
    %vm3417 = vcmp.eq.f32.partialorder %v3309, 0.0
    %v3418 = vand.u32 %v3309, 2147483648
    %v3419 = vsel %vm3417, %v3418, %v3416
    %v3420 = vrsqrt.pop %v3310
    %v3421 = vmul.f32 %v3310, %v3420
    %vm3422 = vcmp.eq.f32.partialorder %v3310, inf
    %v3423 = vsel %vm3422, %v3310, %v3421
    %vm3424 = vcmp.eq.f32.partialorder %v3310, 0.0
    %v3425 = vand.u32 %v3310, 2147483648
    %v3426 = vsel %vm3424, %v3425, %v3423
    %v3427 = vrsqrt.pop %v3311
    %v3428 = vmul.f32 %v3311, %v3427
    %vm3429 = vcmp.eq.f32.partialorder %v3311, inf
    %v3430 = vsel %vm3429, %v3311, %v3428
    %vm3431 = vcmp.eq.f32.partialorder %v3311, 0.0
    %v3432 = vand.u32 %v3311, 2147483648
    %v3433 = vsel %vm3431, %v3432, %v3430
    %v3434 = vrsqrt.pop %v3312
    %v3435 = vmul.f32 %v3312, %v3434
    %vm3436 = vcmp.eq.f32.partialorder %v3312, inf
    %v3437 = vsel %vm3436, %v3312, %v3435
    %vm3438 = vcmp.eq.f32.partialorder %v3312, 0.0
    %v3439 = vand.u32 %v3312, 2147483648
    %v3440 = vsel %vm3438, %v3439, %v3437
    %v3441 = vrsqrt.pop %v3313
    %v3442 = vmul.f32 %v3313, %v3441
    %vm3443 = vcmp.eq.f32.partialorder %v3313, inf
    %v3444 = vsel %vm3443, %v3313, %v3442
    %vm3445 = vcmp.eq.f32.partialorder %v3313, 0.0
    %v3446 = vand.u32 %v3313, 2147483648
    %v3447 = vsel %vm3445, %v3446, %v3444
    %v3448 = vrsqrt.pop %v3314
    %v3449 = vmul.f32 %v3314, %v3448
    %vm3450 = vcmp.eq.f32.partialorder %v3314, inf
    %v3451 = vsel %vm3450, %v3314, %v3449
    %vm3452 = vcmp.eq.f32.partialorder %v3314, 0.0
    %v3453 = vand.u32 %v3314, 2147483648
    %v3454 = vsel %vm3452, %v3453, %v3451
    %v3455 = vrsqrt.pop %v3315
    %v3456 = vmul.f32 %v3315, %v3455
    %vm3457 = vcmp.eq.f32.partialorder %v3315, inf
    %v3458 = vsel %vm3457, %v3315, %v3456
    %vm3459 = vcmp.eq.f32.partialorder %v3315, 0.0
    %v3460 = vand.u32 %v3315, 2147483648
    %v3461 = vsel %vm3459, %v3460, %v3458
    %v3462 = vrsqrt.pop %v3316
    %v3463 = vmul.f32 %v3316, %v3462
    %vm3464 = vcmp.eq.f32.partialorder %v3316, inf
    %v3465 = vsel %vm3464, %v3316, %v3463
    %vm3466 = vcmp.eq.f32.partialorder %v3316, 0.0
    %v3467 = vand.u32 %v3316, 2147483648
    %v3468 = vsel %vm3466, %v3467, %v3465
    %v3469 = vrsqrt.pop %v3317
    %v3470 = vmul.f32 %v3317, %v3469
    %vm3471 = vcmp.eq.f32.partialorder %v3317, inf
    %v3472 = vsel %vm3471, %v3317, %v3470
    %vm3473 = vcmp.eq.f32.partialorder %v3317, 0.0
    %v3474 = vand.u32 %v3317, 2147483648
    %v3475 = vsel %vm3473, %v3474, %v3472
    %v3476 = vrsqrt.pop %v3318
    %v3477 = vmul.f32 %v3318, %v3476
    %vm3478 = vcmp.eq.f32.partialorder %v3318, inf
    %v3479 = vsel %vm3478, %v3318, %v3477
    %vm3480 = vcmp.eq.f32.partialorder %v3318, 0.0
    %v3481 = vand.u32 %v3318, 2147483648
    %v3482 = vsel %vm3480, %v3481, %v3479
    %v3483 = vrsqrt.pop %v3319
    %v3484 = vmul.f32 %v3319, %v3483
    %vm3485 = vcmp.eq.f32.partialorder %v3319, inf
    %v3486 = vsel %vm3485, %v3319, %v3484
    %vm3487 = vcmp.eq.f32.partialorder %v3319, 0.0
    %v3488 = vand.u32 %v3319, 2147483648
    %v3489 = vsel %vm3487, %v3488, %v3486
    %v3490 = vrsqrt.pop %v3320
    %v3491 = vmul.f32 %v3320, %v3490
    %vm3492 = vcmp.eq.f32.partialorder %v3320, inf
    %v3493 = vsel %vm3492, %v3320, %v3491
    %vm3494 = vcmp.eq.f32.partialorder %v3320, 0.0
    %v3495 = vand.u32 %v3320, 2147483648
    %v3496 = vsel %vm3494, %v3495, %v3493
    %v3497 = vrsqrt.pop %v3321
    %v3498 = vmul.f32 %v3321, %v3497
    %vm3499 = vcmp.eq.f32.partialorder %v3321, inf
    %v3500 = vsel %vm3499, %v3321, %v3498
    %vm3501 = vcmp.eq.f32.partialorder %v3321, 0.0
    %v3502 = vand.u32 %v3321, 2147483648
    %v3503 = vsel %vm3501, %v3502, %v3500
    %v3504 = vrsqrt.pop %v3322
    %v3505 = vmul.f32 %v3322, %v3504
    %vm3506 = vcmp.eq.f32.partialorder %v3322, inf
    %v3507 = vsel %vm3506, %v3322, %v3505
    %vm3508 = vcmp.eq.f32.partialorder %v3322, 0.0
    %v3509 = vand.u32 %v3322, 2147483648
    %v3510 = vsel %vm3508, %v3509, %v3507
    %v3511 = vrsqrt.pop %v3323
    %v3512 = vmul.f32 %v3323, %v3511
    %vm3513 = vcmp.eq.f32.partialorder %v3323, inf
    %v3514 = vsel %vm3513, %v3323, %v3512
    %vm3515 = vcmp.eq.f32.partialorder %v3323, 0.0
    %v3516 = vand.u32 %v3323, 2147483648
    %v3517 = vsel %vm3515, %v3516, %v3514
    %v3518 = vrsqrt.pop %v3324
    %v3519 = vmul.f32 %v3324, %v3518
    %vm3520 = vcmp.eq.f32.partialorder %v3324, inf
    %v3521 = vsel %vm3520, %v3324, %v3519
    %vm3522 = vcmp.eq.f32.partialorder %v3324, 0.0
    %v3523 = vand.u32 %v3324, 2147483648
    %v3524 = vsel %vm3522, %v3523, %v3521
    %v3525 = vrsqrt.pop %v3325
    %v3526 = vmul.f32 %v3325, %v3525
    %vm3527 = vcmp.eq.f32.partialorder %v3325, inf
    %v3528 = vsel %vm3527, %v3325, %v3526
    %vm3529 = vcmp.eq.f32.partialorder %v3325, 0.0
    %v3530 = vand.u32 %v3325, 2147483648
    %v3531 = vsel %vm3529, %v3530, %v3528
    %v3532 = vrsqrt.pop %v3326
    %v3533 = vmul.f32 %v3326, %v3532
    %vm3534 = vcmp.eq.f32.partialorder %v3326, inf
    %v3535 = vsel %vm3534, %v3326, %v3533
    %vm3536 = vcmp.eq.f32.partialorder %v3326, 0.0
    %v3537 = vand.u32 %v3326, 2147483648
    %v3538 = vsel %vm3536, %v3537, %v3535
    %v3539 = vrsqrt.pop %v3327
    %v3540 = vmul.f32 %v3327, %v3539
    %vm3541 = vcmp.eq.f32.partialorder %v3327, inf
    %v3542 = vsel %vm3541, %v3327, %v3540
    %vm3543 = vcmp.eq.f32.partialorder %v3327, 0.0
    %v3544 = vand.u32 %v3327, 2147483648
    %v3545 = vsel %vm3543, %v3544, %v3542
    %v3546 = vrsqrt.pop %v3328
    %v3547 = vmul.f32 %v3328, %v3546
    %vm3548 = vcmp.eq.f32.partialorder %v3328, inf
    %v3549 = vsel %vm3548, %v3328, %v3547
    %vm3550 = vcmp.eq.f32.partialorder %v3328, 0.0
    %v3551 = vand.u32 %v3328, 2147483648
    %v3552 = vsel %vm3550, %v3551, %v3549
    %v3553 = vsub.f32 %v3335, %v3447
    %v3554 = vsub.f32 %v3342, %v3454
    %v3555 = vsub.f32 %v3349, %v3461
    %v3556 = vsub.f32 %v3356, %v3468
    %v3557 = vsub.f32 %v3363, %v3475
    %v3558 = vsub.f32 %v3370, %v3482
    %v3559 = vsub.f32 %v3377, %v3489
    %v3560 = vsub.f32 %v3384, %v3496
    %v3561 = vsub.f32 %v3391, %v3503
    %v3562 = vsub.f32 %v3398, %v3510
    %v3563 = vsub.f32 %v3405, %v3517
    %v3564 = vsub.f32 %v3412, %v3524
    %v3565 = vsub.f32 %v3419, %v3531
    %v3566 = vsub.f32 %v3426, %v3538
    %v3567 = vsub.f32 %v3433, %v3545
    %v3568 = vsub.f32 %v3440, %v3552
    %v3569 = vand.u32 2147483647, %v3553
    %v3570 = vand.u32 2147483647, %v3554
    %v3571 = vand.u32 2147483647, %v3555
    %v3572 = vand.u32 2147483647, %v3556
    %v3573 = vand.u32 2147483647, %v3557
    %v3574 = vand.u32 2147483647, %v3558
    %v3575 = vand.u32 2147483647, %v3559
    %v3576 = vand.u32 2147483647, %v3560
    %v3577 = vand.u32 2147483647, %v3561
    %v3578 = vand.u32 2147483647, %v3562
    %v3579 = vand.u32 2147483647, %v3563
    %v3580 = vand.u32 2147483647, %v3564
    %v3581 = vand.u32 2147483647, %v3565
    %v3582 = vand.u32 2147483647, %v3566
    %v3583 = vand.u32 2147483647, %v3567
    %v3584 = vand.u32 2147483647, %v3568
    %v3585 = vsel %vm242, %v3569, 0.0
    %v3586 = vsel %vm242, %v3570, 0.0
    %v3587 = vadd.f32 %v3585, %v3586
    %v3588 = vsel %vm242, %v3571, 0.0
    %v3589 = vadd.f32 %v3587, %v3588
    %v3590 = vsel %vm242, %v3572, 0.0
    %v3591 = vadd.f32 %v3589, %v3590
    %v3592 = vsel %vm242, %v3573, 0.0
    %v3593 = vadd.f32 %v3591, %v3592
    %v3594 = vsel %vm242, %v3574, 0.0
    %v3595 = vadd.f32 %v3593, %v3594
    %v3596 = vsel %vm242, %v3575, 0.0
    %v3597 = vadd.f32 %v3595, %v3596
    %v3598 = vsel %vm242, %v3576, 0.0
    %v3599 = vadd.f32 %v3597, %v3598
    %v3600 = vsel %vm242, %v3577, 0.0
    %v3601 = vadd.f32 %v3599, %v3600
    %v3602 = vsel %vm242, %v3578, 0.0
    %v3603 = vadd.f32 %v3601, %v3602
    %v3604 = vsel %vm242, %v3579, 0.0
    %v3605 = vadd.f32 %v3603, %v3604
    %v3606 = vsel %vm242, %v3580, 0.0
    %v3607 = vadd.f32 %v3605, %v3606
    %v3608 = vsel %vm242, %v3581, 0.0
    %v3609 = vadd.f32 %v3607, %v3608
    %v3610 = vsel %vm242, %v3582, 0.0
    %v3611 = vadd.f32 %v3609, %v3610
    %v3612 = vsel %vm242, %v3583, 0.0
    %v3613 = vadd.f32 %v3611, %v3612
    %v3614 = vsel %vm242, %v3584, 0.0
    %v3615 = vadd.f32 %v3613, %v3614
    %3616 = vadd.xlane.f32.xlu0 %v3615
    %v3617 = vpop.xlane.xlu0 %3616
    %v3618 = vrot.slane %v3617, 4
    %v3619 = vadd.f32 %v3617, %v3618
    %v3620 = vrot.slane %v3619, 2
    %v3621 = vadd.f32 %v3619, %v3620
    %v3622 = vrot.slane %v3621, 1
    %v3623 = vadd.f32 %v3621, %v3622
    %s3624 = vtos %v3623
    %v3625 = vstv %s3624
    %3626 = vst [vmem:[#allocation13] sm:$0xff] %v3625
    // Predicated region
    $region50: #{tpu_custom_call.1} parent=1 // pred_check
      _
    $region51: #{tpu_custom_call.1} parent=1 // pred_check_branch
      %3628 = sbr.rel (0) target = $region53
    $region52: #{tpu_custom_call.1} parent=1 // pred_region
      %s3630 = ssub.s32 128, 128
      %3631 = vsyncadd [#allocation4], %s3630
      %s3633 = sshll.u32 [#allocation13], 4
      %s3634 = int_to_ptr.vmem [resolvable:$true] %s3633
      %3636 = dma.vmem_to_hbm [thread:$0]  %s3634, 128, %s6, [#allocation4]
    $region53: #{tpu_custom_call.1} parent=1 // pred_fallthru
      _
    // Predicated region
    $region54: #{tpu_custom_call.1} parent=1 // pred_check
      _
    $region55: #{tpu_custom_call.1} parent=1 // pred_check_branch
      %3638 = sbr.rel (0) target = $region57
    $region56: #{tpu_custom_call.1} parent=1 // pred_region
      %3639 = dma.done [#allocation4], 128
    $region57: #{tpu_custom_call.1} parent=1 // pred_fallthru
      _
    %3640 = vsyncpa [#allocation3], 1
    %3641 = vsyncpa [#allocation6], 1
    %3642 = vsyncpa [#allocation9], 1
    %3643 = vsyncpa [#allocation12], 1
    %3644 = vsyncpa [#allocation4], 1

</llo_original>
